<compile_context>
chip_gen: v6e
topology: v6e:2x2x1
jax: 0.10.0
libtpu: 0.0.40
codegen_flags: <defaults>
</compile_context>

<pallas_src>
import functools

import jax
import jax.numpy as jnp
from jax import lax
from jax.experimental import pallas as pl
from jax.experimental.pallas import tpu as pltpu


def _cross_attn_kernel(q_ref, k_ref, *rest, bt, tq, lk, num_heads, head_dim,
                       eps, kv_shared):
    """One (bt batch elements) x (tq query rows) tile per grid step."""
    if kv_shared:
        vec_ref, wq_ref, wk_ref, wv_ref, wo_ref, o_ref = rest
        v_ref = k_ref
    else:
        v_ref, vec_ref, wq_ref, wk_ref, wv_ref, wo_ref, o_ref = rest

    f32, bf16 = jnp.float32, jnp.bfloat16
    d = num_heads * head_dim

    # Packed vector table: [gq, bq_ln, gkv, bkv, bq*scale, bk, bv, bo].
    vecs = vec_ref[...]                       # (8, D) f32
    gq, bq_ln = vecs[0:1, :], vecs[1:2, :]
    gkv, bkv = vecs[2:3, :], vecs[3:4, :]
    biq, bik, biv, bo = vecs[4:5, :], vecs[5:6, :], vecs[6:7, :], vecs[7:8, :]

    def layernorm(x, gamma, beta):
        # Single-pass: one sweep for mean and E[x^2]; stats in f32.
        mu = jnp.mean(x, axis=-1, keepdims=True)
        m2 = jnp.mean(x * x, axis=-1, keepdims=True)
        var = jnp.maximum(m2 - mu * mu, 0.0)
        return (x - mu) * lax.rsqrt(var + eps) * gamma + beta

    # LayerNorm + projections on flattened (rows, D) slabs.  The attention
    # scale 1/sqrt(hd) is already folded into wq_ref / biq by the wrapper.
    qn = layernorm(q_ref[...].reshape(bt * tq, d).astype(f32), gq, bq_ln)
    Q = jnp.dot(qn.astype(bf16), wq_ref[...], preferred_element_type=f32) + biq

    kn = layernorm(k_ref[...].reshape(bt * lk, d).astype(f32), gkv, bkv)
    K = jnp.dot(kn.astype(bf16), wk_ref[...], preferred_element_type=f32) + bik

    if kv_shared:
        vn = kn                               # dedupe shared key/value LN
    else:
        vn = layernorm(v_ref[...].reshape(bt * lk, d).astype(f32), gkv, bkv)
    V = jnp.dot(vn.astype(bf16), wv_ref[...], preferred_element_type=f32) + biv

    Q3 = Q.reshape(bt, tq, d).astype(bf16)
    K3 = K.reshape(bt, lk, d).astype(bf16)
    V3 = V.reshape(bt, lk, d).astype(bf16)

    # Per-head attention; output projection accumulated directly into a
    # full-lane-width f32 value (no narrow-lane scratch stores, no concat).
    out = jnp.zeros((bt * tq, d), f32)
    for h in range(num_heads):                # static, small H
        sl = slice(h * head_dim, (h + 1) * head_dim)
        Qh, Kh, Vh = Q3[:, :, sl], K3[:, :, sl], V3[:, :, sl]

        # Batched over bt, contraction over hd — no explicit transpose.
        s = jnp.einsum('bqd,bkd->bqk', Qh, Kh, preferred_element_type=f32)
        s = s - jnp.max(s, axis=-1, keepdims=True)
        p = jnp.exp(s)
        p = p * pl.reciprocal(jnp.sum(p, axis=-1, keepdims=True))
        oh = jnp.einsum('bqk,bkd->bqd', p.astype(bf16), Vh,
                        preferred_element_type=f32)          # (bt, tq, hd)
        out = out + jnp.dot(
            oh.reshape(bt * tq, head_dim).astype(bf16),
            wo_ref[h * head_dim:(h + 1) * head_dim, :],       # static row slice
            preferred_element_type=f32)

    out = out + bo
    o_ref[...] = out.reshape(bt, tq, d).astype(o_ref.dtype)


def prepare_params(params, *, num_heads):
    """One-time weight preprocessing (hoisted off the per-call path):
    transpose + bf16-cast the projection weights, fold 1/sqrt(head_dim) into
    Wq/bq, and pack all (D,) vectors into one (8, D) f32 table."""
    D = params["wq"].shape[0]
    head_dim = D // num_heads
    scale = 1.0 / float(head_dim) ** 0.5
    f32 = lambda x: jnp.asarray(x, jnp.float32)
    wt = lambda w: f32(w).T.astype(jnp.bfloat16)
    vecs = jnp.stack([
        f32(params["ln_q_g"]), f32(params["ln_q_b"]),
        f32(params["ln_kv_g"]), f32(params["ln_kv_b"]),
        f32(params["bq"]) * scale, f32(params["bk"]),
        f32(params["bv"]), f32(params["bo"]),
    ], axis=0)                                    # (8, D)
    return {
        "wq_t": (f32(params["wq"]).T * scale).astype(jnp.bfloat16),
        "wk_t": wt(params["wk"]),
        "wv_t": wt(params["wv"]),
        "wo_t": wt(params["wo"]),
        "vecs": vecs,
    }


def _vmem_limit_bytes():
    """Generation-aware scoped-VMEM limit (v5e/v6e: 128 MiB phys, v7x: 64)."""
    try:
        cap = pltpu.get_tpu_info().vmem_capacity_bytes
    except Exception:
        cap = 64 * 1024 * 1024                    # conservative (v7x-safe)
    # Cap at 75% of physical and always leave >=16 MiB for compiler scratch.
    return max(32 * 1024 * 1024, min(cap - 16 * 1024 * 1024, (cap * 3) // 4))


def _pick_q_block(Lq, Lk, D, bt, vmem_limit):
    """Largest Lq tile (multiple of 8, <=512) whose working set fits ~half of
    the VMEM budget: weights (single-buffered) + k/v stream + q/out pipeline
    + f32 working copies + per-head f32 score tile."""
    if Lq <= 8:
        return Lq
    fixed = 4 * D * D * 2 + 8 * D * 4             # bf16 weights + vec table
    kv = 2 * bt * Lk * D * 4 * 5                  # k & v: 2-buf input + f32 work
    budget = max(vmem_limit // 2 - fixed - kv, 1 << 20)
    per_row = bt * (7 * D * 4 + Lk * 4)           # q/out 2-buf + f32 work + score
    tq = budget // max(per_row, 1)
    tq = int(max(8, min(tq, 512, Lq)))
    return (tq // 8) * 8


def cross_attention_layer(query, key, value, prepared, *, num_heads,
                          eps=1e-5, batch_block=1, q_block=None):
    """query: (B, Lq, D); key/value: (B, Lk, D) -> (B, Lq, D)."""
    B, Lq, D = query.shape
    _, Lk, _ = key.shape
    assert D % num_heads == 0
    head_dim = D // num_heads

    # Common LoftUp usage passes the same tensor for key and value: dedupe
    # the HBM stream and the LayerNorm.
    kv_shared = key is value

    bt = max(1, min(int(batch_block), B))
    vmem_limit = _vmem_limit_bytes()
    tq = q_block if q_block is not None else _pick_q_block(Lq, Lk, D, bt, vmem_limit)
    tq = max(1, min(tq, Lq))

    grid = (pl.cdiv(B, bt), pl.cdiv(Lq, tq))

    kernel = functools.partial(
        _cross_attn_kernel, bt=bt, tq=tq, lk=Lk, num_heads=num_heads,
        head_dim=head_dim, eps=eps, kv_shared=kv_shared)

    q_spec = pl.BlockSpec((bt, tq, D), lambda i, j: (i, j, 0))
    kv_spec = pl.BlockSpec((bt, Lk, D), lambda i, j: (i, 0, 0))   # j-invariant
    out_spec = pl.BlockSpec((bt, tq, D), lambda i, j: (i, j, 0))

    operands = [query, key]
    base_specs = [q_spec, kv_spec]
    if not kv_shared:
        operands.append(value)
        base_specs.append(kv_spec)
    operands += [prepared["vecs"], prepared["wq_t"], prepared["wk_t"],
                 prepared["wv_t"], prepared["wo_t"]]
    const_shapes = [(8, D), (D, D), (D, D), (D, D), (D, D)]

    def _call(single_buffer_weights):
        if single_buffer_weights:
            # Constant-index weights never get re-DMA'd; single-buffer them to
            # reclaim the ~4x D^2 bf16 of double-buffer VMEM.
            const = lambda shp: pl.BlockSpec(shp, lambda i, j: (0, 0),
                                             pipeline_mode=pl.Buffered(1))
        else:
            const = lambda shp: pl.BlockSpec(shp, lambda i, j: (0, 0))
        in_specs = base_specs + [const(s) for s in const_shapes]
        return pl.pallas_call(
            kernel,
            out_shape=jax.ShapeDtypeStruct((B, Lq, D), query.dtype),
            grid_spec=pltpu.PrefetchScalarGridSpec(
                num_scalar_prefetch=0,
                grid=grid,
                in_specs=in_specs,
                out_specs=out_spec,
            ),
            compiler_params=pltpu.CompilerParams(
                dimension_semantics=("parallel", "parallel"),
                vmem_limit_bytes=vmem_limit),
        )(*operands)

    try:
        return _call(single_buffer_weights=True)
    except Exception:
        # Fallback if single-buffered (pl.Buffered(1)) weight specs are not
        # supported on this JAX/libtpu build; kernel body is identical.
        return _call(single_buffer_weights=False)


def _reference(query, key, value, params, *, num_heads, eps=1e-5):
    """Pure-JAX f32 reference mirroring the PyTorch module semantics."""
    def ln(x, g, b):
        mu = jnp.mean(x, axis=-1, keepdims=True)
        var = jnp.mean((x - mu) ** 2, axis=-1, keepdims=True)
        return (x - mu) * jax.lax.rsqrt(var + eps) * g + b

    D = query.shape[-1]
    hd = D // num_heads
    q = ln(query, params["ln_q_g"], params["ln_q_b"])
    k = ln(key, params["ln_kv_g"], params["ln_kv_b"])
    v = ln(value, params["ln_kv_g"], params["ln_kv_b"])

    Q = q @ params["wq"].T + params["bq"]
    K = k @ params["wk"].T + params["bk"]
    V = v @ params["wv"].T + params["bv"]

    B, Lq, _ = Q.shape
    Lk = K.shape[1]
    Qh = Q.reshape(B, Lq, num_heads, hd).transpose(0, 2, 1, 3)
    Kh = K.reshape(B, Lk, num_heads, hd).transpose(0, 2, 1, 3)
    Vh = V.reshape(B, Lk, num_heads, hd).transpose(0, 2, 1, 3)

    s = jnp.einsum("bhqd,bhkd->bhqk", Qh, Kh) / jnp.sqrt(hd)
    p = jax.nn.softmax(s, axis=-1)
    o = jnp.einsum("bhqk,bhkd->bhqd", p, Vh)
    o = o.transpose(0, 2, 1, 3).reshape(B, Lq, D)
    return o @ params["wo"].T + params["bo"]


if __name__ == "__main__":
    B, Lq, Lk, D, H = 2, 8, 16, 32, 4

    key_root = jax.random.PRNGKey(0)
    ks = jax.random.split(key_root, 12)

    query = jax.random.normal(ks[0], (B, Lq, D), jnp.float32)
    key_t = jax.random.normal(ks[1], (B, Lk, D), jnp.float32)
    value = jax.random.normal(ks[2], (B, Lk, D), jnp.float32)

    s = 0.1
    params = {
        "ln_q_g": 1.0 + s * jax.random.normal(ks[3], (D,), jnp.float32),
        "ln_q_b": s * jax.random.normal(ks[4], (D,), jnp.float32),
        "ln_kv_g": 1.0 + s * jax.random.normal(ks[5], (D,), jnp.float32),
        "ln_kv_b": s * jax.random.normal(ks[6], (D,), jnp.float32),
        "wq": s * jax.random.normal(ks[7], (D, D), jnp.float32),
        "wk": s * jax.random.normal(ks[8], (D, D), jnp.float32),
        "wv": s * jax.random.normal(ks[9], (D, D), jnp.float32),
        "bq": s * jax.random.normal(ks[10], (D,), jnp.float32),
        "bk": jnp.zeros((D,), jnp.float32),
        "bv": jnp.zeros((D,), jnp.float32),
        "wo": s * jax.random.normal(ks[11], (D, D), jnp.float32),
        "bo": jnp.zeros((D,), jnp.float32),
    }

    prepared = prepare_params(params, num_heads=H)   # one-time weight prep

    # Distinct key / value tensors.
    out = cross_attention_layer(query, key_t, value, prepared, num_heads=H)
    out = jax.block_until_ready(out)
    ref = _reference(query, key_t, value, params, num_heads=H)
    assert out.shape == (B, Lq, D)
    # bf16 matmul operands -> relaxed tolerance vs f32 reference.
    assert jnp.allclose(out, ref, atol=2e-2, rtol=2e-2), "mismatch vs reference"

    # Shared key/value (common LoftUp usage) exercises the deduped kv path.
    out_kv = cross_attention_layer(query, key_t, key_t, prepared, num_heads=H)
    out_kv = jax.block_until_ready(out_kv)
    ref_kv = _reference(query, key_t, key_t, params, num_heads=H)
    assert jnp.allclose(out_kv, ref_kv, atol=2e-2, rtol=2e-2), "kv-shared mismatch"

    print("KERNEL_OK")
</pallas_src>

<mosaic_0001>
module attributes {stable_mosaic.version = 11 : i64} {
  func.func @_cross_attn_kernel(%arg0: i32, %arg1: i32, %arg2: memref<1x8x32xf32, #tpu.memory_space<vmem>>, %arg3: memref<1x16x32xf32, #tpu.memory_space<vmem>>, %arg4: memref<1x16x32xf32, #tpu.memory_space<vmem>>, %arg5: memref<8x32xf32, #tpu.memory_space<vmem>>, %arg6: memref<32x32xbf16, #tpu.memory_space<vmem>>, %arg7: memref<32x32xbf16, #tpu.memory_space<vmem>>, %arg8: memref<32x32xbf16, #tpu.memory_space<vmem>>, %arg9: memref<32x32xbf16, #tpu.memory_space<vmem>>, %arg10: memref<1x8x32xf32, #tpu.memory_space<vmem>>) attributes {dimension_semantics = [#tpu.dimension_semantics<parallel>, #tpu.dimension_semantics<parallel>], iteration_bounds = array<i64: 2, 1>, scalar_prefetch = 0 : i64, scratch_operands = 0 : i64, tpu.core_type = #tpu.core_type<tc>, window_params = [{transform_indices = @transform_0, window_bounds = array<i64: 1, 8, 32>}, {transform_indices = @transform_1, window_bounds = array<i64: 1, 16, 32>}, {transform_indices = @transform_2, window_bounds = array<i64: 1, 16, 32>}, {pipeline_mode = #tpu.pipeline_mode<synchronous>, transform_indices = @transform_3, window_bounds = array<i64: 8, 32>}, {pipeline_mode = #tpu.pipeline_mode<synchronous>, transform_indices = @transform_4, window_bounds = array<i64: 32, 32>}, {pipeline_mode = #tpu.pipeline_mode<synchronous>, transform_indices = @transform_5, window_bounds = array<i64: 32, 32>}, {pipeline_mode = #tpu.pipeline_mode<synchronous>, transform_indices = @transform_6, window_bounds = array<i64: 32, 32>}, {pipeline_mode = #tpu.pipeline_mode<synchronous>, transform_indices = @transform_7, window_bounds = array<i64: 32, 32>}, {transform_indices = @transform_8, window_bounds = array<i64: 1, 8, 32>}]} {
    %c0 = arith.constant 0 : index
    %c0_0 = arith.constant 0 : index
    %0 = vector.load %arg5[%c0, %c0_0] : memref<8x32xf32, #tpu.memory_space<vmem>>, vector<8x32xf32>
    %1 = vector.extract_strided_slice %0 {offsets = [0, 0], sizes = [1, 32], strides = [1, 1]} : vector<8x32xf32> to vector<1x32xf32>
    %2 = vector.extract_strided_slice %0 {offsets = [1, 0], sizes = [1, 32], strides = [1, 1]} : vector<8x32xf32> to vector<1x32xf32>
    %3 = vector.extract_strided_slice %0 {offsets = [2, 0], sizes = [1, 32], strides = [1, 1]} : vector<8x32xf32> to vector<1x32xf32>
    %4 = vector.extract_strided_slice %0 {offsets = [3, 0], sizes = [1, 32], strides = [1, 1]} : vector<8x32xf32> to vector<1x32xf32>
    %5 = vector.extract_strided_slice %0 {offsets = [4, 0], sizes = [1, 32], strides = [1, 1]} : vector<8x32xf32> to vector<1x32xf32>
    %6 = vector.extract_strided_slice %0 {offsets = [5, 0], sizes = [1, 32], strides = [1, 1]} : vector<8x32xf32> to vector<1x32xf32>
    %7 = vector.extract_strided_slice %0 {offsets = [6, 0], sizes = [1, 32], strides = [1, 1]} : vector<8x32xf32> to vector<1x32xf32>
    %8 = vector.extract_strided_slice %0 {offsets = [7, 0], sizes = [1, 32], strides = [1, 1]} : vector<8x32xf32> to vector<1x32xf32>
    %c0_1 = arith.constant 0 : index
    %c0_2 = arith.constant 0 : index
    %c0_3 = arith.constant 0 : index
    %9 = vector.load %arg2[%c0_1, %c0_2, %c0_3] : memref<1x8x32xf32, #tpu.memory_space<vmem>>, vector<1x8x32xf32>
    %10 = vector.shape_cast %9 : vector<1x8x32xf32> to vector<8x32xf32>
    %cst = arith.constant dense<0.000000e+00> : vector<8xf32>
    %11 = vector.multi_reduction <add>, %10, %cst [1] : vector<8x32xf32> to vector<8xf32>
    %12 = vector.shape_cast %11 : vector<8xf32> to vector<8x1xf32>
    %cst_4 = arith.constant 3.200000e+01 : f32
    %13 = vector.broadcast %cst_4 : f32 to vector<8x1xf32>
    %14 = arith.divf %12, %13 : vector<8x1xf32>
    %15 = arith.mulf %10, %10 : vector<8x32xf32>
    %cst_5 = arith.constant dense<0.000000e+00> : vector<8xf32>
    %16 = vector.multi_reduction <add>, %15, %cst_5 [1] : vector<8x32xf32> to vector<8xf32>
    %17 = vector.shape_cast %16 : vector<8xf32> to vector<8x1xf32>
    %cst_6 = arith.constant 3.200000e+01 : f32
    %18 = vector.broadcast %cst_6 : f32 to vector<8x1xf32>
    %19 = arith.divf %17, %18 : vector<8x1xf32>
    %20 = arith.mulf %14, %14 : vector<8x1xf32>
    %21 = arith.subf %19, %20 : vector<8x1xf32>
    %cst_7 = arith.constant 0.000000e+00 : f32
    %22 = vector.broadcast %cst_7 : f32 to vector<8x1xf32>
    %23 = arith.maximumf %21, %22 : vector<8x1xf32>
    %24 = vector.broadcast %14 : vector<8x1xf32> to vector<8x32xf32>
    %25 = arith.subf %10, %24 : vector<8x32xf32>
    %cst_8 = arith.constant 9.99999974E-6 : f32
    %26 = vector.broadcast %cst_8 : f32 to vector<8x1xf32>
    %27 = arith.addf %23, %26 : vector<8x1xf32>
    %28 = math.rsqrt %27 : vector<8x1xf32>
    %29 = vector.broadcast %28 : vector<8x1xf32> to vector<8x32xf32>
    %30 = arith.mulf %25, %29 : vector<8x32xf32>
    %31 = vector.broadcast %1 : vector<1x32xf32> to vector<8x32xf32>
    %32 = arith.mulf %30, %31 : vector<8x32xf32>
    %33 = vector.broadcast %2 : vector<1x32xf32> to vector<8x32xf32>
    %34 = arith.addf %32, %33 : vector<8x32xf32>
    %35 = arith.truncf %34 : vector<8x32xf32> to vector<8x32xbf16>
    %c0_9 = arith.constant 0 : index
    %c0_10 = arith.constant 0 : index
    %36 = vector.load %arg6[%c0_9, %c0_10] : memref<32x32xbf16, #tpu.memory_space<vmem>>, vector<32x32xbf16>
    %cst_11 = arith.constant dense<0.000000e+00> : vector<8x32xf32>
    %37 = tpu.matmul %35, %36, %cst_11 {dimension_numbers = #tpu.dot_dimension_numbers<[1], [0], [0], [1], [0, 0, 1, 1], [], []>} : vector<8x32xbf16>, vector<32x32xbf16>, vector<8x32xf32> -> vector<8x32xf32>
    %38 = vector.broadcast %5 : vector<1x32xf32> to vector<8x32xf32>
    %39 = arith.addf %37, %38 : vector<8x32xf32>
    %c0_12 = arith.constant 0 : index
    %c0_13 = arith.constant 0 : index
    %c0_14 = arith.constant 0 : index
    %40 = vector.load %arg3[%c0_12, %c0_13, %c0_14] : memref<1x16x32xf32, #tpu.memory_space<vmem>>, vector<1x16x32xf32>
    %41 = vector.shape_cast %40 : vector<1x16x32xf32> to vector<16x32xf32>
    %cst_15 = arith.constant dense<0.000000e+00> : vector<16xf32>
    %42 = vector.multi_reduction <add>, %41, %cst_15 [1] : vector<16x32xf32> to vector<16xf32>
    %43 = vector.shape_cast %42 : vector<16xf32> to vector<16x1xf32>
    %cst_16 = arith.constant 3.200000e+01 : f32
    %44 = vector.broadcast %cst_16 : f32 to vector<16x1xf32>
    %45 = arith.divf %43, %44 : vector<16x1xf32>
    %46 = arith.mulf %41, %41 : vector<16x32xf32>
    %cst_17 = arith.constant dense<0.000000e+00> : vector<16xf32>
    %47 = vector.multi_reduction <add>, %46, %cst_17 [1] : vector<16x32xf32> to vector<16xf32>
    %48 = vector.shape_cast %47 : vector<16xf32> to vector<16x1xf32>
    %cst_18 = arith.constant 3.200000e+01 : f32
    %49 = vector.broadcast %cst_18 : f32 to vector<16x1xf32>
    %50 = arith.divf %48, %49 : vector<16x1xf32>
    %51 = arith.mulf %45, %45 : vector<16x1xf32>
    %52 = arith.subf %50, %51 : vector<16x1xf32>
    %cst_19 = arith.constant 0.000000e+00 : f32
    %53 = vector.broadcast %cst_19 : f32 to vector<16x1xf32>
    %54 = arith.maximumf %52, %53 : vector<16x1xf32>
    %55 = vector.broadcast %45 : vector<16x1xf32> to vector<16x32xf32>
    %56 = arith.subf %41, %55 : vector<16x32xf32>
    %cst_20 = arith.constant 9.99999974E-6 : f32
    %57 = vector.broadcast %cst_20 : f32 to vector<16x1xf32>
    %58 = arith.addf %54, %57 : vector<16x1xf32>
    %59 = math.rsqrt %58 : vector<16x1xf32>
    %60 = vector.broadcast %59 : vector<16x1xf32> to vector<16x32xf32>
    %61 = arith.mulf %56, %60 : vector<16x32xf32>
    %62 = vector.broadcast %3 : vector<1x32xf32> to vector<16x32xf32>
    %63 = arith.mulf %61, %62 : vector<16x32xf32>
    %64 = vector.broadcast %4 : vector<1x32xf32> to vector<16x32xf32>
    %65 = arith.addf %63, %64 : vector<16x32xf32>
    %66 = arith.truncf %65 : vector<16x32xf32> to vector<16x32xbf16>
    %c0_21 = arith.constant 0 : index
    %c0_22 = arith.constant 0 : index
    %67 = vector.load %arg7[%c0_21, %c0_22] : memref<32x32xbf16, #tpu.memory_space<vmem>>, vector<32x32xbf16>
    %cst_23 = arith.constant dense<0.000000e+00> : vector<16x32xf32>
    %68 = tpu.matmul %66, %67, %cst_23 {dimension_numbers = #tpu.dot_dimension_numbers<[1], [0], [0], [1], [0, 0, 1, 1], [], []>} : vector<16x32xbf16>, vector<32x32xbf16>, vector<16x32xf32> -> vector<16x32xf32>
    %69 = vector.broadcast %6 : vector<1x32xf32> to vector<16x32xf32>
    %70 = arith.addf %68, %69 : vector<16x32xf32>
    %c0_24 = arith.constant 0 : index
    %c0_25 = arith.constant 0 : index
    %c0_26 = arith.constant 0 : index
    %71 = vector.load %arg4[%c0_24, %c0_25, %c0_26] : memref<1x16x32xf32, #tpu.memory_space<vmem>>, vector<1x16x32xf32>
    %72 = vector.shape_cast %71 : vector<1x16x32xf32> to vector<16x32xf32>
    %cst_27 = arith.constant dense<0.000000e+00> : vector<16xf32>
    %73 = vector.multi_reduction <add>, %72, %cst_27 [1] : vector<16x32xf32> to vector<16xf32>
    %74 = vector.shape_cast %73 : vector<16xf32> to vector<16x1xf32>
    %cst_28 = arith.constant 3.200000e+01 : f32
    %75 = vector.broadcast %cst_28 : f32 to vector<16x1xf32>
    %76 = arith.divf %74, %75 : vector<16x1xf32>
    %77 = arith.mulf %72, %72 : vector<16x32xf32>
    %cst_29 = arith.constant dense<0.000000e+00> : vector<16xf32>
    %78 = vector.multi_reduction <add>, %77, %cst_29 [1] : vector<16x32xf32> to vector<16xf32>
    %79 = vector.shape_cast %78 : vector<16xf32> to vector<16x1xf32>
    %cst_30 = arith.constant 3.200000e+01 : f32
    %80 = vector.broadcast %cst_30 : f32 to vector<16x1xf32>
    %81 = arith.divf %79, %80 : vector<16x1xf32>
    %82 = arith.mulf %76, %76 : vector<16x1xf32>
    %83 = arith.subf %81, %82 : vector<16x1xf32>
    %cst_31 = arith.constant 0.000000e+00 : f32
    %84 = vector.broadcast %cst_31 : f32 to vector<16x1xf32>
    %85 = arith.maximumf %83, %84 : vector<16x1xf32>
    %86 = vector.broadcast %76 : vector<16x1xf32> to vector<16x32xf32>
    %87 = arith.subf %72, %86 : vector<16x32xf32>
    %cst_32 = arith.constant 9.99999974E-6 : f32
    %88 = vector.broadcast %cst_32 : f32 to vector<16x1xf32>
    %89 = arith.addf %85, %88 : vector<16x1xf32>
    %90 = math.rsqrt %89 : vector<16x1xf32>
    %91 = vector.broadcast %90 : vector<16x1xf32> to vector<16x32xf32>
    %92 = arith.mulf %87, %91 : vector<16x32xf32>
    %93 = vector.broadcast %3 : vector<1x32xf32> to vector<16x32xf32>
    %94 = arith.mulf %92, %93 : vector<16x32xf32>
    %95 = vector.broadcast %4 : vector<1x32xf32> to vector<16x32xf32>
    %96 = arith.addf %94, %95 : vector<16x32xf32>
    %97 = arith.truncf %96 : vector<16x32xf32> to vector<16x32xbf16>
    %c0_33 = arith.constant 0 : index
    %c0_34 = arith.constant 0 : index
    %98 = vector.load %arg8[%c0_33, %c0_34] : memref<32x32xbf16, #tpu.memory_space<vmem>>, vector<32x32xbf16>
    %cst_35 = arith.constant dense<0.000000e+00> : vector<16x32xf32>
    %99 = tpu.matmul %97, %98, %cst_35 {dimension_numbers = #tpu.dot_dimension_numbers<[1], [0], [0], [1], [0, 0, 1, 1], [], []>} : vector<16x32xbf16>, vector<32x32xbf16>, vector<16x32xf32> -> vector<16x32xf32>
    %100 = vector.broadcast %7 : vector<1x32xf32> to vector<16x32xf32>
    %101 = arith.addf %99, %100 : vector<16x32xf32>
    %102 = vector.shape_cast %39 : vector<8x32xf32> to vector<1x8x32xf32>
    %103 = arith.truncf %102 : vector<1x8x32xf32> to vector<1x8x32xbf16>
    %104 = vector.shape_cast %70 : vector<16x32xf32> to vector<1x16x32xf32>
    %105 = arith.truncf %104 : vector<1x16x32xf32> to vector<1x16x32xbf16>
    %106 = vector.shape_cast %101 : vector<16x32xf32> to vector<1x16x32xf32>
    %107 = arith.truncf %106 : vector<1x16x32xf32> to vector<1x16x32xbf16>
    %cst_36 = arith.constant 0.000000e+00 : f32
    %108 = vector.broadcast %cst_36 : f32 to vector<8x32xf32>
    %109 = vector.extract_strided_slice %103 {offsets = [0, 0, 0], sizes = [1, 8, 8], strides = [1, 1, 1]} : vector<1x8x32xbf16> to vector<1x8x8xbf16>
    %110 = vector.extract_strided_slice %105 {offsets = [0, 0, 0], sizes = [1, 16, 8], strides = [1, 1, 1]} : vector<1x16x32xbf16> to vector<1x16x8xbf16>
    %111 = vector.extract_strided_slice %107 {offsets = [0, 0, 0], sizes = [1, 16, 8], strides = [1, 1, 1]} : vector<1x16x32xbf16> to vector<1x16x8xbf16>
    "tpu.trace_start"() <{level = 10 : i32, message = "bqd,bkd->bqk"}> : () -> ()
    %cst_37 = arith.constant dense<0.000000e+00> : vector<1x8x16xf32>
    %112 = tpu.matmul %109, %110, %cst_37 {dimension_numbers = #tpu.dot_dimension_numbers<[2], [2], [1], [1], [0, 0, 0, 1, 1, 1], [0], [0]>} : vector<1x8x8xbf16>, vector<1x16x8xbf16>, vector<1x8x16xf32> -> vector<1x8x16xf32>
    "tpu.trace_stop"() : () -> ()
    %cst_38 = arith.constant dense<0xFF800000> : vector<1x8xf32>
    %113 = vector.multi_reduction <maximumf>, %112, %cst_38 [2] : vector<1x8x16xf32> to vector<1x8xf32>
    %114 = vector.shape_cast %113 : vector<1x8xf32> to vector<1x8x1xf32>
    %115 = vector.broadcast %114 : vector<1x8x1xf32> to vector<1x8x16xf32>
    %116 = arith.subf %112, %115 : vector<1x8x16xf32>
    %117 = math.exp %116 : vector<1x8x16xf32>
    %cst_39 = arith.constant dense<0.000000e+00> : vector<1x8xf32>
    %118 = vector.multi_reduction <add>, %117, %cst_39 [2] : vector<1x8x16xf32> to vector<1x8xf32>
    %119 = vector.shape_cast %118 : vector<1x8xf32> to vector<1x8x1xf32>
    %120 = tpu.reciprocal %119 : vector<1x8x1xf32> -> vector<1x8x1xf32>
    %121 = vector.broadcast %120 : vector<1x8x1xf32> to vector<1x8x16xf32>
    %122 = arith.mulf %117, %121 : vector<1x8x16xf32>
    %123 = arith.truncf %122 : vector<1x8x16xf32> to vector<1x8x16xbf16>
    "tpu.trace_start"() <{level = 10 : i32, message = "bqk,bkd->bqd"}> : () -> ()
    %cst_40 = arith.constant dense<0.000000e+00> : vector<1x8x8xf32>
    %124 = tpu.matmul %123, %111, %cst_40 {dimension_numbers = #tpu.dot_dimension_numbers<[2], [1], [1], [2], [0, 0, 0, 1, 1, 2], [0], [0]>} : vector<1x8x16xbf16>, vector<1x16x8xbf16>, vector<1x8x8xf32> -> vector<1x8x8xf32>
    "tpu.trace_stop"() : () -> ()
    %125 = vector.shape_cast %124 : vector<1x8x8xf32> to vector<8x8xf32>
    %126 = arith.truncf %125 : vector<8x8xf32> to vector<8x8xbf16>
    %c0_41 = arith.constant 0 : index
    %c0_42 = arith.constant 0 : index
    %127 = vector.load %arg9[%c0_41, %c0_42] : memref<32x32xbf16, #tpu.memory_space<vmem>>, vector<8x32xbf16>
    %cst_43 = arith.constant dense<0.000000e+00> : vector<8x32xf32>
    %128 = tpu.matmul %126, %127, %cst_43 {dimension_numbers = #tpu.dot_dimension_numbers<[1], [0], [0], [1], [0, 0, 1, 1], [], []>} : vector<8x8xbf16>, vector<8x32xbf16>, vector<8x32xf32> -> vector<8x32xf32>
    %129 = arith.addf %108, %128 : vector<8x32xf32>
    %130 = vector.extract_strided_slice %103 {offsets = [0, 0, 8], sizes = [1, 8, 8], strides = [1, 1, 1]} : vector<1x8x32xbf16> to vector<1x8x8xbf16>
    %131 = vector.extract_strided_slice %105 {offsets = [0, 0, 8], sizes = [1, 16, 8], strides = [1, 1, 1]} : vector<1x16x32xbf16> to vector<1x16x8xbf16>
    %132 = vector.extract_strided_slice %107 {offsets = [0, 0, 8], sizes = [1, 16, 8], strides = [1, 1, 1]} : vector<1x16x32xbf16> to vector<1x16x8xbf16>
    "tpu.trace_start"() <{level = 10 : i32, message = "bqd,bkd->bqk"}> : () -> ()
    %cst_44 = arith.constant dense<0.000000e+00> : vector<1x8x16xf32>
    %133 = tpu.matmul %130, %131, %cst_44 {dimension_numbers = #tpu.dot_dimension_numbers<[2], [2], [1], [1], [0, 0, 0, 1, 1, 1], [0], [0]>} : vector<1x8x8xbf16>, vector<1x16x8xbf16>, vector<1x8x16xf32> -> vector<1x8x16xf32>
    "tpu.trace_stop"() : () -> ()
    %cst_45 = arith.constant dense<0xFF800000> : vector<1x8xf32>
    %134 = vector.multi_reduction <maximumf>, %133, %cst_45 [2] : vector<1x8x16xf32> to vector<1x8xf32>
    %135 = vector.shape_cast %134 : vector<1x8xf32> to vector<1x8x1xf32>
    %136 = vector.broadcast %135 : vector<1x8x1xf32> to vector<1x8x16xf32>
    %137 = arith.subf %133, %136 : vector<1x8x16xf32>
    %138 = math.exp %137 : vector<1x8x16xf32>
    %cst_46 = arith.constant dense<0.000000e+00> : vector<1x8xf32>
    %139 = vector.multi_reduction <add>, %138, %cst_46 [2] : vector<1x8x16xf32> to vector<1x8xf32>
    %140 = vector.shape_cast %139 : vector<1x8xf32> to vector<1x8x1xf32>
    %141 = tpu.reciprocal %140 : vector<1x8x1xf32> -> vector<1x8x1xf32>
    %142 = vector.broadcast %141 : vector<1x8x1xf32> to vector<1x8x16xf32>
    %143 = arith.mulf %138, %142 : vector<1x8x16xf32>
    %144 = arith.truncf %143 : vector<1x8x16xf32> to vector<1x8x16xbf16>
    "tpu.trace_start"() <{level = 10 : i32, message = "bqk,bkd->bqd"}> : () -> ()
    %cst_47 = arith.constant dense<0.000000e+00> : vector<1x8x8xf32>
    %145 = tpu.matmul %144, %132, %cst_47 {dimension_numbers = #tpu.dot_dimension_numbers<[2], [1], [1], [2], [0, 0, 0, 1, 1, 2], [0], [0]>} : vector<1x8x16xbf16>, vector<1x16x8xbf16>, vector<1x8x8xf32> -> vector<1x8x8xf32>
    "tpu.trace_stop"() : () -> ()
    %146 = vector.shape_cast %145 : vector<1x8x8xf32> to vector<8x8xf32>
    %147 = arith.truncf %146 : vector<8x8xf32> to vector<8x8xbf16>
    %c8 = arith.constant 8 : index
    %c0_48 = arith.constant 0 : index
    %148 = vector.load %arg9[%c8, %c0_48] : memref<32x32xbf16, #tpu.memory_space<vmem>>, vector<8x32xbf16>
    %cst_49 = arith.constant dense<0.000000e+00> : vector<8x32xf32>
    %149 = tpu.matmul %147, %148, %cst_49 {dimension_numbers = #tpu.dot_dimension_numbers<[1], [0], [0], [1], [0, 0, 1, 1], [], []>} : vector<8x8xbf16>, vector<8x32xbf16>, vector<8x32xf32> -> vector<8x32xf32>
    %150 = arith.addf %129, %149 : vector<8x32xf32>
    %151 = vector.extract_strided_slice %103 {offsets = [0, 0, 16], sizes = [1, 8, 8], strides = [1, 1, 1]} : vector<1x8x32xbf16> to vector<1x8x8xbf16>
    %152 = vector.extract_strided_slice %105 {offsets = [0, 0, 16], sizes = [1, 16, 8], strides = [1, 1, 1]} : vector<1x16x32xbf16> to vector<1x16x8xbf16>
    %153 = vector.extract_strided_slice %107 {offsets = [0, 0, 16], sizes = [1, 16, 8], strides = [1, 1, 1]} : vector<1x16x32xbf16> to vector<1x16x8xbf16>
    "tpu.trace_start"() <{level = 10 : i32, message = "bqd,bkd->bqk"}> : () -> ()
    %cst_50 = arith.constant dense<0.000000e+00> : vector<1x8x16xf32>
    %154 = tpu.matmul %151, %152, %cst_50 {dimension_numbers = #tpu.dot_dimension_numbers<[2], [2], [1], [1], [0, 0, 0, 1, 1, 1], [0], [0]>} : vector<1x8x8xbf16>, vector<1x16x8xbf16>, vector<1x8x16xf32> -> vector<1x8x16xf32>
    "tpu.trace_stop"() : () -> ()
    %cst_51 = arith.constant dense<0xFF800000> : vector<1x8xf32>
    %155 = vector.multi_reduction <maximumf>, %154, %cst_51 [2] : vector<1x8x16xf32> to vector<1x8xf32>
    %156 = vector.shape_cast %155 : vector<1x8xf32> to vector<1x8x1xf32>
    %157 = vector.broadcast %156 : vector<1x8x1xf32> to vector<1x8x16xf32>
    %158 = arith.subf %154, %157 : vector<1x8x16xf32>
    %159 = math.exp %158 : vector<1x8x16xf32>
    %cst_52 = arith.constant dense<0.000000e+00> : vector<1x8xf32>
    %160 = vector.multi_reduction <add>, %159, %cst_52 [2] : vector<1x8x16xf32> to vector<1x8xf32>
    %161 = vector.shape_cast %160 : vector<1x8xf32> to vector<1x8x1xf32>
    %162 = tpu.reciprocal %161 : vector<1x8x1xf32> -> vector<1x8x1xf32>
    %163 = vector.broadcast %162 : vector<1x8x1xf32> to vector<1x8x16xf32>
    %164 = arith.mulf %159, %163 : vector<1x8x16xf32>
    %165 = arith.truncf %164 : vector<1x8x16xf32> to vector<1x8x16xbf16>
    "tpu.trace_start"() <{level = 10 : i32, message = "bqk,bkd->bqd"}> : () -> ()
    %cst_53 = arith.constant dense<0.000000e+00> : vector<1x8x8xf32>
    %166 = tpu.matmul %165, %153, %cst_53 {dimension_numbers = #tpu.dot_dimension_numbers<[2], [1], [1], [2], [0, 0, 0, 1, 1, 2], [0], [0]>} : vector<1x8x16xbf16>, vector<1x16x8xbf16>, vector<1x8x8xf32> -> vector<1x8x8xf32>
    "tpu.trace_stop"() : () -> ()
    %167 = vector.shape_cast %166 : vector<1x8x8xf32> to vector<8x8xf32>
    %168 = arith.truncf %167 : vector<8x8xf32> to vector<8x8xbf16>
    %c16 = arith.constant 16 : index
    %c0_54 = arith.constant 0 : index
    %169 = vector.load %arg9[%c16, %c0_54] : memref<32x32xbf16, #tpu.memory_space<vmem>>, vector<8x32xbf16>
    %cst_55 = arith.constant dense<0.000000e+00> : vector<8x32xf32>
    %170 = tpu.matmul %168, %169, %cst_55 {dimension_numbers = #tpu.dot_dimension_numbers<[1], [0], [0], [1], [0, 0, 1, 1], [], []>} : vector<8x8xbf16>, vector<8x32xbf16>, vector<8x32xf32> -> vector<8x32xf32>
    %171 = arith.addf %150, %170 : vector<8x32xf32>
    %172 = vector.extract_strided_slice %103 {offsets = [0, 0, 24], sizes = [1, 8, 8], strides = [1, 1, 1]} : vector<1x8x32xbf16> to vector<1x8x8xbf16>
    %173 = vector.extract_strided_slice %105 {offsets = [0, 0, 24], sizes = [1, 16, 8], strides = [1, 1, 1]} : vector<1x16x32xbf16> to vector<1x16x8xbf16>
    %174 = vector.extract_strided_slice %107 {offsets = [0, 0, 24], sizes = [1, 16, 8], strides = [1, 1, 1]} : vector<1x16x32xbf16> to vector<1x16x8xbf16>
    "tpu.trace_start"() <{level = 10 : i32, message = "bqd,bkd->bqk"}> : () -> ()
    %cst_56 = arith.constant dense<0.000000e+00> : vector<1x8x16xf32>
    %175 = tpu.matmul %172, %173, %cst_56 {dimension_numbers = #tpu.dot_dimension_numbers<[2], [2], [1], [1], [0, 0, 0, 1, 1, 1], [0], [0]>} : vector<1x8x8xbf16>, vector<1x16x8xbf16>, vector<1x8x16xf32> -> vector<1x8x16xf32>
    "tpu.trace_stop"() : () -> ()
    %cst_57 = arith.constant dense<0xFF800000> : vector<1x8xf32>
    %176 = vector.multi_reduction <maximumf>, %175, %cst_57 [2] : vector<1x8x16xf32> to vector<1x8xf32>
    %177 = vector.shape_cast %176 : vector<1x8xf32> to vector<1x8x1xf32>
    %178 = vector.broadcast %177 : vector<1x8x1xf32> to vector<1x8x16xf32>
    %179 = arith.subf %175, %178 : vector<1x8x16xf32>
    %180 = math.exp %179 : vector<1x8x16xf32>
    %cst_58 = arith.constant dense<0.000000e+00> : vector<1x8xf32>
    %181 = vector.multi_reduction <add>, %180, %cst_58 [2] : vector<1x8x16xf32> to vector<1x8xf32>
    %182 = vector.shape_cast %181 : vector<1x8xf32> to vector<1x8x1xf32>
    %183 = tpu.reciprocal %182 : vector<1x8x1xf32> -> vector<1x8x1xf32>
    %184 = vector.broadcast %183 : vector<1x8x1xf32> to vector<1x8x16xf32>
    %185 = arith.mulf %180, %184 : vector<1x8x16xf32>
    %186 = arith.truncf %185 : vector<1x8x16xf32> to vector<1x8x16xbf16>
    "tpu.trace_start"() <{level = 10 : i32, message = "bqk,bkd->bqd"}> : () -> ()
    %cst_59 = arith.constant dense<0.000000e+00> : vector<1x8x8xf32>
    %187 = tpu.matmul %186, %174, %cst_59 {dimension_numbers = #tpu.dot_dimension_numbers<[2], [1], [1], [2], [0, 0, 0, 1, 1, 2], [0], [0]>} : vector<1x8x16xbf16>, vector<1x16x8xbf16>, vector<1x8x8xf32> -> vector<1x8x8xf32>
    "tpu.trace_stop"() : () -> ()
    %188 = vector.shape_cast %187 : vector<1x8x8xf32> to vector<8x8xf32>
    %189 = arith.truncf %188 : vector<8x8xf32> to vector<8x8xbf16>
    %c24 = arith.constant 24 : index
    %c0_60 = arith.constant 0 : index
    %190 = vector.load %arg9[%c24, %c0_60] : memref<32x32xbf16, #tpu.memory_space<vmem>>, vector<8x32xbf16>
    %cst_61 = arith.constant dense<0.000000e+00> : vector<8x32xf32>
    %191 = tpu.matmul %189, %190, %cst_61 {dimension_numbers = #tpu.dot_dimension_numbers<[1], [0], [0], [1], [0, 0, 1, 1], [], []>} : vector<8x8xbf16>, vector<8x32xbf16>, vector<8x32xf32> -> vector<8x32xf32>
    %192 = arith.addf %171, %191 : vector<8x32xf32>
    %193 = vector.broadcast %8 : vector<1x32xf32> to vector<8x32xf32>
    %194 = arith.addf %192, %193 : vector<8x32xf32>
    %195 = vector.shape_cast %194 : vector<8x32xf32> to vector<1x8x32xf32>
    %c0_62 = arith.constant 0 : index
    %c0_63 = arith.constant 0 : index
    %c0_64 = arith.constant 0 : index
    %196 = vector.load %arg10[%c0_62, %c0_63, %c0_64] : memref<1x8x32xf32, #tpu.memory_space<vmem>>, vector<1x8x32xf32>
    tpu.vector_store %arg10[%c0_62, %c0_63, %c0_64], %195 {strides = array<i32>} : memref<1x8x32xf32, #tpu.memory_space<vmem>>, vector<1x8x32xf32>,
    return
  }
  func.func @transform_0(%arg0: i32, %arg1: i32) -> (i32, i32, i32) {
    %c0_i32 = arith.constant 0 : i32
    %c0_i32_0 = arith.constant 0 : i32
    return %arg0, %arg1, %c0_i32 : i32, i32, i32
  }
  func.func @transform_1(%arg0: i32, %arg1: i32) -> (i32, i32, i32) {
    %c0_i32 = arith.constant 0 : i32
    %c0_i32_0 = arith.constant 0 : i32
    %c0_i32_1 = arith.constant 0 : i32
    return %arg0, %c0_i32, %c0_i32_0 : i32, i32, i32
  }
  func.func @transform_2(%arg0: i32, %arg1: i32) -> (i32, i32, i32) {
    %c0_i32 = arith.constant 0 : i32
    %c0_i32_0 = arith.constant 0 : i32
    %c0_i32_1 = arith.constant 0 : i32
    return %arg0, %c0_i32, %c0_i32_0 : i32, i32, i32
  }
  func.func @transform_3(%arg0: i32, %arg1: i32) -> (i32, i32) {
    %c0_i32 = arith.constant 0 : i32
    %c0_i32_0 = arith.constant 0 : i32
    %c0_i32_1 = arith.constant 0 : i32
    return %c0_i32, %c0_i32_0 : i32, i32
  }
  func.func @transform_4(%arg0: i32, %arg1: i32) -> (i32, i32) {
    %c0_i32 = arith.constant 0 : i32
    %c0_i32_0 = arith.constant 0 : i32
    %c0_i32_1 = arith.constant 0 : i32
    return %c0_i32, %c0_i32_0 : i32, i32
  }
  func.func @transform_5(%arg0: i32, %arg1: i32) -> (i32, i32) {
    %c0_i32 = arith.constant 0 : i32
    %c0_i32_0 = arith.constant 0 : i32
    %c0_i32_1 = arith.constant 0 : i32
    return %c0_i32, %c0_i32_0 : i32, i32
  }
  func.func @transform_6(%arg0: i32, %arg1: i32) -> (i32, i32) {
    %c0_i32 = arith.constant 0 : i32
    %c0_i32_0 = arith.constant 0 : i32
    %c0_i32_1 = arith.constant 0 : i32
    return %c0_i32, %c0_i32_0 : i32, i32
  }
  func.func @transform_7(%arg0: i32, %arg1: i32) -> (i32, i32) {
    %c0_i32 = arith.constant 0 : i32
    %c0_i32_0 = arith.constant 0 : i32
    %c0_i32_1 = arith.constant 0 : i32
    return %c0_i32, %c0_i32_0 : i32, i32
  }
  func.func @transform_8(%arg0: i32, %arg1: i32) -> (i32, i32, i32) {
    %c0_i32 = arith.constant 0 : i32
    %c0_i32_0 = arith.constant 0 : i32
    return %arg0, %arg1, %c0_i32 : i32, i32, i32
  }
}

module attributes {stable_mosaic.version = 11 : i64} {
  func.func @_cross_attn_kernel(%arg0: i32, %arg1: i32, %arg2: memref<1x8x32xf32, #tpu.memory_space<vmem>>, %arg3: memref<1x16x32xf32, #tpu.memory_space<vmem>>, %arg4: memref<1x16x32xf32, #tpu.memory_space<vmem>>, %arg5: memref<8x32xf32, #tpu.memory_space<vmem>>, %arg6: memref<32x32xbf16, #tpu.memory_space<vmem>>, %arg7: memref<32x32xbf16, #tpu.memory_space<vmem>>, %arg8: memref<32x32xbf16, #tpu.memory_space<vmem>>, %arg9: memref<32x32xbf16, #tpu.memory_space<vmem>>, %arg10: memref<1x8x32xf32, #tpu.memory_space<vmem>>) attributes {dimension_semantics = [#tpu.dimension_semantics<parallel>, #tpu.dimension_semantics<parallel>], iteration_bounds = array<i64: 2, 1>, scalar_prefetch = 0 : i64, scratch_operands = 0 : i64, tpu.core_type = #tpu.core_type<tc>, window_params = [{transform_indices = @transform_0, window_bounds = array<i64: 1, 8, 32>}, {transform_indices = @transform_1, window_bounds = array<i64: 1, 16, 32>}, {transform_indices = @transform_2, window_bounds = array<i64: 1, 16, 32>}, {pipeline_mode = #tpu.pipeline_mode<synchronous>, transform_indices = @transform_3, window_bounds = array<i64: 8, 32>}, {pipeline_mode = #tpu.pipeline_mode<synchronous>, transform_indices = @transform_4, window_bounds = array<i64: 32, 32>}, {pipeline_mode = #tpu.pipeline_mode<synchronous>, transform_indices = @transform_5, window_bounds = array<i64: 32, 32>}, {pipeline_mode = #tpu.pipeline_mode<synchronous>, transform_indices = @transform_6, window_bounds = array<i64: 32, 32>}, {pipeline_mode = #tpu.pipeline_mode<synchronous>, transform_indices = @transform_7, window_bounds = array<i64: 32, 32>}, {transform_indices = @transform_8, window_bounds = array<i64: 1, 8, 32>}]} {
    %c0 = arith.constant 0 : index
    %c0_0 = arith.constant 0 : index
    %0 = vector.load %arg5[%c0, %c0_0] : memref<8x32xf32, #tpu.memory_space<vmem>>, vector<8x32xf32>
    %1 = vector.extract_strided_slice %0 {offsets = [0, 0], sizes = [1, 32], strides = [1, 1]} : vector<8x32xf32> to vector<1x32xf32>
    %2 = vector.extract_strided_slice %0 {offsets = [1, 0], sizes = [1, 32], strides = [1, 1]} : vector<8x32xf32> to vector<1x32xf32>
    %3 = vector.extract_strided_slice %0 {offsets = [2, 0], sizes = [1, 32], strides = [1, 1]} : vector<8x32xf32> to vector<1x32xf32>
    %4 = vector.extract_strided_slice %0 {offsets = [3, 0], sizes = [1, 32], strides = [1, 1]} : vector<8x32xf32> to vector<1x32xf32>
    %5 = vector.extract_strided_slice %0 {offsets = [4, 0], sizes = [1, 32], strides = [1, 1]} : vector<8x32xf32> to vector<1x32xf32>
    %6 = vector.extract_strided_slice %0 {offsets = [5, 0], sizes = [1, 32], strides = [1, 1]} : vector<8x32xf32> to vector<1x32xf32>
    %7 = vector.extract_strided_slice %0 {offsets = [6, 0], sizes = [1, 32], strides = [1, 1]} : vector<8x32xf32> to vector<1x32xf32>
    %8 = vector.extract_strided_slice %0 {offsets = [7, 0], sizes = [1, 32], strides = [1, 1]} : vector<8x32xf32> to vector<1x32xf32>
    %c0_1 = arith.constant 0 : index
    %c0_2 = arith.constant 0 : index
    %c0_3 = arith.constant 0 : index
    %9 = vector.load %arg2[%c0_1, %c0_2, %c0_3] : memref<1x8x32xf32, #tpu.memory_space<vmem>>, vector<1x8x32xf32>
    %10 = vector.shape_cast %9 : vector<1x8x32xf32> to vector<8x32xf32>
    %cst = arith.constant dense<0.000000e+00> : vector<8xf32>
    %11 = vector.multi_reduction <add>, %10, %cst [1] : vector<8x32xf32> to vector<8xf32>
    %12 = vector.shape_cast %11 : vector<8xf32> to vector<8x1xf32>
    %cst_4 = arith.constant 3.200000e+01 : f32
    %13 = vector.broadcast %cst_4 : f32 to vector<8x1xf32>
    %14 = arith.divf %12, %13 : vector<8x1xf32>
    %15 = arith.mulf %10, %10 : vector<8x32xf32>
    %cst_5 = arith.constant dense<0.000000e+00> : vector<8xf32>
    %16 = vector.multi_reduction <add>, %15, %cst_5 [1] : vector<8x32xf32> to vector<8xf32>
    %17 = vector.shape_cast %16 : vector<8xf32> to vector<8x1xf32>
    %cst_6 = arith.constant 3.200000e+01 : f32
    %18 = vector.broadcast %cst_6 : f32 to vector<8x1xf32>
    %19 = arith.divf %17, %18 : vector<8x1xf32>
    %20 = arith.mulf %14, %14 : vector<8x1xf32>
    %21 = arith.subf %19, %20 : vector<8x1xf32>
    %cst_7 = arith.constant 0.000000e+00 : f32
    %22 = vector.broadcast %cst_7 : f32 to vector<8x1xf32>
    %23 = arith.maximumf %21, %22 : vector<8x1xf32>
    %24 = vector.broadcast %14 : vector<8x1xf32> to vector<8x32xf32>
    %25 = arith.subf %10, %24 : vector<8x32xf32>
    %cst_8 = arith.constant 9.99999974E-6 : f32
    %26 = vector.broadcast %cst_8 : f32 to vector<8x1xf32>
    %27 = arith.addf %23, %26 : vector<8x1xf32>
    %28 = math.rsqrt %27 : vector<8x1xf32>
    %29 = vector.broadcast %28 : vector<8x1xf32> to vector<8x32xf32>
    %30 = arith.mulf %25, %29 : vector<8x32xf32>
    %31 = vector.broadcast %1 : vector<1x32xf32> to vector<8x32xf32>
    %32 = arith.mulf %30, %31 : vector<8x32xf32>
    %33 = vector.broadcast %2 : vector<1x32xf32> to vector<8x32xf32>
    %34 = arith.addf %32, %33 : vector<8x32xf32>
    %35 = arith.truncf %34 : vector<8x32xf32> to vector<8x32xbf16>
    %c0_9 = arith.constant 0 : index
    %c0_10 = arith.constant 0 : index
    %36 = vector.load %arg6[%c0_9, %c0_10] : memref<32x32xbf16, #tpu.memory_space<vmem>>, vector<32x32xbf16>
    %cst_11 = arith.constant dense<0.000000e+00> : vector<8x32xf32>
    %37 = tpu.matmul %35, %36, %cst_11 {dimension_numbers = #tpu.dot_dimension_numbers<[1], [0], [0], [1], [0, 0, 1, 1], [], []>} : vector<8x32xbf16>, vector<32x32xbf16>, vector<8x32xf32> -> vector<8x32xf32>
    %38 = vector.broadcast %5 : vector<1x32xf32> to vector<8x32xf32>
    %39 = arith.addf %37, %38 : vector<8x32xf32>
    %c0_12 = arith.constant 0 : index
    %c0_13 = arith.constant 0 : index
    %c0_14 = arith.constant 0 : index
    %40 = vector.load %arg3[%c0_12, %c0_13, %c0_14] : memref<1x16x32xf32, #tpu.memory_space<vmem>>, vector<1x16x32xf32>
    %41 = vector.shape_cast %40 : vector<1x16x32xf32> to vector<16x32xf32>
    %cst_15 = arith.constant dense<0.000000e+00> : vector<16xf32>
    %42 = vector.multi_reduction <add>, %41, %cst_15 [1] : vector<16x32xf32> to vector<16xf32>
    %43 = vector.shape_cast %42 : vector<16xf32> to vector<16x1xf32>
    %cst_16 = arith.constant 3.200000e+01 : f32
    %44 = vector.broadcast %cst_16 : f32 to vector<16x1xf32>
    %45 = arith.divf %43, %44 : vector<16x1xf32>
    %46 = arith.mulf %41, %41 : vector<16x32xf32>
    %cst_17 = arith.constant dense<0.000000e+00> : vector<16xf32>
    %47 = vector.multi_reduction <add>, %46, %cst_17 [1] : vector<16x32xf32> to vector<16xf32>
    %48 = vector.shape_cast %47 : vector<16xf32> to vector<16x1xf32>
    %cst_18 = arith.constant 3.200000e+01 : f32
    %49 = vector.broadcast %cst_18 : f32 to vector<16x1xf32>
    %50 = arith.divf %48, %49 : vector<16x1xf32>
    %51 = arith.mulf %45, %45 : vector<16x1xf32>
    %52 = arith.subf %50, %51 : vector<16x1xf32>
    %cst_19 = arith.constant 0.000000e+00 : f32
    %53 = vector.broadcast %cst_19 : f32 to vector<16x1xf32>
    %54 = arith.maximumf %52, %53 : vector<16x1xf32>
    %55 = vector.broadcast %45 : vector<16x1xf32> to vector<16x32xf32>
    %56 = arith.subf %41, %55 : vector<16x32xf32>
    %cst_20 = arith.constant 9.99999974E-6 : f32
    %57 = vector.broadcast %cst_20 : f32 to vector<16x1xf32>
    %58 = arith.addf %54, %57 : vector<16x1xf32>
    %59 = math.rsqrt %58 : vector<16x1xf32>
    %60 = vector.broadcast %59 : vector<16x1xf32> to vector<16x32xf32>
    %61 = arith.mulf %56, %60 : vector<16x32xf32>
    %62 = vector.broadcast %3 : vector<1x32xf32> to vector<16x32xf32>
    %63 = arith.mulf %61, %62 : vector<16x32xf32>
    %64 = vector.broadcast %4 : vector<1x32xf32> to vector<16x32xf32>
    %65 = arith.addf %63, %64 : vector<16x32xf32>
    %66 = arith.truncf %65 : vector<16x32xf32> to vector<16x32xbf16>
    %c0_21 = arith.constant 0 : index
    %c0_22 = arith.constant 0 : index
    %67 = vector.load %arg7[%c0_21, %c0_22] : memref<32x32xbf16, #tpu.memory_space<vmem>>, vector<32x32xbf16>
    %cst_23 = arith.constant dense<0.000000e+00> : vector<16x32xf32>
    %68 = tpu.matmul %66, %67, %cst_23 {dimension_numbers = #tpu.dot_dimension_numbers<[1], [0], [0], [1], [0, 0, 1, 1], [], []>} : vector<16x32xbf16>, vector<32x32xbf16>, vector<16x32xf32> -> vector<16x32xf32>
    %69 = vector.broadcast %6 : vector<1x32xf32> to vector<16x32xf32>
    %70 = arith.addf %68, %69 : vector<16x32xf32>
    %c0_24 = arith.constant 0 : index
    %c0_25 = arith.constant 0 : index
    %c0_26 = arith.constant 0 : index
    %71 = vector.load %arg4[%c0_24, %c0_25, %c0_26] : memref<1x16x32xf32, #tpu.memory_space<vmem>>, vector<1x16x32xf32>
    %72 = vector.shape_cast %71 : vector<1x16x32xf32> to vector<16x32xf32>
    %cst_27 = arith.constant dense<0.000000e+00> : vector<16xf32>
    %73 = vector.multi_reduction <add>, %72, %cst_27 [1] : vector<16x32xf32> to vector<16xf32>
    %74 = vector.shape_cast %73 : vector<16xf32> to vector<16x1xf32>
    %cst_28 = arith.constant 3.200000e+01 : f32
    %75 = vector.broadcast %cst_28 : f32 to vector<16x1xf32>
    %76 = arith.divf %74, %75 : vector<16x1xf32>
    %77 = arith.mulf %72, %72 : vector<16x32xf32>
    %cst_29 = arith.constant dense<0.000000e+00> : vector<16xf32>
    %78 = vector.multi_reduction <add>, %77, %cst_29 [1] : vector<16x32xf32> to vector<16xf32>
    %79 = vector.shape_cast %78 : vector<16xf32> to vector<16x1xf32>
    %cst_30 = arith.constant 3.200000e+01 : f32
    %80 = vector.broadcast %cst_30 : f32 to vector<16x1xf32>
    %81 = arith.divf %79, %80 : vector<16x1xf32>
    %82 = arith.mulf %76, %76 : vector<16x1xf32>
    %83 = arith.subf %81, %82 : vector<16x1xf32>
    %cst_31 = arith.constant 0.000000e+00 : f32
    %84 = vector.broadcast %cst_31 : f32 to vector<16x1xf32>
    %85 = arith.maximumf %83, %84 : vector<16x1xf32>
    %86 = vector.broadcast %76 : vector<16x1xf32> to vector<16x32xf32>
    %87 = arith.subf %72, %86 : vector<16x32xf32>
    %cst_32 = arith.constant 9.99999974E-6 : f32
    %88 = vector.broadcast %cst_32 : f32 to vector<16x1xf32>
    %89 = arith.addf %85, %88 : vector<16x1xf32>
    %90 = math.rsqrt %89 : vector<16x1xf32>
    %91 = vector.broadcast %90 : vector<16x1xf32> to vector<16x32xf32>
    %92 = arith.mulf %87, %91 : vector<16x32xf32>
    %93 = vector.broadcast %3 : vector<1x32xf32> to vector<16x32xf32>
    %94 = arith.mulf %92, %93 : vector<16x32xf32>
    %95 = vector.broadcast %4 : vector<1x32xf32> to vector<16x32xf32>
    %96 = arith.addf %94, %95 : vector<16x32xf32>
    %97 = arith.truncf %96 : vector<16x32xf32> to vector<16x32xbf16>
    %c0_33 = arith.constant 0 : index
    %c0_34 = arith.constant 0 : index
    %98 = vector.load %arg8[%c0_33, %c0_34] : memref<32x32xbf16, #tpu.memory_space<vmem>>, vector<32x32xbf16>
    %cst_35 = arith.constant dense<0.000000e+00> : vector<16x32xf32>
    %99 = tpu.matmul %97, %98, %cst_35 {dimension_numbers = #tpu.dot_dimension_numbers<[1], [0], [0], [1], [0, 0, 1, 1], [], []>} : vector<16x32xbf16>, vector<32x32xbf16>, vector<16x32xf32> -> vector<16x32xf32>
    %100 = vector.broadcast %7 : vector<1x32xf32> to vector<16x32xf32>
    %101 = arith.addf %99, %100 : vector<16x32xf32>
    %102 = vector.shape_cast %39 : vector<8x32xf32> to vector<1x8x32xf32>
    %103 = arith.truncf %102 : vector<1x8x32xf32> to vector<1x8x32xbf16>
    %104 = vector.shape_cast %70 : vector<16x32xf32> to vector<1x16x32xf32>
    %105 = arith.truncf %104 : vector<1x16x32xf32> to vector<1x16x32xbf16>
    %106 = vector.shape_cast %101 : vector<16x32xf32> to vector<1x16x32xf32>
    %107 = arith.truncf %106 : vector<1x16x32xf32> to vector<1x16x32xbf16>
    %cst_36 = arith.constant 0.000000e+00 : f32
    %108 = vector.broadcast %cst_36 : f32 to vector<8x32xf32>
    %109 = vector.extract_strided_slice %103 {offsets = [0, 0, 0], sizes = [1, 8, 8], strides = [1, 1, 1]} : vector<1x8x32xbf16> to vector<1x8x8xbf16>
    %110 = vector.extract_strided_slice %105 {offsets = [0, 0, 0], sizes = [1, 16, 8], strides = [1, 1, 1]} : vector<1x16x32xbf16> to vector<1x16x8xbf16>
    %111 = vector.extract_strided_slice %107 {offsets = [0, 0, 0], sizes = [1, 16, 8], strides = [1, 1, 1]} : vector<1x16x32xbf16> to vector<1x16x8xbf16>
    "tpu.trace_start"() <{level = 10 : i32, message = "bqd,bkd->bqk"}> : () -> ()
    %cst_37 = arith.constant dense<0.000000e+00> : vector<1x8x16xf32>
    %112 = tpu.matmul %109, %110, %cst_37 {dimension_numbers = #tpu.dot_dimension_numbers<[2], [2], [1], [1], [0, 0, 0, 1, 1, 1], [0], [0]>} : vector<1x8x8xbf16>, vector<1x16x8xbf16>, vector<1x8x16xf32> -> vector<1x8x16xf32>
    "tpu.trace_stop"() : () -> ()
    %cst_38 = arith.constant dense<0xFF800000> : vector<1x8xf32>
    %113 = vector.multi_reduction <maximumf>, %112, %cst_38 [2] : vector<1x8x16xf32> to vector<1x8xf32>
    %114 = vector.shape_cast %113 : vector<1x8xf32> to vector<1x8x1xf32>
    %115 = vector.broadcast %114 : vector<1x8x1xf32> to vector<1x8x16xf32>
    %116 = arith.subf %112, %115 : vector<1x8x16xf32>
    %117 = math.exp %116 : vector<1x8x16xf32>
    %cst_39 = arith.constant dense<0.000000e+00> : vector<1x8xf32>
    %118 = vector.multi_reduction <add>, %117, %cst_39 [2] : vector<1x8x16xf32> to vector<1x8xf32>
    %119 = vector.shape_cast %118 : vector<1x8xf32> to vector<1x8x1xf32>
    %120 = tpu.reciprocal %119 : vector<1x8x1xf32> -> vector<1x8x1xf32>
    %121 = vector.broadcast %120 : vector<1x8x1xf32> to vector<1x8x16xf32>
    %122 = arith.mulf %117, %121 : vector<1x8x16xf32>
    %123 = arith.truncf %122 : vector<1x8x16xf32> to vector<1x8x16xbf16>
    "tpu.trace_start"() <{level = 10 : i32, message = "bqk,bkd->bqd"}> : () -> ()
    %cst_40 = arith.constant dense<0.000000e+00> : vector<1x8x8xf32>
    %124 = tpu.matmul %123, %111, %cst_40 {dimension_numbers = #tpu.dot_dimension_numbers<[2], [1], [1], [2], [0, 0, 0, 1, 1, 2], [0], [0]>} : vector<1x8x16xbf16>, vector<1x16x8xbf16>, vector<1x8x8xf32> -> vector<1x8x8xf32>
    "tpu.trace_stop"() : () -> ()
    %125 = vector.shape_cast %124 : vector<1x8x8xf32> to vector<8x8xf32>
    %126 = arith.truncf %125 : vector<8x8xf32> to vector<8x8xbf16>
    %c0_41 = arith.constant 0 : index
    %c0_42 = arith.constant 0 : index
    %127 = vector.load %arg9[%c0_41, %c0_42] : memref<32x32xbf16, #tpu.memory_space<vmem>>, vector<8x32xbf16>
    %cst_43 = arith.constant dense<0.000000e+00> : vector<8x32xf32>
    %128 = tpu.matmul %126, %127, %cst_43 {dimension_numbers = #tpu.dot_dimension_numbers<[1], [0], [0], [1], [0, 0, 1, 1], [], []>} : vector<8x8xbf16>, vector<8x32xbf16>, vector<8x32xf32> -> vector<8x32xf32>
    %129 = arith.addf %108, %128 : vector<8x32xf32>
    %130 = vector.extract_strided_slice %103 {offsets = [0, 0, 8], sizes = [1, 8, 8], strides = [1, 1, 1]} : vector<1x8x32xbf16> to vector<1x8x8xbf16>
    %131 = vector.extract_strided_slice %105 {offsets = [0, 0, 8], sizes = [1, 16, 8], strides = [1, 1, 1]} : vector<1x16x32xbf16> to vector<1x16x8xbf16>
    %132 = vector.extract_strided_slice %107 {offsets = [0, 0, 8], sizes = [1, 16, 8], strides = [1, 1, 1]} : vector<1x16x32xbf16> to vector<1x16x8xbf16>
    "tpu.trace_start"() <{level = 10 : i32, message = "bqd,bkd->bqk"}> : () -> ()
    %cst_44 = arith.constant dense<0.000000e+00> : vector<1x8x16xf32>
    %133 = tpu.matmul %130, %131, %cst_44 {dimension_numbers = #tpu.dot_dimension_numbers<[2], [2], [1], [1], [0, 0, 0, 1, 1, 1], [0], [0]>} : vector<1x8x8xbf16>, vector<1x16x8xbf16>, vector<1x8x16xf32> -> vector<1x8x16xf32>
    "tpu.trace_stop"() : () -> ()
    %cst_45 = arith.constant dense<0xFF800000> : vector<1x8xf32>
    %134 = vector.multi_reduction <maximumf>, %133, %cst_45 [2] : vector<1x8x16xf32> to vector<1x8xf32>
    %135 = vector.shape_cast %134 : vector<1x8xf32> to vector<1x8x1xf32>
    %136 = vector.broadcast %135 : vector<1x8x1xf32> to vector<1x8x16xf32>
    %137 = arith.subf %133, %136 : vector<1x8x16xf32>
    %138 = math.exp %137 : vector<1x8x16xf32>
    %cst_46 = arith.constant dense<0.000000e+00> : vector<1x8xf32>
    %139 = vector.multi_reduction <add>, %138, %cst_46 [2] : vector<1x8x16xf32> to vector<1x8xf32>
    %140 = vector.shape_cast %139 : vector<1x8xf32> to vector<1x8x1xf32>
    %141 = tpu.reciprocal %140 : vector<1x8x1xf32> -> vector<1x8x1xf32>
    %142 = vector.broadcast %141 : vector<1x8x1xf32> to vector<1x8x16xf32>
    %143 = arith.mulf %138, %142 : vector<1x8x16xf32>
    %144 = arith.truncf %143 : vector<1x8x16xf32> to vector<1x8x16xbf16>
    "tpu.trace_start"() <{level = 10 : i32, message = "bqk,bkd->bqd"}> : () -> ()
    %cst_47 = arith.constant dense<0.000000e+00> : vector<1x8x8xf32>
    %145 = tpu.matmul %144, %132, %cst_47 {dimension_numbers = #tpu.dot_dimension_numbers<[2], [1], [1], [2], [0, 0, 0, 1, 1, 2], [0], [0]>} : vector<1x8x16xbf16>, vector<1x16x8xbf16>, vector<1x8x8xf32> -> vector<1x8x8xf32>
    "tpu.trace_stop"() : () -> ()
    %146 = vector.shape_cast %145 : vector<1x8x8xf32> to vector<8x8xf32>
    %147 = arith.truncf %146 : vector<8x8xf32> to vector<8x8xbf16>
    %c8 = arith.constant 8 : index
    %c0_48 = arith.constant 0 : index
    %148 = vector.load %arg9[%c8, %c0_48] : memref<32x32xbf16, #tpu.memory_space<vmem>>, vector<8x32xbf16>
    %cst_49 = arith.constant dense<0.000000e+00> : vector<8x32xf32>
    %149 = tpu.matmul %147, %148, %cst_49 {dimension_numbers = #tpu.dot_dimension_numbers<[1], [0], [0], [1], [0, 0, 1, 1], [], []>} : vector<8x8xbf16>, vector<8x32xbf16>, vector<8x32xf32> -> vector<8x32xf32>
    %150 = arith.addf %129, %149 : vector<8x32xf32>
    %151 = vector.extract_strided_slice %103 {offsets = [0, 0, 16], sizes = [1, 8, 8], strides = [1, 1, 1]} : vector<1x8x32xbf16> to vector<1x8x8xbf16>
    %152 = vector.extract_strided_slice %105 {offsets = [0, 0, 16], sizes = [1, 16, 8], strides = [1, 1, 1]} : vector<1x16x32xbf16> to vector<1x16x8xbf16>
    %153 = vector.extract_strided_slice %107 {offsets = [0, 0, 16], sizes = [1, 16, 8], strides = [1, 1, 1]} : vector<1x16x32xbf16> to vector<1x16x8xbf16>
    "tpu.trace_start"() <{level = 10 : i32, message = "bqd,bkd->bqk"}> : () -> ()
    %cst_50 = arith.constant dense<0.000000e+00> : vector<1x8x16xf32>
    %154 = tpu.matmul %151, %152, %cst_50 {dimension_numbers = #tpu.dot_dimension_numbers<[2], [2], [1], [1], [0, 0, 0, 1, 1, 1], [0], [0]>} : vector<1x8x8xbf16>, vector<1x16x8xbf16>, vector<1x8x16xf32> -> vector<1x8x16xf32>
    "tpu.trace_stop"() : () -> ()
    %cst_51 = arith.constant dense<0xFF800000> : vector<1x8xf32>
    %155 = vector.multi_reduction <maximumf>, %154, %cst_51 [2] : vector<1x8x16xf32> to vector<1x8xf32>
    %156 = vector.shape_cast %155 : vector<1x8xf32> to vector<1x8x1xf32>
    %157 = vector.broadcast %156 : vector<1x8x1xf32> to vector<1x8x16xf32>
    %158 = arith.subf %154, %157 : vector<1x8x16xf32>
    %159 = math.exp %158 : vector<1x8x16xf32>
    %cst_52 = arith.constant dense<0.000000e+00> : vector<1x8xf32>
    %160 = vector.multi_reduction <add>, %159, %cst_52 [2] : vector<1x8x16xf32> to vector<1x8xf32>
    %161 = vector.shape_cast %160 : vector<1x8xf32> to vector<1x8x1xf32>
    %162 = tpu.reciprocal %161 : vector<1x8x1xf32> -> vector<1x8x1xf32>
    %163 = vector.broadcast %162 : vector<1x8x1xf32> to vector<1x8x16xf32>
    %164 = arith.mulf %159, %163 : vector<1x8x16xf32>
    %165 = arith.truncf %164 : vector<1x8x16xf32> to vector<1x8x16xbf16>
    "tpu.trace_start"() <{level = 10 : i32, message = "bqk,bkd->bqd"}> : () -> ()
    %cst_53 = arith.constant dense<0.000000e+00> : vector<1x8x8xf32>
    %166 = tpu.matmul %165, %153, %cst_53 {dimension_numbers = #tpu.dot_dimension_numbers<[2], [1], [1], [2], [0, 0, 0, 1, 1, 2], [0], [0]>} : vector<1x8x16xbf16>, vector<1x16x8xbf16>, vector<1x8x8xf32> -> vector<1x8x8xf32>
    "tpu.trace_stop"() : () -> ()
    %167 = vector.shape_cast %166 : vector<1x8x8xf32> to vector<8x8xf32>
    %168 = arith.truncf %167 : vector<8x8xf32> to vector<8x8xbf16>
    %c16 = arith.constant 16 : index
    %c0_54 = arith.constant 0 : index
    %169 = vector.load %arg9[%c16, %c0_54] : memref<32x32xbf16, #tpu.memory_space<vmem>>, vector<8x32xbf16>
    %cst_55 = arith.constant dense<0.000000e+00> : vector<8x32xf32>
    %170 = tpu.matmul %168, %169, %cst_55 {dimension_numbers = #tpu.dot_dimension_numbers<[1], [0], [0], [1], [0, 0, 1, 1], [], []>} : vector<8x8xbf16>, vector<8x32xbf16>, vector<8x32xf32> -> vector<8x32xf32>
    %171 = arith.addf %150, %170 : vector<8x32xf32>
    %172 = vector.extract_strided_slice %103 {offsets = [0, 0, 24], sizes = [1, 8, 8], strides = [1, 1, 1]} : vector<1x8x32xbf16> to vector<1x8x8xbf16>
    %173 = vector.extract_strided_slice %105 {offsets = [0, 0, 24], sizes = [1, 16, 8], strides = [1, 1, 1]} : vector<1x16x32xbf16> to vector<1x16x8xbf16>
    %174 = vector.extract_strided_slice %107 {offsets = [0, 0, 24], sizes = [1, 16, 8], strides = [1, 1, 1]} : vector<1x16x32xbf16> to vector<1x16x8xbf16>
    "tpu.trace_start"() <{level = 10 : i32, message = "bqd,bkd->bqk"}> : () -> ()
    %cst_56 = arith.constant dense<0.000000e+00> : vector<1x8x16xf32>
    %175 = tpu.matmul %172, %173, %cst_56 {dimension_numbers = #tpu.dot_dimension_numbers<[2], [2], [1], [1], [0, 0, 0, 1, 1, 1], [0], [0]>} : vector<1x8x8xbf16>, vector<1x16x8xbf16>, vector<1x8x16xf32> -> vector<1x8x16xf32>
    "tpu.trace_stop"() : () -> ()
    %cst_57 = arith.constant dense<0xFF800000> : vector<1x8xf32>
    %176 = vector.multi_reduction <maximumf>, %175, %cst_57 [2] : vector<1x8x16xf32> to vector<1x8xf32>
    %177 = vector.shape_cast %176 : vector<1x8xf32> to vector<1x8x1xf32>
    %178 = vector.broadcast %177 : vector<1x8x1xf32> to vector<1x8x16xf32>
    %179 = arith.subf %175, %178 : vector<1x8x16xf32>
    %180 = math.exp %179 : vector<1x8x16xf32>
    %cst_58 = arith.constant dense<0.000000e+00> : vector<1x8xf32>
    %181 = vector.multi_reduction <add>, %180, %cst_58 [2] : vector<1x8x16xf32> to vector<1x8xf32>
    %182 = vector.shape_cast %181 : vector<1x8xf32> to vector<1x8x1xf32>
    %183 = tpu.reciprocal %182 : vector<1x8x1xf32> -> vector<1x8x1xf32>
    %184 = vector.broadcast %183 : vector<1x8x1xf32> to vector<1x8x16xf32>
    %185 = arith.mulf %180, %184 : vector<1x8x16xf32>
    %186 = arith.truncf %185 : vector<1x8x16xf32> to vector<1x8x16xbf16>
    "tpu.trace_start"() <{level = 10 : i32, message = "bqk,bkd->bqd"}> : () -> ()
    %cst_59 = arith.constant dense<0.000000e+00> : vector<1x8x8xf32>
    %187 = tpu.matmul %186, %174, %cst_59 {dimension_numbers = #tpu.dot_dimension_numbers<[2], [1], [1], [2], [0, 0, 0, 1, 1, 2], [0], [0]>} : vector<1x8x16xbf16>, vector<1x16x8xbf16>, vector<1x8x8xf32> -> vector<1x8x8xf32>
    "tpu.trace_stop"() : () -> ()
    %188 = vector.shape_cast %187 : vector<1x8x8xf32> to vector<8x8xf32>
    %189 = arith.truncf %188 : vector<8x8xf32> to vector<8x8xbf16>
    %c24 = arith.constant 24 : index
    %c0_60 = arith.constant 0 : index
    %190 = vector.load %arg9[%c24, %c0_60] : memref<32x32xbf16, #tpu.memory_space<vmem>>, vector<8x32xbf16>
    %cst_61 = arith.constant dense<0.000000e+00> : vector<8x32xf32>
    %191 = tpu.matmul %189, %190, %cst_61 {dimension_numbers = #tpu.dot_dimension_numbers<[1], [0], [0], [1], [0, 0, 1, 1], [], []>} : vector<8x8xbf16>, vector<8x32xbf16>, vector<8x32xf32> -> vector<8x32xf32>
    %192 = arith.addf %171, %191 : vector<8x32xf32>
    %193 = vector.broadcast %8 : vector<1x32xf32> to vector<8x32xf32>
    %194 = arith.addf %192, %193 : vector<8x32xf32>
    %195 = vector.shape_cast %194 : vector<8x32xf32> to vector<1x8x32xf32>
    %c0_62 = arith.constant 0 : index
    %c0_63 = arith.constant 0 : index
    %c0_64 = arith.constant 0 : index
    %196 = vector.load %arg10[%c0_62, %c0_63, %c0_64] : memref<1x8x32xf32, #tpu.memory_space<vmem>>, vector<1x8x32xf32>
    tpu.vector_store %arg10[%c0_62, %c0_63, %c0_64], %195 {strides = array<i32>} : memref<1x8x32xf32, #tpu.memory_space<vmem>>, vector<1x8x32xf32>,
    return
  }
  func.func @transform_0(%arg0: i32, %arg1: i32) -> (i32, i32, i32) {
    %c0_i32 = arith.constant 0 : i32
    %c0_i32_0 = arith.constant 0 : i32
    return %arg0, %arg1, %c0_i32 : i32, i32, i32
  }
  func.func @transform_1(%arg0: i32, %arg1: i32) -> (i32, i32, i32) {
    %c0_i32 = arith.constant 0 : i32
    %c0_i32_0 = arith.constant 0 : i32
    %c0_i32_1 = arith.constant 0 : i32
    return %arg0, %c0_i32, %c0_i32_0 : i32, i32, i32
  }
  func.func @transform_2(%arg0: i32, %arg1: i32) -> (i32, i32, i32) {
    %c0_i32 = arith.constant 0 : i32
    %c0_i32_0 = arith.constant 0 : i32
    %c0_i32_1 = arith.constant 0 : i32
    return %arg0, %c0_i32, %c0_i32_0 : i32, i32, i32
  }
  func.func @transform_3(%arg0: i32, %arg1: i32) -> (i32, i32) {
    %c0_i32 = arith.constant 0 : i32
    %c0_i32_0 = arith.constant 0 : i32
    %c0_i32_1 = arith.constant 0 : i32
    return %c0_i32, %c0_i32_0 : i32, i32
  }
  func.func @transform_4(%arg0: i32, %arg1: i32) -> (i32, i32) {
    %c0_i32 = arith.constant 0 : i32
    %c0_i32_0 = arith.constant 0 : i32
    %c0_i32_1 = arith.constant 0 : i32
    return %c0_i32, %c0_i32_0 : i32, i32
  }
  func.func @transform_5(%arg0: i32, %arg1: i32) -> (i32, i32) {
    %c0_i32 = arith.constant 0 : i32
    %c0_i32_0 = arith.constant 0 : i32
    %c0_i32_1 = arith.constant 0 : i32
    return %c0_i32, %c0_i32_0 : i32, i32
  }
  func.func @transform_6(%arg0: i32, %arg1: i32) -> (i32, i32) {
    %c0_i32 = arith.constant 0 : i32
    %c0_i32_0 = arith.constant 0 : i32
    %c0_i32_1 = arith.constant 0 : i32
    return %c0_i32, %c0_i32_0 : i32, i32
  }
  func.func @transform_7(%arg0: i32, %arg1: i32) -> (i32, i32) {
    %c0_i32 = arith.constant 0 : i32
    %c0_i32_0 = arith.constant 0 : i32
    %c0_i32_1 = arith.constant 0 : i32
    return %c0_i32, %c0_i32_0 : i32, i32
  }
  func.func @transform_8(%arg0: i32, %arg1: i32) -> (i32, i32, i32) {
    %c0_i32 = arith.constant 0 : i32
    %c0_i32_0 = arith.constant 0 : i32
    return %arg0, %arg1, %c0_i32 : i32, i32, i32
  }
}

</mosaic_0001>

<llo_original>
// kernel: tpu_custom_call.1
$region0: #{tpu_custom_call.1}
  #allocation0 [shape = 'u32[]', space=smem, size = 0x4, offset = 0x4, fixed_abs, tag = 'smem constant byte address 0x4 - core index']
  #allocation1 [shape = 'u32[144,128]{1,0:T(1,128)}', space=vmem, size = 0x12000, scoped, tag = 'internal scratch']
  %s0 = inlined_call_operand.hbm [shape: f32[2,8,32], index: 0, kind: input, shape index: {}]
  %s1 = inlined_call_operand.hbm [shape: f32[2,16,32], index: 1, kind: input, shape index: {}]
  %s2 = inlined_call_operand.hbm [shape: f32[2,16,32], index: 2, kind: input, shape index: {}]
  %s3 = inlined_call_operand.hbm [shape: f32[8,32], index: 3, kind: input, shape index: {}]
  %s4 = inlined_call_operand.hbm [shape: bf16[32,32], index: 4, kind: input, shape index: {}]
  %s5 = inlined_call_operand.hbm [shape: bf16[32,32], index: 5, kind: input, shape index: {}]
  %s6 = inlined_call_operand.hbm [shape: bf16[32,32], index: 6, kind: input, shape index: {}]
  %s7 = inlined_call_operand.hbm [shape: bf16[32,32], index: 7, kind: input, shape index: {}]
  %s8 = inlined_call_operand.hbm [shape: f32[2,8,32], index: 8, kind: output, shape index: {}]
  %s9 = sld [smem:[#allocation0]]
  $region97: #{tpu_custom_call.1} parent=0
    _
  %s11 = ssub.s32 1, %s9
  %s12 = scalar_select 0, %s11, %s9
  $region1: #{tpu_custom_call.1} parent=0
    #allocation2 [shape = 'u8[8192]{0}', space=vmem, size = 0x2000, scoped, tag = 'input window, operand 0']
    #allocation3 [shape = 's32[2]{0}', space=sflag, size = 0x8, scoped, tag = 'scoped memory for tpu_custom_call.1']
    #allocation4 [shape = 's32[2]{0}', space=sflag, size = 0x8, scoped, tag = 'scoped memory for tpu_custom_call.1']
    #allocation5 [shape = 'u8[16384]{0}', space=vmem, size = 0x4000, scoped, tag = 'input window, operand 1']
    #allocation6 [shape = 's32[2]{0}', space=sflag, size = 0x8, scoped, tag = 'scoped memory for tpu_custom_call.1']
    #allocation7 [shape = 'u8[16384]{0}', space=vmem, size = 0x4000, scoped, tag = 'input window, operand 2']
    #allocation8 [shape = 'u8[4096]{0}', space=vmem, size = 0x1000, scoped, tag = 'input window, operand 3, single buffered']
    #allocation9 [shape = 's32[1]{0}', space=sflag, size = 0x4, scoped, tag = 'scoped memory for tpu_custom_call.1']
    #allocation10 [shape = 'u8[8192]{0}', space=vmem, size = 0x2000, scoped, tag = 'input window, operand 4, single buffered']
    #allocation11 [shape = 'u8[8192]{0}', space=vmem, size = 0x2000, scoped, tag = 'input window, operand 5, single buffered']
    #allocation12 [shape = 's32[1]{0}', space=sflag, size = 0x4, scoped, tag = 'scoped memory for tpu_custom_call.1']
    #allocation13 [shape = 'u8[8192]{0}', space=vmem, size = 0x2000, scoped, tag = 'input window, operand 6, single buffered']
    #allocation14 [shape = 'u8[8192]{0}', space=vmem, size = 0x2000, scoped, tag = 'input window, operand 7, single buffered']
    #allocation15 [shape = 's32[1]{0}', space=sflag, size = 0x4, scoped, tag = 'scoped memory for tpu_custom_call.1']
    #allocation16 [shape = 'u8[8192]{0}', space=vmem, size = 0x2000, scoped, tag = 'output window, operand 0']
    %13 = vsyncpa [#allocation3], 0
    %s14 = scalar_lea.sflag [#allocation3], 1
    %15 = vsyncpa %s14, 0
    %16 = vsyncpa [#allocation6], 0
    %s17 = scalar_lea.sflag [#allocation6], 1
    %18 = vsyncpa %s17, 0
    %19 = vsyncpa [#allocation9], 0
    %20 = vsyncpa [#allocation12], 0
    %21 = vsyncpa [#allocation15], 0
    %22 = vsyncpa [#allocation4], 0
    %s23 = scalar_lea.sflag [#allocation4], 1
    %24 = vsyncpa %s23, 0
    loop: start=0, step=1, limit=4
    $region2: #{tpu_custom_call.1} parent=1 // loop_pre_header
      _
    $region3: #{tpu_custom_call.1} parent=1 // loop_header
      %s26 = sphi 0, %s30
      %p27 = scmp.ge.s32.totalorder %s26, 4
      %s33 = sphi 0, %s45
      %s34 = sphi 0, %s41
      %s35 = sphi 0, %s33
      %s36 = sphi 0, %s34
      %s37 = sphi 0, %s35
      %s38 = sphi 0, %s36
      %s50 = sphi 0, %s52
      %s53 = sphi 0, %s50
      %s54 = sphi 0, %s53
      %s70 = sphi 0, %s54
      %s76 = sphi 0, %s78
      %s79 = sphi 0, %s76
      %s80 = sphi 0, %s79
      %s96 = sphi 0, %s80
      %s102 = sphi 0, %s104
      %s105 = sphi 0, %s102
      %s106 = sphi 0, %s105
      %s122 = sphi 0, %s106
      %s126 = sphi 0, %s126
      %s128 = sphi 0, %s126
      %s129 = sphi 0, %s128
      %s143 = sphi 0, %s129
      %s147 = sphi 0, %s147
      %s149 = sphi 0, %s147
      %s150 = sphi 0, %s149
      %s164 = sphi 0, %s150
      %s168 = sphi 0, %s168
      %s170 = sphi 0, %s168
      %s171 = sphi 0, %s170
      %s185 = sphi 0, %s171
      %s189 = sphi 0, %s189
      %s191 = sphi 0, %s189
      %s192 = sphi 0, %s191
      %s206 = sphi 0, %s192
      %s210 = sphi 0, %s210
      %s212 = sphi 0, %s210
      %s213 = sphi 0, %s212
      %s227 = sphi 0, %s213
      %s235 = sphi 0, %s237
      %s238 = sphi 0, %s235
      %s239 = sphi 0, %s238
      %s255 = sphi 0, %s239
    $region4: #{tpu_custom_call.1} parent=1 // loop_header_branch
      %29 = sbr.rel (%p27) target = $region8
    $region5: #{tpu_custom_call.1} parent=1 // loop_body
      %s31 = ssub.s32 %s26, 1
      %s32 = ssub.s32 %s26, 2
      %s39 = sadd.s32 1, %s34
      %p40 = scmp.ge.s32.totalorder %s39, 1
      %s41 = scalar_select %p40, 0, %s39
      %s42 = sadd.s32 1, %s33
      %s43 = scalar_select %p40, %s42, %s33
      %p44 = scmp.ge.s32.totalorder %s43, 2
      %s45 = scalar_select %p44, 0, %s43
      %s46 = ssub.s32 %s33, %s45
      %s47 = ssub.s32 %s34, %s41
      %s48 = sor.u32 %s46, %s47
      %p49 = scmp.eq.s32.totalorder %s48, 0
      %s51 = sadd.s32 %s50, 1
      %s52 = scalar_select %p49, %s50, %s51
      %p55 = pneg %p49
      %p56 = scmp.eq.s32.totalorder %s26, 1
      %p57 = por %p55, %p56
      %p58 = scmp.ne.s32.totalorder %s50, %s53
      %p59 = scmp.eq.s32.totalorder %s26, 0
      %p60 = por %p58, %p59
      %p61 = scmp.ne.s32.totalorder %s50, %s53
      %p62 = scmp.eq.s32.totalorder %s31, 1
      %p63 = por %p61, %p62
      %p64 = scmp.ne.s32.totalorder %s53, %s54
      %p65 = scmp.eq.s32.totalorder %s31, 0
      %p66 = por %p64, %p65
      %p67 = scmp.ne.s32.totalorder %s53, %s54
      %p68 = scmp.eq.s32.totalorder %s32, 1
      %p69 = por %p67, %p68
      %p71 = scmp.ne.s32.totalorder %s54, %s70
      %p72 = scmp.eq.s32.totalorder %s32, 0
      %p73 = por %p71, %p72
      %s74 = ssub.s32 %s33, %s45
      %p75 = scmp.eq.s32.totalorder %s74, 0
      %s77 = sadd.s32 %s76, 1
      %s78 = scalar_select %p75, %s76, %s77
      %p81 = pneg %p75
      %p82 = scmp.eq.s32.totalorder %s26, 1
      %p83 = por %p81, %p82
      %p84 = scmp.ne.s32.totalorder %s76, %s79
      %p85 = scmp.eq.s32.totalorder %s26, 0
      %p86 = por %p84, %p85
      %p87 = scmp.ne.s32.totalorder %s76, %s79
      %p88 = scmp.eq.s32.totalorder %s31, 1
      %p89 = por %p87, %p88
      %p90 = scmp.ne.s32.totalorder %s79, %s80
      %p91 = scmp.eq.s32.totalorder %s31, 0
      %p92 = por %p90, %p91
      %p93 = scmp.ne.s32.totalorder %s79, %s80
      %p94 = scmp.eq.s32.totalorder %s32, 1
      %p95 = por %p93, %p94
      %p97 = scmp.ne.s32.totalorder %s80, %s96
      %p98 = scmp.eq.s32.totalorder %s32, 0
      %p99 = por %p97, %p98
      %s100 = ssub.s32 %s33, %s45
      %p101 = scmp.eq.s32.totalorder %s100, 0
      %s103 = sadd.s32 %s102, 1
      %s104 = scalar_select %p101, %s102, %s103
      %p107 = pneg %p101
      %p108 = scmp.eq.s32.totalorder %s26, 1
      %p109 = por %p107, %p108
      %p110 = scmp.ne.s32.totalorder %s102, %s105
      %p111 = scmp.eq.s32.totalorder %s26, 0
      %p112 = por %p110, %p111
      %p113 = scmp.ne.s32.totalorder %s102, %s105
      %p114 = scmp.eq.s32.totalorder %s31, 1
      %p115 = por %p113, %p114
      %p116 = scmp.ne.s32.totalorder %s105, %s106
      %p117 = scmp.eq.s32.totalorder %s31, 0
      %p118 = por %p116, %p117
      %p119 = scmp.ne.s32.totalorder %s105, %s106
      %p120 = scmp.eq.s32.totalorder %s32, 1
      %p121 = por %p119, %p120
      %p123 = scmp.ne.s32.totalorder %s106, %s122
      %p124 = scmp.eq.s32.totalorder %s32, 0
      %p125 = por %p123, %p124
      %s127 = sadd.s32 %s126, 1
      %p130 = scmp.eq.s32.totalorder %s26, 1
      %p131 = scmp.ne.s32.totalorder %s126, %s128
      %p132 = scmp.eq.s32.totalorder %s26, 0
      %p133 = por %p131, %p132
      %p134 = scmp.ne.s32.totalorder %s126, %s128
      %p135 = scmp.eq.s32.totalorder %s31, 1
      %p136 = por %p134, %p135
      %p137 = scmp.ne.s32.totalorder %s128, %s129
      %p138 = scmp.eq.s32.totalorder %s31, 0
      %p139 = por %p137, %p138
      %p140 = scmp.ne.s32.totalorder %s128, %s129
      %p141 = scmp.eq.s32.totalorder %s32, 1
      %p142 = por %p140, %p141
      %p144 = scmp.ne.s32.totalorder %s129, %s143
      %p145 = scmp.eq.s32.totalorder %s32, 0
      %p146 = por %p144, %p145
      %s148 = sadd.s32 %s147, 1
      %p151 = scmp.eq.s32.totalorder %s26, 1
      %p152 = scmp.ne.s32.totalorder %s147, %s149
      %p153 = scmp.eq.s32.totalorder %s26, 0
      %p154 = por %p152, %p153
      %p155 = scmp.ne.s32.totalorder %s147, %s149
      %p156 = scmp.eq.s32.totalorder %s31, 1
      %p157 = por %p155, %p156
      %p158 = scmp.ne.s32.totalorder %s149, %s150
      %p159 = scmp.eq.s32.totalorder %s31, 0
      %p160 = por %p158, %p159
      %p161 = scmp.ne.s32.totalorder %s149, %s150
      %p162 = scmp.eq.s32.totalorder %s32, 1
      %p163 = por %p161, %p162
      %p165 = scmp.ne.s32.totalorder %s150, %s164
      %p166 = scmp.eq.s32.totalorder %s32, 0
      %p167 = por %p165, %p166
      %s169 = sadd.s32 %s168, 1
      %p172 = scmp.eq.s32.totalorder %s26, 1
      %p173 = scmp.ne.s32.totalorder %s168, %s170
      %p174 = scmp.eq.s32.totalorder %s26, 0
      %p175 = por %p173, %p174
      %p176 = scmp.ne.s32.totalorder %s168, %s170
      %p177 = scmp.eq.s32.totalorder %s31, 1
      %p178 = por %p176, %p177
      %p179 = scmp.ne.s32.totalorder %s170, %s171
      %p180 = scmp.eq.s32.totalorder %s31, 0
      %p181 = por %p179, %p180
      %p182 = scmp.ne.s32.totalorder %s170, %s171
      %p183 = scmp.eq.s32.totalorder %s32, 1
      %p184 = por %p182, %p183
      %p186 = scmp.ne.s32.totalorder %s171, %s185
      %p187 = scmp.eq.s32.totalorder %s32, 0
      %p188 = por %p186, %p187
      %s190 = sadd.s32 %s189, 1
      %p193 = scmp.eq.s32.totalorder %s26, 1
      %p194 = scmp.ne.s32.totalorder %s189, %s191
      %p195 = scmp.eq.s32.totalorder %s26, 0
      %p196 = por %p194, %p195
      %p197 = scmp.ne.s32.totalorder %s189, %s191
      %p198 = scmp.eq.s32.totalorder %s31, 1
      %p199 = por %p197, %p198
      %p200 = scmp.ne.s32.totalorder %s191, %s192
      %p201 = scmp.eq.s32.totalorder %s31, 0
      %p202 = por %p200, %p201
      %p203 = scmp.ne.s32.totalorder %s191, %s192
      %p204 = scmp.eq.s32.totalorder %s32, 1
      %p205 = por %p203, %p204
      %p207 = scmp.ne.s32.totalorder %s192, %s206
      %p208 = scmp.eq.s32.totalorder %s32, 0
      %p209 = por %p207, %p208
      %s211 = sadd.s32 %s210, 1
      %p214 = scmp.eq.s32.totalorder %s26, 1
      %p215 = scmp.ne.s32.totalorder %s210, %s212
      %p216 = scmp.eq.s32.totalorder %s26, 0
      %p217 = por %p215, %p216
      %p218 = scmp.ne.s32.totalorder %s210, %s212
      %p219 = scmp.eq.s32.totalorder %s31, 1
      %p220 = por %p218, %p219
      %p221 = scmp.ne.s32.totalorder %s212, %s213
      %p222 = scmp.eq.s32.totalorder %s31, 0
      %p223 = por %p221, %p222
      %p224 = scmp.ne.s32.totalorder %s212, %s213
      %p225 = scmp.eq.s32.totalorder %s32, 1
      %p226 = por %p224, %p225
      %p228 = scmp.ne.s32.totalorder %s213, %s227
      %p229 = scmp.eq.s32.totalorder %s32, 0
      %p230 = por %p228, %p229
      %s231 = ssub.s32 %s33, %s45
      %s232 = ssub.s32 %s34, %s41
      %s233 = sor.u32 %s231, %s232
      %p234 = scmp.eq.s32.totalorder %s233, 0
      %s236 = sadd.s32 %s235, 1
      %s237 = scalar_select %p234, %s235, %s236
      %p240 = pneg %p234
      %p241 = scmp.eq.s32.totalorder %s26, 1
      %p242 = por %p240, %p241
      %p243 = scmp.ne.s32.totalorder %s235, %s238
      %p244 = scmp.eq.s32.totalorder %s26, 0
      %p245 = por %p243, %p244
      %p246 = scmp.ne.s32.totalorder %s235, %s238
      %p247 = scmp.eq.s32.totalorder %s31, 1
      %p248 = por %p246, %p247
      %p249 = scmp.ne.s32.totalorder %s238, %s239
      %p250 = scmp.eq.s32.totalorder %s31, 0
      %p251 = por %p249, %p250
      %p252 = scmp.ne.s32.totalorder %s238, %s239
      %p253 = scmp.eq.s32.totalorder %s32, 1
      %p254 = por %p252, %p253
      %p256 = scmp.ne.s32.totalorder %s239, %s255
      %p257 = scmp.eq.s32.totalorder %s32, 0
      %p258 = por %p256, %p257
      %p259 = scmp.le.s32.totalorder 1, %s26
      %p260 = scmp.lt.s32.totalorder %s26, 3
      %p261 = pnand %p259, %p260
      %p262 = pneg %p261
      // Predicated region
      $region9: #{tpu_custom_call.1} parent=5 // pred_check
        _
      $region10: #{tpu_custom_call.1} parent=5 // pred_check_branch
        %264 = sbr.rel (%p261) target = $region12
      $region11: #{tpu_custom_call.1} parent=5 // pred_region
        %s265 = ssub.s32 %s26, 1
        // Predicated region
        $region13: #{tpu_custom_call.1} parent=11 // pred_check
          %p266 = pneg %p139
        $region14: #{tpu_custom_call.1} parent=11 // pred_check_branch
          %268 = sbr.rel (%p266) target = $region16
        $region15: #{tpu_custom_call.1} parent=11 // pred_region
          %s270 = ssub.s32 128, 128
          %271 = vsyncadd [#allocation9], %s270
          %s273 = sshll.u32 [#allocation8], 4
          %s274 = int_to_ptr.vmem [resolvable:$true] %s273
          %276 = dma.hbm_to_vmem [thread:$0]  %s3, 128, %s274, [#allocation9]
        $region16: #{tpu_custom_call.1} parent=11 // pred_fallthru
          _
        // Predicated region
        $region17: #{tpu_custom_call.1} parent=11 // pred_check
          %p277 = pneg %p160
        $region18: #{tpu_custom_call.1} parent=11 // pred_check_branch
          %279 = sbr.rel (%p277) target = $region20
        $region19: #{tpu_custom_call.1} parent=11 // pred_region
          %s281 = ssub.s32 256, 256
          %282 = vsyncadd [#allocation9], %s281
          %s283 = sshll.u32 [#allocation10], 4
          %s284 = int_to_ptr.vmem [resolvable:$true] %s283
          %289 = dma.hbm_to_vmem [thread:$0]  %s4, 256, %s284, [#allocation9], 64, 64, 4
        $region20: #{tpu_custom_call.1} parent=11 // pred_fallthru
          _
        // Predicated region
        $region21: #{tpu_custom_call.1} parent=11 // pred_check
          %p290 = pneg %p181
        $region22: #{tpu_custom_call.1} parent=11 // pred_check_branch
          %292 = sbr.rel (%p290) target = $region24
        $region23: #{tpu_custom_call.1} parent=11 // pred_region
          %s294 = ssub.s32 256, 256
          %295 = vsyncadd [#allocation12], %s294
          %s296 = sshll.u32 [#allocation11], 4
          %s297 = int_to_ptr.vmem [resolvable:$true] %s296
          %302 = dma.hbm_to_vmem [thread:$0]  %s5, 256, %s297, [#allocation12], 64, 64, 4
        $region24: #{tpu_custom_call.1} parent=11 // pred_fallthru
          _
        // Predicated region
        $region25: #{tpu_custom_call.1} parent=11 // pred_check
          %p303 = pneg %p202
        $region26: #{tpu_custom_call.1} parent=11 // pred_check_branch
          %305 = sbr.rel (%p303) target = $region28
        $region27: #{tpu_custom_call.1} parent=11 // pred_region
          %s307 = ssub.s32 256, 256
          %308 = vsyncadd [#allocation12], %s307
          %s309 = sshll.u32 [#allocation13], 4
          %s310 = int_to_ptr.vmem [resolvable:$true] %s309
          %315 = dma.hbm_to_vmem [thread:$0]  %s6, 256, %s310, [#allocation12], 64, 64, 4
        $region28: #{tpu_custom_call.1} parent=11 // pred_fallthru
          _
        // Predicated region
        $region29: #{tpu_custom_call.1} parent=11 // pred_check
          %p316 = pneg %p223
        $region30: #{tpu_custom_call.1} parent=11 // pred_check_branch
          %318 = sbr.rel (%p316) target = $region32
        $region31: #{tpu_custom_call.1} parent=11 // pred_region
          %s320 = ssub.s32 256, 256
          %321 = vsyncadd [#allocation15], %s320
          %s322 = sshll.u32 [#allocation14], 4
          %s323 = int_to_ptr.vmem [resolvable:$true] %s322
          %328 = dma.hbm_to_vmem [thread:$0]  %s7, 256, %s323, [#allocation15], 64, 64, 4
        $region32: #{tpu_custom_call.1} parent=11 // pred_fallthru
          _
      $region12: #{tpu_custom_call.1} parent=5 // pred_fallthru
        _
      %p329 = scmp.lt.s32.totalorder %s26, 2
      // Predicated region
      $region33: #{tpu_custom_call.1} parent=5 // pred_check
        %p330 = pneg %p329
      $region34: #{tpu_custom_call.1} parent=5 // pred_check_branch
        %332 = sbr.rel (%p330) target = $region36
      $region35: #{tpu_custom_call.1} parent=5 // pred_region
        // Predicated region
        $region37: #{tpu_custom_call.1} parent=35 // pred_check
          %p333 = pneg %p60
        $region38: #{tpu_custom_call.1} parent=35 // pred_check_branch
          %335 = sbr.rel (%p333) target = $region40
        $region39: #{tpu_custom_call.1} parent=35 // pred_region
          %s336 = sand.u32 %s50, 1
          %s337 = scalar_lea.sflag [#allocation3], %s336
          %s338 = sand.u32 %s50, 1
          %s339 = smul.addr %s338, 8
          %s340 = scalar_lea.vmem [#allocation2], %s339
          %s342 = ssub.s32 128, 128
          %343 = vsyncadd %s337, %s342
          %s344 = sadd.s32 %s34, %s33
          %s345 = smul.addr %s344, 128
          %s346 = scalar_lea.hbm %s0, %s345
          %s348 = sshll.u32 %s340, 4
          %s349 = int_to_ptr.vmem [resolvable:$true] %s348
          %351 = dma.hbm_to_vmem [thread:$0]  %s346, 128, %s349, %s337
        $region40: #{tpu_custom_call.1} parent=35 // pred_fallthru
          _
        // Predicated region
        $region41: #{tpu_custom_call.1} parent=35 // pred_check
          %p352 = pneg %p86
        $region42: #{tpu_custom_call.1} parent=35 // pred_check_branch
          %354 = sbr.rel (%p352) target = $region44
        $region43: #{tpu_custom_call.1} parent=35 // pred_region
          %s355 = sand.u32 %s26, 1
          %s356 = scalar_lea.sflag [#allocation6], %s355
          %s357 = sand.u32 %s76, 1
          %s358 = smul.addr %s357, 16
          %s359 = scalar_lea.vmem [#allocation5], %s358
          %s361 = ssub.s32 256, 256
          %362 = vsyncadd %s356, %s361
          %s363 = smul.addr %s33, 2
          %s364 = smul.addr %s363, 128
          %s365 = scalar_lea.hbm %s1, %s364
          %s366 = sshll.u32 %s359, 4
          %s367 = int_to_ptr.vmem [resolvable:$true] %s366
          %372 = dma.hbm_to_vmem [thread:$0]  %s365, 256, %s367, %s356, 128, 128, 8
        $region44: #{tpu_custom_call.1} parent=35 // pred_fallthru
          _
        // Predicated region
        $region45: #{tpu_custom_call.1} parent=35 // pred_check
          %p373 = pneg %p112
        $region46: #{tpu_custom_call.1} parent=35 // pred_check_branch
          %375 = sbr.rel (%p373) target = $region48
        $region47: #{tpu_custom_call.1} parent=35 // pred_region
          %s376 = sand.u32 %s26, 1
          %s377 = scalar_lea.sflag [#allocation6], %s376
          %s378 = sand.u32 %s102, 1
          %s379 = smul.addr %s378, 16
          %s380 = scalar_lea.vmem [#allocation7], %s379
          %s382 = ssub.s32 256, 256
          %383 = vsyncadd %s377, %s382
          %s384 = smul.addr %s33, 2
          %s385 = smul.addr %s384, 128
          %s386 = scalar_lea.hbm %s2, %s385
          %s387 = sshll.u32 %s380, 4
          %s388 = int_to_ptr.vmem [resolvable:$true] %s387
          %393 = dma.hbm_to_vmem [thread:$0]  %s386, 256, %s388, %s377, 128, 128, 8
        $region48: #{tpu_custom_call.1} parent=35 // pred_fallthru
          _
      $region36: #{tpu_custom_call.1} parent=5 // pred_fallthru
        _
      %p394 = scmp.le.s32.totalorder 1, %s26
      %p395 = scmp.lt.s32.totalorder %s26, 3
      %p396 = pnand %p394, %p395
      %p397 = pneg %p396
      // Predicated region
      $region49: #{tpu_custom_call.1} parent=5 // pred_check
        _
      $region50: #{tpu_custom_call.1} parent=5 // pred_check_branch
        %399 = sbr.rel (%p396) target = $region52
      $region51: #{tpu_custom_call.1} parent=5 // pred_region
        %s400 = ssub.s32 %s26, 1
        %s401 = sand.u32 %s53, 1
        %s402 = scalar_lea.sflag [#allocation3], %s401
        %s403 = sand.u32 %s53, 1
        %s404 = smul.addr %s403, 8
        %s405 = scalar_lea.vmem [#allocation2], %s404
        // Predicated region
        $region53: #{tpu_custom_call.1} parent=51 // pred_check
          %p406 = pneg %p66
        $region54: #{tpu_custom_call.1} parent=51 // pred_check_branch
          %408 = sbr.rel (%p406) target = $region56
        $region55: #{tpu_custom_call.1} parent=51 // pred_region
          %409 = dma.done %s402, 128
        $region56: #{tpu_custom_call.1} parent=51 // pred_fallthru
          _
        %s410 = sand.u32 %s31, 1
        %s411 = scalar_lea.sflag [#allocation6], %s410
        %s412 = sand.u32 %s79, 1
        %s413 = smul.addr %s412, 16
        %s414 = scalar_lea.vmem [#allocation5], %s413
        // Predicated region
        $region57: #{tpu_custom_call.1} parent=51 // pred_check
          %p415 = pneg %p92
        $region58: #{tpu_custom_call.1} parent=51 // pred_check_branch
          %417 = sbr.rel (%p415) target = $region60
        $region59: #{tpu_custom_call.1} parent=51 // pred_region
          %418 = dma.done %s411, 256
        $region60: #{tpu_custom_call.1} parent=51 // pred_fallthru
          _
        %s419 = sand.u32 %s31, 1
        %s420 = scalar_lea.sflag [#allocation6], %s419
        %s421 = sand.u32 %s105, 1
        %s422 = smul.addr %s421, 16
        %s423 = scalar_lea.vmem [#allocation7], %s422
        // Predicated region
        $region61: #{tpu_custom_call.1} parent=51 // pred_check
          %p424 = pneg %p118
        $region62: #{tpu_custom_call.1} parent=51 // pred_check_branch
          %426 = sbr.rel (%p424) target = $region64
        $region63: #{tpu_custom_call.1} parent=51 // pred_region
          %427 = dma.done %s420, 256
        $region64: #{tpu_custom_call.1} parent=51 // pred_fallthru
          _
        // Predicated region
        $region65: #{tpu_custom_call.1} parent=51 // pred_check
          %p428 = pneg %p139
        $region66: #{tpu_custom_call.1} parent=51 // pred_check_branch
          %430 = sbr.rel (%p428) target = $region68
        $region67: #{tpu_custom_call.1} parent=51 // pred_region
          %431 = dma.done [#allocation9], 128
        $region68: #{tpu_custom_call.1} parent=51 // pred_fallthru
          _
        // Predicated region
        $region69: #{tpu_custom_call.1} parent=51 // pred_check
          %p432 = pneg %p160
        $region70: #{tpu_custom_call.1} parent=51 // pred_check_branch
          %434 = sbr.rel (%p432) target = $region72
        $region71: #{tpu_custom_call.1} parent=51 // pred_region
          %435 = dma.done [#allocation9], 256
        $region72: #{tpu_custom_call.1} parent=51 // pred_fallthru
          _
        // Predicated region
        $region73: #{tpu_custom_call.1} parent=51 // pred_check
          %p436 = pneg %p181
        $region74: #{tpu_custom_call.1} parent=51 // pred_check_branch
          %438 = sbr.rel (%p436) target = $region76
        $region75: #{tpu_custom_call.1} parent=51 // pred_region
          %439 = dma.done [#allocation12], 256
        $region76: #{tpu_custom_call.1} parent=51 // pred_fallthru
          _
        // Predicated region
        $region77: #{tpu_custom_call.1} parent=51 // pred_check
          %p440 = pneg %p202
        $region78: #{tpu_custom_call.1} parent=51 // pred_check_branch
          %442 = sbr.rel (%p440) target = $region80
        $region79: #{tpu_custom_call.1} parent=51 // pred_region
          %443 = dma.done [#allocation12], 256
        $region80: #{tpu_custom_call.1} parent=51 // pred_fallthru
          _
        // Predicated region
        $region81: #{tpu_custom_call.1} parent=51 // pred_check
          %p444 = pneg %p223
        $region82: #{tpu_custom_call.1} parent=51 // pred_check_branch
          %446 = sbr.rel (%p444) target = $region84
        $region83: #{tpu_custom_call.1} parent=51 // pred_region
          %447 = dma.done [#allocation15], 256
        $region84: #{tpu_custom_call.1} parent=51 // pred_fallthru
          _
        %s448 = sand.u32 %s53, 1
        %s449 = scalar_lea.sflag [#allocation3], %s448
        %s450 = sand.u32 %s53, 1
        %s451 = smul.addr %s450, 8
        %s452 = scalar_lea.vmem [#allocation2], %s451
        %p453 = pneg %p66
        %p454 = pneg %p63
        %s455 = sand.u32 %s31, 1
        %s456 = scalar_lea.sflag [#allocation6], %s455
        %s457 = sand.u32 %s79, 1
        %s458 = smul.addr %s457, 16
        %s459 = scalar_lea.vmem [#allocation5], %s458
        %p460 = pneg %p92
        %p461 = pneg %p89
        %s462 = sand.u32 %s31, 1
        %s463 = scalar_lea.sflag [#allocation6], %s462
        %s464 = sand.u32 %s105, 1
        %s465 = smul.addr %s464, 16
        %s466 = scalar_lea.vmem [#allocation7], %s465
        %p467 = pneg %p118
        %p468 = pneg %p115
        %p469 = pneg %p139
        %p470 = pneg %p136
        %p471 = pneg %p160
        %p472 = pneg %p157
        %p473 = pneg %p181
        %p474 = pneg %p178
        %p475 = pneg %p202
        %p476 = pneg %p199
        %p477 = pneg %p223
        %p478 = pneg %p220
        %p479 = pneg %p251
        %p480 = pneg %p248
        %s481 = sand.u32 %s238, 1
        %s482 = scalar_lea.sflag [#allocation4], %s481
        %s483 = sand.u32 %s238, 1
        %s484 = smul.addr %s483, 8
        %s485 = scalar_lea.vmem [#allocation16], %s484
        %v487 = vld [vmem:[#allocation8] sm:$0xff]
        %v488 = vld [vmem:[%s405] sm:$0xff]
        %vm489 = vcmask 261120
        %v490 = vsel %vm489, %v488, 0.0
        %491 = vadd.xlane.f32.xlu0 %v490
        %v492 = vpop.xlane.xlu0 %491
        %v493 = vrcp.pop 32.0
        %v494 = vmul.f32 %v492, %v493
        %v495 = vmul.f32 %v488, %v488
        %v496 = vsel %vm489, %v495, 0.0
        %497 = vadd.xlane.f32.xlu0 %v496
        %v498 = vpop.xlane.xlu0 %497
        %v499 = vmul.f32 %v498, %v493
        %v500 = vmul.f32 %v494, %v494
        %v501 = vsub.f32 %v499, %v500
        %v502 = vmax.f32 %v501, 0.0
        %v503 = vsub.f32 %v488, %v494
        %v504 = vadd.f32 %v502, 1e-05
        %v505 = vrsqrt.pop %v504
        %v506 = vmul.f32 %v503, %v505
        %v507 = vlaneseq
        %v508 = vshrl.u32 %v507, 7
        %v509 = vsub.s32 0, %v508
        %v510 = vrot.slane %v487, %v509
        %v511 = vmul.f32 %v506, %v510
        %v512 = vlaneseq
        %v513 = vshrl.u32 %v512, 7
        %v514 = vsub.s32 1, %v513
        %v515 = vrot.slane %v487, %v514
        %v516 = vadd.f32 %v511, %v515
        %v517 = vpack.c.bf16 %v516, %v516
        %v518 = vld [vmem:[#allocation10] sm:$0xf]
        %v519 = vld [vmem:[#allocation10 + $0x4] sm:$0xf]
        %v520 = vld [vmem:[#allocation10 + $0x8] sm:$0xf]
        %v521 = vld [vmem:[#allocation10 + $0xc] sm:$0xf]
        %v522 = vlaneseq
        %v523 = vshrl.u32 %v522, 7
        %v524 = vsub.s32 4, %v523
        %v525 = vrot.slane %v487, %v524
        %v530 = vunpack.c.l.b16 %v518
        %v531 = vunpack.c.l.b16 %v519
        %v532 = vunpack.c.l.b16 %v520
        %v533 = vunpack.c.l.b16 %v521
        %v534 = vpack.c.b16 %v531, %v530
        %v535 = vpack.c.b16 %v533, %v532
        %v539 = vsel %vm489, %v517, 0
        %541 = vmatprep.subr.bf16.mxu0 0
        %542 = vmatpush1.bf16.msra.mxu0 0
        %543 = vmatprep.subr.bf16.mxu0 0
        %544 = vmatpush1.bf16.msra.mxu0 0
        %545 = vmatprep.subr.bf16.mxu0 0
        %546 = vmatpush1.bf16.msra.mxu0 0
        %547 = vmatprep.subr.bf16.mxu0 0
        %548 = vmatpush1.bf16.msra.mxu0 0
        %549 = vmatprep.subr.bf16.mxu0 0
        %550 = vmatpush1.bf16.msra.mxu0 0
        %551 = vmatprep.subr.bf16.mxu0 0
        %552 = vmatpush1.bf16.msra.mxu0 0
        %553 = vmatprep.subr.bf16.mxu0 0
        %554 = vmatpush1.bf16.msra.mxu0 %v535
        %555 = vmatprep.subr.bf16.mxu0 0
        %556 = vmatpush1.bf16.msra.mxu0 %v534
        %557 = vmatprep.subr.bf16.mxu0 0
        %558 = vmatpush2.bf16.msra.mxu0 0
        %559 = vmatprep.subr.bf16.mxu0 0
        %560 = vmatpush2.bf16.msra.mxu0 0
        %561 = vmatprep.subr.bf16.mxu0 0
        %562 = vmatpush2.bf16.msra.mxu0 0
        %563 = vmatprep.subr.bf16.mxu0 0
        %564 = vmatpush2.bf16.msra.mxu0 0
        %565 = vmatprep.subr.bf16.mxu0 0
        %566 = vmatpush2.bf16.msra.mxu0 0
        %567 = vmatprep.subr.bf16.mxu0 0
        %568 = vmatpush2.bf16.msra.mxu0 0
        %569 = vmatprep.subr.bf16.mxu0 0
        %570 = vmatpush2.bf16.msra.mxu0 0
        %571 = vmatprep.subr.bf16.mxu0 0
        %572 = vmatpush2.bf16.msra.mxu0 0
        %573 = vmatprep.mubr.bf16.mxu0 0
        %574 = vmatmul.mubr.bf16.gmra.mxu0 %v539
        %v575 = vpop.f32.mrf.mxu0
        %v576 = vadd.f32 %v525, %v575
        %v577 = vpop.f32.mrf.mxu0
        %v578 = vpop.f32.mrf.mxu0
        %v579 = vpop.f32.mrf.mxu0
        %580 = vdwg.mxu0
        %v581 = vld [vmem:[%s414] sm:$0xff]
        %v582 = vld [vmem:[%s414 + $0x8] sm:$0xff]
        %v583 = vsel %vm489, %v581, 0.0
        %584 = vadd.xlane.f32.xlu0 %v583
        %v585 = vpop.xlane.xlu0 %584
        %v586 = vsel %vm489, %v582, 0.0
        %587 = vadd.xlane.f32.xlu0 %v586
        %v588 = vpop.xlane.xlu0 %587
        %v589 = vmul.f32 %v585, %v493
        %v590 = vmul.f32 %v588, %v493
        %v591 = vmul.f32 %v581, %v581
        %v592 = vmul.f32 %v582, %v582
        %v593 = vsel %vm489, %v591, 0.0
        %594 = vadd.xlane.f32.xlu0 %v593
        %v595 = vpop.xlane.xlu0 %594
        %v596 = vsel %vm489, %v592, 0.0
        %597 = vadd.xlane.f32.xlu0 %v596
        %v598 = vpop.xlane.xlu0 %597
        %v599 = vmul.f32 %v595, %v493
        %v600 = vmul.f32 %v598, %v493
        %v601 = vmul.f32 %v589, %v589
        %v602 = vmul.f32 %v590, %v590
        %v603 = vsub.f32 %v599, %v601
        %v604 = vsub.f32 %v600, %v602
        %v605 = vmax.f32 %v603, 0.0
        %v606 = vmax.f32 %v604, 0.0
        %v607 = vsub.f32 %v581, %v589
        %v608 = vsub.f32 %v582, %v590
        %v609 = vadd.f32 %v605, 1e-05
        %v610 = vadd.f32 %v606, 1e-05
        %v611 = vrsqrt.pop %v609
        %v612 = vrsqrt.pop %v610
        %v613 = vmul.f32 %v607, %v611
        %v614 = vmul.f32 %v608, %v612
        %v615 = vlaneseq
        %v616 = vshrl.u32 %v615, 7
        %v617 = vsub.s32 2, %v616
        %v618 = vrot.slane %v487, %v617
        %v619 = vmul.f32 %v613, %v618
        %v620 = vmul.f32 %v614, %v618
        %v621 = vlaneseq
        %v622 = vshrl.u32 %v621, 7
        %v623 = vsub.s32 3, %v622
        %v624 = vrot.slane %v487, %v623
        %v625 = vadd.f32 %v619, %v624
        %v626 = vadd.f32 %v620, %v624
        %v627 = vpack.c.bf16 %v626, %v625
        %v628 = vld [vmem:[#allocation11] sm:$0xf]
        %v629 = vld [vmem:[#allocation11 + $0x4] sm:$0xf]
        %v630 = vld [vmem:[#allocation11 + $0x8] sm:$0xf]
        %v631 = vld [vmem:[#allocation11 + $0xc] sm:$0xf]
        %v632 = vlaneseq
        %v633 = vshrl.u32 %v632, 7
        %v634 = vsub.s32 5, %v633
        %v635 = vrot.slane %v487, %v634
        %v640 = vunpack.c.l.b16 %v628
        %v641 = vunpack.c.l.b16 %v629
        %v642 = vunpack.c.l.b16 %v630
        %v643 = vunpack.c.l.b16 %v631
        %v644 = vpack.c.b16 %v641, %v640
        %v645 = vpack.c.b16 %v643, %v642
        %v649 = vsel %vm489, %v627, 0
        %651 = vmatprep.subr.bf16.mxu0 0
        %652 = vmatpush1.bf16.msra.mxu0 0
        %653 = vmatprep.subr.bf16.mxu0 0
        %654 = vmatpush1.bf16.msra.mxu0 0
        %655 = vmatprep.subr.bf16.mxu0 0
        %656 = vmatpush1.bf16.msra.mxu0 0
        %657 = vmatprep.subr.bf16.mxu0 0
        %658 = vmatpush1.bf16.msra.mxu0 0
        %659 = vmatprep.subr.bf16.mxu0 0
        %660 = vmatpush1.bf16.msra.mxu0 0
        %661 = vmatprep.subr.bf16.mxu0 0
        %662 = vmatpush1.bf16.msra.mxu0 0
        %663 = vmatprep.subr.bf16.mxu0 0
        %664 = vmatpush1.bf16.msra.mxu0 %v645
        %665 = vmatprep.subr.bf16.mxu0 0
        %666 = vmatpush1.bf16.msra.mxu0 %v644
        %667 = vmatprep.subr.bf16.mxu0 0
        %668 = vmatpush2.bf16.msra.mxu0 0
        %669 = vmatprep.subr.bf16.mxu0 0
        %670 = vmatpush2.bf16.msra.mxu0 0
        %671 = vmatprep.subr.bf16.mxu0 0
        %672 = vmatpush2.bf16.msra.mxu0 0
        %673 = vmatprep.subr.bf16.mxu0 0
        %674 = vmatpush2.bf16.msra.mxu0 0
        %675 = vmatprep.subr.bf16.mxu0 0
        %676 = vmatpush2.bf16.msra.mxu0 0
        %677 = vmatprep.subr.bf16.mxu0 0
        %678 = vmatpush2.bf16.msra.mxu0 0
        %679 = vmatprep.subr.bf16.mxu0 0
        %680 = vmatpush2.bf16.msra.mxu0 0
        %681 = vmatprep.subr.bf16.mxu0 0
        %682 = vmatpush2.bf16.msra.mxu0 0
        %683 = vmatprep.mubr.bf16.mxu0 0
        %684 = vmatmul.mubr.bf16.gmra.mxu0 %v649
        %v685 = vpop.f32.mrf.mxu0
        %v686 = vadd.f32 %v635, %v685
        %v687 = vpop.f32.mrf.mxu0
        %v688 = vpop.f32.mrf.mxu0
        %v689 = vadd.f32 %v635, %v688
        %v690 = vpop.f32.mrf.mxu0
        %691 = vdwg.mxu0
        %v692 = vld [vmem:[%s423] sm:$0xff]
        %v693 = vld [vmem:[%s423 + $0x8] sm:$0xff]
        %v694 = vsel %vm489, %v692, 0.0
        %695 = vadd.xlane.f32.xlu0 %v694
        %v696 = vpop.xlane.xlu0 %695
        %v697 = vsel %vm489, %v693, 0.0
        %698 = vadd.xlane.f32.xlu0 %v697
        %v699 = vpop.xlane.xlu0 %698
        %v700 = vmul.f32 %v696, %v493
        %v701 = vmul.f32 %v699, %v493
        %v702 = vmul.f32 %v692, %v692
        %v703 = vmul.f32 %v693, %v693
        %v704 = vsel %vm489, %v702, 0.0
        %705 = vadd.xlane.f32.xlu0 %v704
        %v706 = vpop.xlane.xlu0 %705
        %v707 = vsel %vm489, %v703, 0.0
        %708 = vadd.xlane.f32.xlu0 %v707
        %v709 = vpop.xlane.xlu0 %708
        %v710 = vmul.f32 %v706, %v493
        %v711 = vmul.f32 %v709, %v493
        %v712 = vmul.f32 %v700, %v700
        %v713 = vmul.f32 %v701, %v701
        %v714 = vsub.f32 %v710, %v712
        %v715 = vsub.f32 %v711, %v713
        %v716 = vmax.f32 %v714, 0.0
        %v717 = vmax.f32 %v715, 0.0
        %v718 = vsub.f32 %v692, %v700
        %v719 = vsub.f32 %v693, %v701
        %v720 = vadd.f32 %v716, 1e-05
        %v721 = vadd.f32 %v717, 1e-05
        %v722 = vrsqrt.pop %v720
        %v723 = vrsqrt.pop %v721
        %v724 = vmul.f32 %v718, %v722
        %v725 = vmul.f32 %v719, %v723
        %v726 = vmul.f32 %v724, %v618
        %v727 = vmul.f32 %v725, %v618
        %v728 = vadd.f32 %v726, %v624
        %v729 = vadd.f32 %v727, %v624
        %v730 = vpack.c.bf16 %v729, %v728
        %v731 = vld [vmem:[#allocation13] sm:$0xf]
        %v732 = vld [vmem:[#allocation13 + $0x4] sm:$0xf]
        %v733 = vld [vmem:[#allocation13 + $0x8] sm:$0xf]
        %v734 = vld [vmem:[#allocation13 + $0xc] sm:$0xf]
        %v735 = vlaneseq
        %v736 = vshrl.u32 %v735, 7
        %v737 = vsub.s32 6, %v736
        %v738 = vrot.slane %v487, %v737
        %v743 = vunpack.c.l.b16 %v731
        %v744 = vunpack.c.l.b16 %v732
        %v745 = vunpack.c.l.b16 %v733
        %v746 = vunpack.c.l.b16 %v734
        %v747 = vpack.c.b16 %v744, %v743
        %v748 = vpack.c.b16 %v746, %v745
        %v752 = vsel %vm489, %v730, 0
        %754 = vmatprep.subr.bf16.mxu0 0
        %755 = vmatpush1.bf16.msra.mxu0 0
        %756 = vmatprep.subr.bf16.mxu0 0
        %757 = vmatpush1.bf16.msra.mxu0 0
        %758 = vmatprep.subr.bf16.mxu0 0
        %759 = vmatpush1.bf16.msra.mxu0 0
        %760 = vmatprep.subr.bf16.mxu0 0
        %761 = vmatpush1.bf16.msra.mxu0 0
        %762 = vmatprep.subr.bf16.mxu0 0
        %763 = vmatpush1.bf16.msra.mxu0 0
        %764 = vmatprep.subr.bf16.mxu0 0
        %765 = vmatpush1.bf16.msra.mxu0 0
        %766 = vmatprep.subr.bf16.mxu0 0
        %767 = vmatpush1.bf16.msra.mxu0 %v748
        %768 = vmatprep.subr.bf16.mxu0 0
        %769 = vmatpush1.bf16.msra.mxu0 %v747
        %770 = vmatprep.subr.bf16.mxu0 0
        %771 = vmatpush2.bf16.msra.mxu0 0
        %772 = vmatprep.subr.bf16.mxu0 0
        %773 = vmatpush2.bf16.msra.mxu0 0
        %774 = vmatprep.subr.bf16.mxu0 0
        %775 = vmatpush2.bf16.msra.mxu0 0
        %776 = vmatprep.subr.bf16.mxu0 0
        %777 = vmatpush2.bf16.msra.mxu0 0
        %778 = vmatprep.subr.bf16.mxu0 0
        %779 = vmatpush2.bf16.msra.mxu0 0
        %780 = vmatprep.subr.bf16.mxu0 0
        %781 = vmatpush2.bf16.msra.mxu0 0
        %782 = vmatprep.subr.bf16.mxu0 0
        %783 = vmatpush2.bf16.msra.mxu0 0
        %784 = vmatprep.subr.bf16.mxu0 0
        %785 = vmatpush2.bf16.msra.mxu0 0
        %786 = vmatprep.mubr.bf16.mxu0 0
        %787 = vmatmul.mubr.bf16.gmra.mxu0 %v752
        %v788 = vpop.f32.mrf.mxu0
        %v789 = vadd.f32 %v738, %v788
        %v790 = vpop.f32.mrf.mxu0
        %v791 = vpop.f32.mrf.mxu0
        %v792 = vadd.f32 %v738, %v791
        %v793 = vpop.f32.mrf.mxu0
        %794 = vdwg.mxu0
        %v795 = vpack.c.bf16 %v576, %v576
        %v796 = vpack.c.bf16 %v689, %v686
        %v797 = vpack.c.bf16 %v792, %v789
        %vm798 = vcmask 64512
        %v800 = vsel %vm798, %v795, 0
        %v803 = vsel %vm798, %v796, 0
        %805 = vmatprep.subr.bf16.mxu0 0
        %806 = vmatpush1.bf16.xpose.msra.mxu0 0
        %807 = vmatprep.subr.bf16.mxu0 0
        %808 = vmatpush1.bf16.xpose.msra.mxu0 0
        %809 = vmatprep.subr.bf16.mxu0 0
        %810 = vmatpush1.bf16.xpose.msra.mxu0 0
        %811 = vmatprep.subr.bf16.mxu0 0
        %812 = vmatpush1.bf16.xpose.msra.mxu0 0
        %813 = vmatprep.subr.bf16.mxu0 0
        %814 = vmatpush1.bf16.xpose.msra.mxu0 0
        %815 = vmatprep.subr.bf16.mxu0 0
        %816 = vmatpush1.bf16.xpose.msra.mxu0 0
        %817 = vmatprep.subr.bf16.mxu0 0
        %818 = vmatpush1.bf16.xpose.msra.mxu0 0
        %819 = vmatprep.subr.bf16.mxu0 0
        %820 = vmatpush1.bf16.xpose.msra.mxu0 %v803
        %821 = vmatprep.subr.bf16.mxu0 0
        %822 = vmatpush2.bf16.xpose.msra.mxu0 0
        %823 = vmatprep.subr.bf16.mxu0 0
        %824 = vmatpush2.bf16.xpose.msra.mxu0 0
        %825 = vmatprep.subr.bf16.mxu0 0
        %826 = vmatpush2.bf16.xpose.msra.mxu0 0
        %827 = vmatprep.subr.bf16.mxu0 0
        %828 = vmatpush2.bf16.xpose.msra.mxu0 0
        %829 = vmatprep.subr.bf16.mxu0 0
        %830 = vmatpush2.bf16.xpose.msra.mxu0 0
        %831 = vmatprep.subr.bf16.mxu0 0
        %832 = vmatpush2.bf16.xpose.msra.mxu0 0
        %833 = vmatprep.subr.bf16.mxu0 0
        %834 = vmatpush2.bf16.xpose.msra.mxu0 0
        %835 = vmatprep.subr.bf16.mxu0 0
        %836 = vmatpush2.bf16.xpose.msra.mxu0 0
        %837 = vmatprep.mubr.bf16.mxu0 0
        %838 = vmatmul.mubr.bf16.gmra.mxu0 %v800
        %v839 = vpop.f32.mrf.mxu0
        %v840 = vadd.f32 0.0, %v839
        %v841 = vpop.f32.mrf.mxu0
        %v842 = vpop.f32.mrf.mxu0
        %v843 = vpop.f32.mrf.mxu0
        %844 = vdwg.mxu0
        %vm845 = vcmask 130048
        %v846 = vsel %vm845, %v840, -inf
        %847 = vmax.xlane.f32.xlu0 %v846
        %v848 = vpop.xlane.xlu0 %847
        %v849 = vsub.f32 %v840, %v848
        %v850 = vmul.f32 %v849, 1.442695
        %v851 = vpow.pop %v850
        %v852 = vsel %vm845, %v851, 0.0
        %853 = vadd.xlane.f32.xlu0 %v852
        %v854 = vpop.xlane.xlu0 %853
        %v855 = vrcp.pop %v854
        %v856 = vmul.f32 %v851, %v855
        %v857 = vpack.c.bf16 %v856, %v856
        %v859 = vsel %vm845, %v857, 0
        %861 = vmatprep.subr.bf16.mxu0 0
        %862 = vmatpush1.bf16.msra.mxu0 0
        %863 = vmatprep.subr.bf16.mxu0 0
        %864 = vmatpush1.bf16.msra.mxu0 0
        %865 = vmatprep.subr.bf16.mxu0 0
        %866 = vmatpush1.bf16.msra.mxu0 0
        %867 = vmatprep.subr.bf16.mxu0 0
        %868 = vmatpush1.bf16.msra.mxu0 0
        %869 = vmatprep.subr.bf16.mxu0 0
        %870 = vmatpush1.bf16.msra.mxu0 0
        %871 = vmatprep.subr.bf16.mxu0 0
        %872 = vmatpush1.bf16.msra.mxu0 0
        %873 = vmatprep.subr.bf16.mxu0 0
        %874 = vmatpush1.bf16.msra.mxu0 0
        %875 = vmatprep.subr.bf16.mxu0 0
        %876 = vmatpush1.bf16.msra.mxu0 %v797
        %877 = vmatprep.subr.bf16.mxu0 0
        %878 = vmatpush2.bf16.msra.mxu0 0
        %879 = vmatprep.subr.bf16.mxu0 0
        %880 = vmatpush2.bf16.msra.mxu0 0
        %881 = vmatprep.subr.bf16.mxu0 0
        %882 = vmatpush2.bf16.msra.mxu0 0
        %883 = vmatprep.subr.bf16.mxu0 0
        %884 = vmatpush2.bf16.msra.mxu0 0
        %885 = vmatprep.subr.bf16.mxu0 0
        %886 = vmatpush2.bf16.msra.mxu0 0
        %887 = vmatprep.subr.bf16.mxu0 0
        %888 = vmatpush2.bf16.msra.mxu0 0
        %889 = vmatprep.subr.bf16.mxu0 0
        %890 = vmatpush2.bf16.msra.mxu0 0
        %891 = vmatprep.subr.bf16.mxu0 0
        %892 = vmatpush2.bf16.msra.mxu0 0
        %893 = vmatprep.mubr.bf16.mxu0 0
        %894 = vmatmul.mubr.bf16.gmra.mxu0 %v859
        %v895 = vpop.f32.mrf.mxu0
        %v896 = vadd.f32 0.0, %v895
        %v897 = vpop.f32.mrf.mxu0
        %v898 = vpop.f32.mrf.mxu0
        %v899 = vpop.f32.mrf.mxu0
        %900 = vdwg.mxu0
        %v901 = vpack.c.bf16 %v896, %v896
        %v902 = vld [vmem:[#allocation14] sm:$0xf]
        %904 = vrot.lane.b32.xlu0 %v795, 120
        %v905 = vpop.permute.xlu0 %904
        %907 = vrot.lane.b32.xlu0 %v796, 120
        %v908 = vpop.permute.xlu0 %907
        %v910 = vsel %vm798, %v905, 0
        %v913 = vsel %vm798, %v908, 0
        %915 = vmatprep.subr.bf16.mxu0 0
        %916 = vmatpush1.bf16.xpose.msra.mxu0 0
        %917 = vmatprep.subr.bf16.mxu0 0
        %918 = vmatpush1.bf16.xpose.msra.mxu0 0
        %919 = vmatprep.subr.bf16.mxu0 0
        %920 = vmatpush1.bf16.xpose.msra.mxu0 0
        %921 = vmatprep.subr.bf16.mxu0 0
        %922 = vmatpush1.bf16.xpose.msra.mxu0 0
        %923 = vmatprep.subr.bf16.mxu0 0
        %924 = vmatpush1.bf16.xpose.msra.mxu0 0
        %925 = vmatprep.subr.bf16.mxu0 0
        %926 = vmatpush1.bf16.xpose.msra.mxu0 0
        %927 = vmatprep.subr.bf16.mxu0 0
        %928 = vmatpush1.bf16.xpose.msra.mxu0 0
        %929 = vmatprep.subr.bf16.mxu0 0
        %930 = vmatpush1.bf16.xpose.msra.mxu0 %v913
        %931 = vmatprep.subr.bf16.mxu0 0
        %932 = vmatpush2.bf16.xpose.msra.mxu0 0
        %933 = vmatprep.subr.bf16.mxu0 0
        %934 = vmatpush2.bf16.xpose.msra.mxu0 0
        %935 = vmatprep.subr.bf16.mxu0 0
        %936 = vmatpush2.bf16.xpose.msra.mxu0 0
        %937 = vmatprep.subr.bf16.mxu0 0
        %938 = vmatpush2.bf16.xpose.msra.mxu0 0
        %939 = vmatprep.subr.bf16.mxu0 0
        %940 = vmatpush2.bf16.xpose.msra.mxu0 0
        %941 = vmatprep.subr.bf16.mxu0 0
        %942 = vmatpush2.bf16.xpose.msra.mxu0 0
        %943 = vmatprep.subr.bf16.mxu0 0
        %944 = vmatpush2.bf16.xpose.msra.mxu0 0
        %945 = vmatprep.subr.bf16.mxu0 0
        %946 = vmatpush2.bf16.xpose.msra.mxu0 0
        %947 = vmatprep.mubr.bf16.mxu0 0
        %948 = vmatmul.mubr.bf16.gmra.mxu0 %v910
        %v949 = vpop.f32.mrf.mxu0
        %v950 = vadd.f32 0.0, %v949
        %v951 = vpop.f32.mrf.mxu0
        %v952 = vpop.f32.mrf.mxu0
        %v953 = vpop.f32.mrf.mxu0
        %954 = vdwg.mxu0
        %v955 = vsel %vm845, %v950, -inf
        %956 = vmax.xlane.f32.xlu0 %v955
        %v957 = vpop.xlane.xlu0 %956
        %v958 = vsub.f32 %v950, %v957
        %v959 = vmul.f32 %v958, 1.442695
        %v960 = vpow.pop %v959
        %v961 = vsel %vm845, %v960, 0.0
        %962 = vadd.xlane.f32.xlu0 %v961
        %v963 = vpop.xlane.xlu0 %962
        %v964 = vrcp.pop %v963
        %v965 = vmul.f32 %v960, %v964
        %v966 = vpack.c.bf16 %v965, %v965
        %968 = vrot.lane.b32.xlu0 %v797, 120
        %v969 = vpop.permute.xlu0 %968
        %v972 = vsel %vm845, %v966, 0
        %974 = vmatprep.subr.bf16.mxu0 0
        %975 = vmatpush1.bf16.msra.mxu0 0
        %976 = vmatprep.subr.bf16.mxu0 0
        %977 = vmatpush1.bf16.msra.mxu0 0
        %978 = vmatprep.subr.bf16.mxu0 0
        %979 = vmatpush1.bf16.msra.mxu0 0
        %980 = vmatprep.subr.bf16.mxu0 0
        %981 = vmatpush1.bf16.msra.mxu0 0
        %982 = vmatprep.subr.bf16.mxu0 0
        %983 = vmatpush1.bf16.msra.mxu0 0
        %984 = vmatprep.subr.bf16.mxu0 0
        %985 = vmatpush1.bf16.msra.mxu0 0
        %986 = vmatprep.subr.bf16.mxu0 0
        %987 = vmatpush1.bf16.msra.mxu0 0
        %988 = vmatprep.subr.bf16.mxu0 0
        %989 = vmatpush1.bf16.msra.mxu0 %v969
        %990 = vmatprep.subr.bf16.mxu0 0
        %991 = vmatpush2.bf16.msra.mxu0 0
        %992 = vmatprep.subr.bf16.mxu0 0
        %993 = vmatpush2.bf16.msra.mxu0 0
        %994 = vmatprep.subr.bf16.mxu0 0
        %995 = vmatpush2.bf16.msra.mxu0 0
        %996 = vmatprep.subr.bf16.mxu0 0
        %997 = vmatpush2.bf16.msra.mxu0 0
        %998 = vmatprep.subr.bf16.mxu0 0
        %999 = vmatpush2.bf16.msra.mxu0 0
        %1000 = vmatprep.subr.bf16.mxu0 0
        %1001 = vmatpush2.bf16.msra.mxu0 0
        %1002 = vmatprep.subr.bf16.mxu0 0
        %1003 = vmatpush2.bf16.msra.mxu0 0
        %1004 = vmatprep.subr.bf16.mxu0 0
        %1005 = vmatpush2.bf16.msra.mxu0 0
        %1006 = vmatprep.mubr.bf16.mxu0 0
        %1007 = vmatmul.mubr.bf16.gmra.mxu0 %v972
        %v1008 = vpop.f32.mrf.mxu0
        %v1009 = vadd.f32 0.0, %v1008
        %v1010 = vpop.f32.mrf.mxu0
        %v1011 = vpop.f32.mrf.mxu0
        %v1012 = vpop.f32.mrf.mxu0
        %1013 = vdwg.mxu0
        %v1014 = vpack.c.bf16 %v1009, %v1009
        %v1015 = vld [vmem:[#allocation14 + $0x4] sm:$0xf]
        %v1017 = vsel %vm798, %v1014, 0
        %vm1019 = vcmask 1043456
        %v1021 = vsel %vm1019, %v1015, 0
        %1023 = vmatprep.subr.bf16.mxu0 0
        %1024 = vmatpush1.bf16.msra.mxu0 0
        %1025 = vmatprep.subr.bf16.mxu0 0
        %1026 = vmatpush1.bf16.msra.mxu0 0
        %1027 = vmatprep.subr.bf16.mxu0 0
        %1028 = vmatpush1.bf16.msra.mxu0 0
        %1029 = vmatprep.subr.bf16.mxu0 0
        %1030 = vmatpush1.bf16.msra.mxu0 0
        %1031 = vmatprep.subr.bf16.mxu0 0
        %1032 = vmatpush1.bf16.msra.mxu0 0
        %1033 = vmatprep.subr.bf16.mxu0 0
        %1034 = vmatpush1.bf16.msra.mxu0 0
        %1035 = vmatprep.subr.bf16.mxu0 0
        %1036 = vmatpush1.bf16.msra.mxu0 0
        %1037 = vmatprep.subr.bf16.mxu0 0
        %1038 = vmatpush1.bf16.msra.mxu0 %v1021
        %1039 = vmatprep.subr.bf16.mxu0 0
        %1040 = vmatpush2.bf16.msra.mxu0 0
        %1041 = vmatprep.subr.bf16.mxu0 0
        %1042 = vmatpush2.bf16.msra.mxu0 0
        %1043 = vmatprep.subr.bf16.mxu0 0
        %1044 = vmatpush2.bf16.msra.mxu0 0
        %1045 = vmatprep.subr.bf16.mxu0 0
        %1046 = vmatpush2.bf16.msra.mxu0 0
        %1047 = vmatprep.subr.bf16.mxu0 0
        %1048 = vmatpush2.bf16.msra.mxu0 0
        %1049 = vmatprep.subr.bf16.mxu0 0
        %1050 = vmatpush2.bf16.msra.mxu0 0
        %1051 = vmatprep.subr.bf16.mxu0 0
        %1052 = vmatpush2.bf16.msra.mxu0 0
        %1053 = vmatprep.subr.bf16.mxu0 0
        %1054 = vmatpush2.bf16.msra.mxu0 0
        %1055 = vmatprep.mubr.bf16.mxu0 0
        %1056 = vmatmul.mubr.bf16.gmra.mxu0 %v1017
        %v1057 = vpop.f32.mrf.mxu0
        %v1058 = vadd.f32 0.0, %v1057
        %v1059 = vpop.f32.mrf.mxu0
        %v1060 = vpop.f32.mrf.mxu0
        %v1061 = vpop.f32.mrf.mxu0
        %1062 = vdwg.mxu0
        %v1064 = vsel %vm798, %v901, 0
        %v1067 = vsel %vm1019, %v902, 0
        %1069 = vmatprep.subr.bf16.mxu0 0
        %1070 = vmatpush1.bf16.msra.mxu0 0
        %1071 = vmatprep.subr.bf16.mxu0 0
        %1072 = vmatpush1.bf16.msra.mxu0 0
        %1073 = vmatprep.subr.bf16.mxu0 0
        %1074 = vmatpush1.bf16.msra.mxu0 0
        %1075 = vmatprep.subr.bf16.mxu0 0
        %1076 = vmatpush1.bf16.msra.mxu0 0
        %1077 = vmatprep.subr.bf16.mxu0 0
        %1078 = vmatpush1.bf16.msra.mxu0 0
        %1079 = vmatprep.subr.bf16.mxu0 0
        %1080 = vmatpush1.bf16.msra.mxu0 0
        %1081 = vmatprep.subr.bf16.mxu0 0
        %1082 = vmatpush1.bf16.msra.mxu0 0
        %1083 = vmatprep.subr.bf16.mxu0 0
        %1084 = vmatpush1.bf16.msra.mxu0 %v1067
        %1085 = vmatprep.subr.bf16.mxu0 0
        %1086 = vmatpush2.bf16.msra.mxu0 0
        %1087 = vmatprep.subr.bf16.mxu0 0
        %1088 = vmatpush2.bf16.msra.mxu0 0
        %1089 = vmatprep.subr.bf16.mxu0 0
        %1090 = vmatpush2.bf16.msra.mxu0 0
        %1091 = vmatprep.subr.bf16.mxu0 0
        %1092 = vmatpush2.bf16.msra.mxu0 0
        %1093 = vmatprep.subr.bf16.mxu0 0
        %1094 = vmatpush2.bf16.msra.mxu0 0
        %1095 = vmatprep.subr.bf16.mxu0 0
        %1096 = vmatpush2.bf16.msra.mxu0 0
        %1097 = vmatprep.subr.bf16.mxu0 0
        %1098 = vmatpush2.bf16.msra.mxu0 0
        %1099 = vmatprep.subr.bf16.mxu0 0
        %1100 = vmatpush2.bf16.msra.mxu0 0
        %1101 = vmatprep.mubr.bf16.mxu0 0
        %1102 = vmatmul.mubr.bf16.gmra.mxu0 %v1064
        %v1103 = vpop.f32.mrf.mxu0
        %v1104 = vadd.f32 %v1058, %v1103
        %v1105 = vpop.f32.mrf.mxu0
        %v1106 = vpop.f32.mrf.mxu0
        %v1107 = vpop.f32.mrf.mxu0
        %1108 = vdwg.mxu0
        %1109 = vrot.lane.b32.xlu0 %v795, 112
        %v1110 = vpop.permute.xlu0 %1109
        %1111 = vrot.lane.b32.xlu0 %v796, 112
        %v1112 = vpop.permute.xlu0 %1111
        %v1114 = vsel %vm798, %v1110, 0
        %v1117 = vsel %vm798, %v1112, 0
        %1119 = vmatprep.subr.bf16.mxu0 0
        %1120 = vmatpush1.bf16.xpose.msra.mxu0 0
        %1121 = vmatprep.subr.bf16.mxu0 0
        %1122 = vmatpush1.bf16.xpose.msra.mxu0 0
        %1123 = vmatprep.subr.bf16.mxu0 0
        %1124 = vmatpush1.bf16.xpose.msra.mxu0 0
        %1125 = vmatprep.subr.bf16.mxu0 0
        %1126 = vmatpush1.bf16.xpose.msra.mxu0 0
        %1127 = vmatprep.subr.bf16.mxu0 0
        %1128 = vmatpush1.bf16.xpose.msra.mxu0 0
        %1129 = vmatprep.subr.bf16.mxu0 0
        %1130 = vmatpush1.bf16.xpose.msra.mxu0 0
        %1131 = vmatprep.subr.bf16.mxu0 0
        %1132 = vmatpush1.bf16.xpose.msra.mxu0 0
        %1133 = vmatprep.subr.bf16.mxu0 0
        %1134 = vmatpush1.bf16.xpose.msra.mxu0 %v1117
        %1135 = vmatprep.subr.bf16.mxu0 0
        %1136 = vmatpush2.bf16.xpose.msra.mxu0 0
        %1137 = vmatprep.subr.bf16.mxu0 0
        %1138 = vmatpush2.bf16.xpose.msra.mxu0 0
        %1139 = vmatprep.subr.bf16.mxu0 0
        %1140 = vmatpush2.bf16.xpose.msra.mxu0 0
        %1141 = vmatprep.subr.bf16.mxu0 0
        %1142 = vmatpush2.bf16.xpose.msra.mxu0 0
        %1143 = vmatprep.subr.bf16.mxu0 0
        %1144 = vmatpush2.bf16.xpose.msra.mxu0 0
        %1145 = vmatprep.subr.bf16.mxu0 0
        %1146 = vmatpush2.bf16.xpose.msra.mxu0 0
        %1147 = vmatprep.subr.bf16.mxu0 0
        %1148 = vmatpush2.bf16.xpose.msra.mxu0 0
        %1149 = vmatprep.subr.bf16.mxu0 0
        %1150 = vmatpush2.bf16.xpose.msra.mxu0 0
        %1151 = vmatprep.mubr.bf16.mxu0 0
        %1152 = vmatmul.mubr.bf16.gmra.mxu0 %v1114
        %v1153 = vpop.f32.mrf.mxu0
        %v1154 = vadd.f32 0.0, %v1153
        %v1155 = vpop.f32.mrf.mxu0
        %v1156 = vpop.f32.mrf.mxu0
        %v1157 = vpop.f32.mrf.mxu0
        %1158 = vdwg.mxu0
        %v1159 = vsel %vm845, %v1154, -inf
        %1160 = vmax.xlane.f32.xlu0 %v1159
        %v1161 = vpop.xlane.xlu0 %1160
        %v1162 = vsub.f32 %v1154, %v1161
        %v1163 = vmul.f32 %v1162, 1.442695
        %v1164 = vpow.pop %v1163
        %v1165 = vsel %vm845, %v1164, 0.0
        %1166 = vadd.xlane.f32.xlu0 %v1165
        %v1167 = vpop.xlane.xlu0 %1166
        %v1168 = vrcp.pop %v1167
        %v1169 = vmul.f32 %v1164, %v1168
        %v1170 = vpack.c.bf16 %v1169, %v1169
        %1171 = vrot.lane.b32.xlu0 %v797, 112
        %v1172 = vpop.permute.xlu0 %1171
        %v1175 = vsel %vm845, %v1170, 0
        %1177 = vmatprep.subr.bf16.mxu0 0
        %1178 = vmatpush1.bf16.msra.mxu0 0
        %1179 = vmatprep.subr.bf16.mxu0 0
        %1180 = vmatpush1.bf16.msra.mxu0 0
        %1181 = vmatprep.subr.bf16.mxu0 0
        %1182 = vmatpush1.bf16.msra.mxu0 0
        %1183 = vmatprep.subr.bf16.mxu0 0
        %1184 = vmatpush1.bf16.msra.mxu0 0
        %1185 = vmatprep.subr.bf16.mxu0 0
        %1186 = vmatpush1.bf16.msra.mxu0 0
        %1187 = vmatprep.subr.bf16.mxu0 0
        %1188 = vmatpush1.bf16.msra.mxu0 0
        %1189 = vmatprep.subr.bf16.mxu0 0
        %1190 = vmatpush1.bf16.msra.mxu0 0
        %1191 = vmatprep.subr.bf16.mxu0 0
        %1192 = vmatpush1.bf16.msra.mxu0 %v1172
        %1193 = vmatprep.subr.bf16.mxu0 0
        %1194 = vmatpush2.bf16.msra.mxu0 0
        %1195 = vmatprep.subr.bf16.mxu0 0
        %1196 = vmatpush2.bf16.msra.mxu0 0
        %1197 = vmatprep.subr.bf16.mxu0 0
        %1198 = vmatpush2.bf16.msra.mxu0 0
        %1199 = vmatprep.subr.bf16.mxu0 0
        %1200 = vmatpush2.bf16.msra.mxu0 0
        %1201 = vmatprep.subr.bf16.mxu0 0
        %1202 = vmatpush2.bf16.msra.mxu0 0
        %1203 = vmatprep.subr.bf16.mxu0 0
        %1204 = vmatpush2.bf16.msra.mxu0 0
        %1205 = vmatprep.subr.bf16.mxu0 0
        %1206 = vmatpush2.bf16.msra.mxu0 0
        %1207 = vmatprep.subr.bf16.mxu0 0
        %1208 = vmatpush2.bf16.msra.mxu0 0
        %1209 = vmatprep.mubr.bf16.mxu0 0
        %1210 = vmatmul.mubr.bf16.gmra.mxu0 %v1175
        %v1211 = vpop.f32.mrf.mxu0
        %v1212 = vadd.f32 0.0, %v1211
        %v1213 = vpop.f32.mrf.mxu0
        %v1214 = vpop.f32.mrf.mxu0
        %v1215 = vpop.f32.mrf.mxu0
        %1216 = vdwg.mxu0
        %v1217 = vpack.c.bf16 %v1212, %v1212
        %v1218 = vld [vmem:[#allocation14 + $0x8] sm:$0xf]
        %v1220 = vsel %vm798, %v1217, 0
        %v1223 = vsel %vm1019, %v1218, 0
        %1225 = vmatprep.subr.bf16.mxu0 0
        %1226 = vmatpush1.bf16.msra.mxu0 0
        %1227 = vmatprep.subr.bf16.mxu0 0
        %1228 = vmatpush1.bf16.msra.mxu0 0
        %1229 = vmatprep.subr.bf16.mxu0 0
        %1230 = vmatpush1.bf16.msra.mxu0 0
        %1231 = vmatprep.subr.bf16.mxu0 0
        %1232 = vmatpush1.bf16.msra.mxu0 0
        %1233 = vmatprep.subr.bf16.mxu0 0
        %1234 = vmatpush1.bf16.msra.mxu0 0
        %1235 = vmatprep.subr.bf16.mxu0 0
        %1236 = vmatpush1.bf16.msra.mxu0 0
        %1237 = vmatprep.subr.bf16.mxu0 0
        %1238 = vmatpush1.bf16.msra.mxu0 0
        %1239 = vmatprep.subr.bf16.mxu0 0
        %1240 = vmatpush1.bf16.msra.mxu0 %v1223
        %1241 = vmatprep.subr.bf16.mxu0 0
        %1242 = vmatpush2.bf16.msra.mxu0 0
        %1243 = vmatprep.subr.bf16.mxu0 0
        %1244 = vmatpush2.bf16.msra.mxu0 0
        %1245 = vmatprep.subr.bf16.mxu0 0
        %1246 = vmatpush2.bf16.msra.mxu0 0
        %1247 = vmatprep.subr.bf16.mxu0 0
        %1248 = vmatpush2.bf16.msra.mxu0 0
        %1249 = vmatprep.subr.bf16.mxu0 0
        %1250 = vmatpush2.bf16.msra.mxu0 0
        %1251 = vmatprep.subr.bf16.mxu0 0
        %1252 = vmatpush2.bf16.msra.mxu0 0
        %1253 = vmatprep.subr.bf16.mxu0 0
        %1254 = vmatpush2.bf16.msra.mxu0 0
        %1255 = vmatprep.subr.bf16.mxu0 0
        %1256 = vmatpush2.bf16.msra.mxu0 0
        %1257 = vmatprep.mubr.bf16.mxu0 0
        %1258 = vmatmul.mubr.bf16.gmra.mxu0 %v1220
        %v1259 = vpop.f32.mrf.mxu0
        %v1260 = vadd.f32 0.0, %v1259
        %v1261 = vpop.f32.mrf.mxu0
        %v1262 = vpop.f32.mrf.mxu0
        %v1263 = vpop.f32.mrf.mxu0
        %1264 = vdwg.mxu0
        %v1265 = vadd.f32 %v1104, %v1260
        %1266 = vrot.lane.b32.xlu0 %v795, 104
        %v1267 = vpop.permute.xlu0 %1266
        %1268 = vrot.lane.b32.xlu0 %v796, 104
        %v1269 = vpop.permute.xlu0 %1268
        %v1271 = vsel %vm798, %v1267, 0
        %v1274 = vsel %vm798, %v1269, 0
        %1276 = vmatprep.subr.bf16.mxu0 0
        %1277 = vmatpush1.bf16.xpose.msra.mxu0 0
        %1278 = vmatprep.subr.bf16.mxu0 0
        %1279 = vmatpush1.bf16.xpose.msra.mxu0 0
        %1280 = vmatprep.subr.bf16.mxu0 0
        %1281 = vmatpush1.bf16.xpose.msra.mxu0 0
        %1282 = vmatprep.subr.bf16.mxu0 0
        %1283 = vmatpush1.bf16.xpose.msra.mxu0 0
        %1284 = vmatprep.subr.bf16.mxu0 0
        %1285 = vmatpush1.bf16.xpose.msra.mxu0 0
        %1286 = vmatprep.subr.bf16.mxu0 0
        %1287 = vmatpush1.bf16.xpose.msra.mxu0 0
        %1288 = vmatprep.subr.bf16.mxu0 0
        %1289 = vmatpush1.bf16.xpose.msra.mxu0 0
        %1290 = vmatprep.subr.bf16.mxu0 0
        %1291 = vmatpush1.bf16.xpose.msra.mxu0 %v1274
        %1292 = vmatprep.subr.bf16.mxu0 0
        %1293 = vmatpush2.bf16.xpose.msra.mxu0 0
        %1294 = vmatprep.subr.bf16.mxu0 0
        %1295 = vmatpush2.bf16.xpose.msra.mxu0 0
        %1296 = vmatprep.subr.bf16.mxu0 0
        %1297 = vmatpush2.bf16.xpose.msra.mxu0 0
        %1298 = vmatprep.subr.bf16.mxu0 0
        %1299 = vmatpush2.bf16.xpose.msra.mxu0 0
        %1300 = vmatprep.subr.bf16.mxu0 0
        %1301 = vmatpush2.bf16.xpose.msra.mxu0 0
        %1302 = vmatprep.subr.bf16.mxu0 0
        %1303 = vmatpush2.bf16.xpose.msra.mxu0 0
        %1304 = vmatprep.subr.bf16.mxu0 0
        %1305 = vmatpush2.bf16.xpose.msra.mxu0 0
        %1306 = vmatprep.subr.bf16.mxu0 0
        %1307 = vmatpush2.bf16.xpose.msra.mxu0 0
        %1308 = vmatprep.mubr.bf16.mxu0 0
        %1309 = vmatmul.mubr.bf16.gmra.mxu0 %v1271
        %v1310 = vpop.f32.mrf.mxu0
        %v1311 = vadd.f32 0.0, %v1310
        %v1312 = vpop.f32.mrf.mxu0
        %v1313 = vpop.f32.mrf.mxu0
        %v1314 = vpop.f32.mrf.mxu0
        %1315 = vdwg.mxu0
        %v1316 = vsel %vm845, %v1311, -inf
        %1317 = vmax.xlane.f32.xlu0 %v1316
        %v1318 = vpop.xlane.xlu0 %1317
        %v1319 = vsub.f32 %v1311, %v1318
        %v1320 = vmul.f32 %v1319, 1.442695
        %v1321 = vpow.pop %v1320
        %v1322 = vsel %vm845, %v1321, 0.0
        %1323 = vadd.xlane.f32.xlu0 %v1322
        %v1324 = vpop.xlane.xlu0 %1323
        %v1325 = vrcp.pop %v1324
        %v1326 = vmul.f32 %v1321, %v1325
        %v1327 = vpack.c.bf16 %v1326, %v1326
        %1328 = vrot.lane.b32.xlu0 %v797, 104
        %v1329 = vpop.permute.xlu0 %1328
        %v1332 = vsel %vm845, %v1327, 0
        %1334 = vmatprep.subr.bf16.mxu0 0
        %1335 = vmatpush1.bf16.msra.mxu0 0
        %1336 = vmatprep.subr.bf16.mxu0 0
        %1337 = vmatpush1.bf16.msra.mxu0 0
        %1338 = vmatprep.subr.bf16.mxu0 0
        %1339 = vmatpush1.bf16.msra.mxu0 0
        %1340 = vmatprep.subr.bf16.mxu0 0
        %1341 = vmatpush1.bf16.msra.mxu0 0
        %1342 = vmatprep.subr.bf16.mxu0 0
        %1343 = vmatpush1.bf16.msra.mxu0 0
        %1344 = vmatprep.subr.bf16.mxu0 0
        %1345 = vmatpush1.bf16.msra.mxu0 0
        %1346 = vmatprep.subr.bf16.mxu0 0
        %1347 = vmatpush1.bf16.msra.mxu0 0
        %1348 = vmatprep.subr.bf16.mxu0 0
        %1349 = vmatpush1.bf16.msra.mxu0 %v1329
        %1350 = vmatprep.subr.bf16.mxu0 0
        %1351 = vmatpush2.bf16.msra.mxu0 0
        %1352 = vmatprep.subr.bf16.mxu0 0
        %1353 = vmatpush2.bf16.msra.mxu0 0
        %1354 = vmatprep.subr.bf16.mxu0 0
        %1355 = vmatpush2.bf16.msra.mxu0 0
        %1356 = vmatprep.subr.bf16.mxu0 0
        %1357 = vmatpush2.bf16.msra.mxu0 0
        %1358 = vmatprep.subr.bf16.mxu0 0
        %1359 = vmatpush2.bf16.msra.mxu0 0
        %1360 = vmatprep.subr.bf16.mxu0 0
        %1361 = vmatpush2.bf16.msra.mxu0 0
        %1362 = vmatprep.subr.bf16.mxu0 0
        %1363 = vmatpush2.bf16.msra.mxu0 0
        %1364 = vmatprep.subr.bf16.mxu0 0
        %1365 = vmatpush2.bf16.msra.mxu0 0
        %1366 = vmatprep.mubr.bf16.mxu0 0
        %1367 = vmatmul.mubr.bf16.gmra.mxu0 %v1332
        %v1368 = vpop.f32.mrf.mxu0
        %v1369 = vadd.f32 0.0, %v1368
        %v1370 = vpop.f32.mrf.mxu0
        %v1371 = vpop.f32.mrf.mxu0
        %v1372 = vpop.f32.mrf.mxu0
        %1373 = vdwg.mxu0
        %v1374 = vpack.c.bf16 %v1369, %v1369
        %v1375 = vld [vmem:[#allocation14 + $0xc] sm:$0xf]
        %v1377 = vsel %vm798, %v1374, 0
        %v1380 = vsel %vm1019, %v1375, 0
        %1382 = vmatprep.subr.bf16.mxu0 0
        %1383 = vmatpush1.bf16.msra.mxu0 0
        %1384 = vmatprep.subr.bf16.mxu0 0
        %1385 = vmatpush1.bf16.msra.mxu0 0
        %1386 = vmatprep.subr.bf16.mxu0 0
        %1387 = vmatpush1.bf16.msra.mxu0 0
        %1388 = vmatprep.subr.bf16.mxu0 0
        %1389 = vmatpush1.bf16.msra.mxu0 0
        %1390 = vmatprep.subr.bf16.mxu0 0
        %1391 = vmatpush1.bf16.msra.mxu0 0
        %1392 = vmatprep.subr.bf16.mxu0 0
        %1393 = vmatpush1.bf16.msra.mxu0 0
        %1394 = vmatprep.subr.bf16.mxu0 0
        %1395 = vmatpush1.bf16.msra.mxu0 0
        %1396 = vmatprep.subr.bf16.mxu0 0
        %1397 = vmatpush1.bf16.msra.mxu0 %v1380
        %1398 = vmatprep.subr.bf16.mxu0 0
        %1399 = vmatpush2.bf16.msra.mxu0 0
        %1400 = vmatprep.subr.bf16.mxu0 0
        %1401 = vmatpush2.bf16.msra.mxu0 0
        %1402 = vmatprep.subr.bf16.mxu0 0
        %1403 = vmatpush2.bf16.msra.mxu0 0
        %1404 = vmatprep.subr.bf16.mxu0 0
        %1405 = vmatpush2.bf16.msra.mxu0 0
        %1406 = vmatprep.subr.bf16.mxu0 0
        %1407 = vmatpush2.bf16.msra.mxu0 0
        %1408 = vmatprep.subr.bf16.mxu0 0
        %1409 = vmatpush2.bf16.msra.mxu0 0
        %1410 = vmatprep.subr.bf16.mxu0 0
        %1411 = vmatpush2.bf16.msra.mxu0 0
        %1412 = vmatprep.subr.bf16.mxu0 0
        %1413 = vmatpush2.bf16.msra.mxu0 0
        %1414 = vmatprep.mubr.bf16.mxu0 0
        %1415 = vmatmul.mubr.bf16.gmra.mxu0 %v1377
        %v1416 = vpop.f32.mrf.mxu0
        %v1417 = vadd.f32 0.0, %v1416
        %v1418 = vpop.f32.mrf.mxu0
        %v1419 = vpop.f32.mrf.mxu0
        %v1420 = vpop.f32.mrf.mxu0
        %1421 = vdwg.mxu0
        %v1422 = vadd.f32 %v1265, %v1417
        %v1423 = vlaneseq
        %v1424 = vshrl.u32 %v1423, 7
        %v1425 = vsub.s32 7, %v1424
        %v1426 = vrot.slane %v487, %v1425
        %v1427 = vadd.f32 %v1422, %v1426
        %1428 = vst.msk [vmem:[%s485] sm:$0xff] %vm489, %v1427
        %s1429 = sand.u32 %s238, 1
        %s1430 = scalar_lea.sflag [#allocation4], %s1429
        %s1431 = sand.u32 %s238, 1
        %s1432 = smul.addr %s1431, 8
        %s1433 = scalar_lea.vmem [#allocation16], %s1432
        // Predicated region
        $region85: #{tpu_custom_call.1} parent=51 // pred_check
          %p1434 = pneg %p248
        $region86: #{tpu_custom_call.1} parent=51 // pred_check_branch
          %1436 = sbr.rel (%p1434) target = $region88
        $region87: #{tpu_custom_call.1} parent=51 // pred_region
          %s1438 = ssub.s32 128, 128
          %1439 = vsyncadd %s1430, %s1438
          %s1440 = sadd.s32 %s36, %s35
          %s1441 = smul.addr %s1440, 128
          %s1442 = scalar_lea.hbm %s8, %s1441
          %s1444 = sshll.u32 %s1433, 4
          %s1445 = int_to_ptr.vmem [resolvable:$true] %s1444
          %1447 = dma.vmem_to_hbm [thread:$0]  %s1445, 128, %s1442, %s1430
        $region88: #{tpu_custom_call.1} parent=51 // pred_fallthru
          _
      $region52: #{tpu_custom_call.1} parent=5 // pred_fallthru
        _
      %p1448 = scmp.le.s32.totalorder 2, %s26
      // Predicated region
      $region89: #{tpu_custom_call.1} parent=5 // pred_check
        %p1449 = pneg %p1448
      $region90: #{tpu_custom_call.1} parent=5 // pred_check_branch
        %1451 = sbr.rel (%p1449) target = $region92
      $region91: #{tpu_custom_call.1} parent=5 // pred_region
        %s1452 = ssub.s32 %s26, 2
        // Predicated region
        $region93: #{tpu_custom_call.1} parent=91 // pred_check
          %p1453 = pneg %p254
        $region94: #{tpu_custom_call.1} parent=91 // pred_check_branch
          %1455 = sbr.rel (%p1453) target = $region96
        $region95: #{tpu_custom_call.1} parent=91 // pred_region
          %s1456 = sand.u32 %s239, 1
          %s1457 = scalar_lea.sflag [#allocation4], %s1456
          %s1458 = sand.u32 %s239, 1
          %s1459 = smul.addr %s1458, 8
          %s1460 = scalar_lea.vmem [#allocation16], %s1459
          %1461 = dma.done %s1457, 128
        $region96: #{tpu_custom_call.1} parent=91 // pred_fallthru
          _
      $region92: #{tpu_custom_call.1} parent=5 // pred_fallthru
        _
    $region6: #{tpu_custom_call.1} parent=1 // loop_footer
      %s30 = sadd.s32 1, %s26
    $region7: #{tpu_custom_call.1} parent=1 // loop_footer_branch
      %25 = sbr.rel target = $region3
    $region8: #{tpu_custom_call.1} parent=1 // loop_exit
      _
    %1462 = vsyncpa [#allocation3], 1
    %s1463 = scalar_lea.sflag [#allocation3], 1
    %1464 = vsyncpa %s1463, 1
    %1465 = vsyncpa [#allocation6], 1
    %s1466 = scalar_lea.sflag [#allocation6], 1
    %1467 = vsyncpa %s1466, 1
    %1468 = vsyncpa [#allocation9], 1
    %1469 = vsyncpa [#allocation12], 1
    %1470 = vsyncpa [#allocation15], 1
    %1471 = vsyncpa [#allocation4], 1
    %s1472 = scalar_lea.sflag [#allocation4], 1
    %1473 = vsyncpa %s1472, 1

// kernel: tpu_custom_call.1
$region0: #{tpu_custom_call.1}
  #allocation0 [shape = 'u32[]', space=smem, size = 0x4, offset = 0x4, fixed_abs, tag = 'smem constant byte address 0x4 - core index']
  #allocation1 [shape = 'u32[144,128]{1,0:T(1,128)}', space=vmem, size = 0x12000, scoped, tag = 'internal scratch']
  %s0 = inlined_call_operand.hbm [shape: f32[2,8,32], index: 0, kind: input, shape index: {}]
  %s1 = inlined_call_operand.hbm [shape: f32[2,16,32], index: 1, kind: input, shape index: {}]
  %s2 = inlined_call_operand.hbm [shape: f32[2,16,32], index: 2, kind: input, shape index: {}]
  %s3 = inlined_call_operand.hbm [shape: f32[8,32], index: 3, kind: input, shape index: {}]
  %s4 = inlined_call_operand.hbm [shape: bf16[32,32], index: 4, kind: input, shape index: {}]
  %s5 = inlined_call_operand.hbm [shape: bf16[32,32], index: 5, kind: input, shape index: {}]
  %s6 = inlined_call_operand.hbm [shape: bf16[32,32], index: 6, kind: input, shape index: {}]
  %s7 = inlined_call_operand.hbm [shape: bf16[32,32], index: 7, kind: input, shape index: {}]
  %s8 = inlined_call_operand.hbm [shape: f32[2,8,32], index: 8, kind: output, shape index: {}]
  %s9 = sld [smem:[#allocation0]]
  $region97: #{tpu_custom_call.1} parent=0
    _
  %s11 = ssub.s32 1, %s9
  %s12 = scalar_select 0, %s11, %s9
  $region1: #{tpu_custom_call.1} parent=0
    #allocation2 [shape = 'u8[8192]{0}', space=vmem, size = 0x2000, scoped, tag = 'input window, operand 0']
    #allocation3 [shape = 's32[2]{0}', space=sflag, size = 0x8, scoped, tag = 'scoped memory for tpu_custom_call.1']
    #allocation4 [shape = 's32[2]{0}', space=sflag, size = 0x8, scoped, tag = 'scoped memory for tpu_custom_call.1']
    #allocation5 [shape = 'u8[16384]{0}', space=vmem, size = 0x4000, scoped, tag = 'input window, operand 1']
    #allocation6 [shape = 's32[2]{0}', space=sflag, size = 0x8, scoped, tag = 'scoped memory for tpu_custom_call.1']
    #allocation7 [shape = 'u8[16384]{0}', space=vmem, size = 0x4000, scoped, tag = 'input window, operand 2']
    #allocation8 [shape = 'u8[4096]{0}', space=vmem, size = 0x1000, scoped, tag = 'input window, operand 3, single buffered']
    #allocation9 [shape = 's32[1]{0}', space=sflag, size = 0x4, scoped, tag = 'scoped memory for tpu_custom_call.1']
    #allocation10 [shape = 'u8[8192]{0}', space=vmem, size = 0x2000, scoped, tag = 'input window, operand 4, single buffered']
    #allocation11 [shape = 'u8[8192]{0}', space=vmem, size = 0x2000, scoped, tag = 'input window, operand 5, single buffered']
    #allocation12 [shape = 's32[1]{0}', space=sflag, size = 0x4, scoped, tag = 'scoped memory for tpu_custom_call.1']
    #allocation13 [shape = 'u8[8192]{0}', space=vmem, size = 0x2000, scoped, tag = 'input window, operand 6, single buffered']
    #allocation14 [shape = 'u8[8192]{0}', space=vmem, size = 0x2000, scoped, tag = 'input window, operand 7, single buffered']
    #allocation15 [shape = 's32[1]{0}', space=sflag, size = 0x4, scoped, tag = 'scoped memory for tpu_custom_call.1']
    #allocation16 [shape = 'u8[8192]{0}', space=vmem, size = 0x2000, scoped, tag = 'output window, operand 0']
    %13 = vsyncpa [#allocation3], 0
    %s14 = scalar_lea.sflag [#allocation3], 1
    %15 = vsyncpa %s14, 0
    %16 = vsyncpa [#allocation6], 0
    %s17 = scalar_lea.sflag [#allocation6], 1
    %18 = vsyncpa %s17, 0
    %19 = vsyncpa [#allocation9], 0
    %20 = vsyncpa [#allocation12], 0
    %21 = vsyncpa [#allocation15], 0
    %22 = vsyncpa [#allocation4], 0
    %s23 = scalar_lea.sflag [#allocation4], 1
    %24 = vsyncpa %s23, 0
    loop: start=0, step=1, limit=4
    $region2: #{tpu_custom_call.1} parent=1 // loop_pre_header
      _
    $region3: #{tpu_custom_call.1} parent=1 // loop_header
      %s26 = sphi 0, %s30
      %p27 = scmp.ge.s32.totalorder %s26, 4
      %s33 = sphi 0, %s45
      %s34 = sphi 0, %s41
      %s35 = sphi 0, %s33
      %s36 = sphi 0, %s34
      %s37 = sphi 0, %s35
      %s38 = sphi 0, %s36
      %s50 = sphi 0, %s52
      %s53 = sphi 0, %s50
      %s54 = sphi 0, %s53
      %s70 = sphi 0, %s54
      %s76 = sphi 0, %s78
      %s79 = sphi 0, %s76
      %s80 = sphi 0, %s79
      %s96 = sphi 0, %s80
      %s102 = sphi 0, %s104
      %s105 = sphi 0, %s102
      %s106 = sphi 0, %s105
      %s122 = sphi 0, %s106
      %s126 = sphi 0, %s126
      %s128 = sphi 0, %s126
      %s129 = sphi 0, %s128
      %s143 = sphi 0, %s129
      %s147 = sphi 0, %s147
      %s149 = sphi 0, %s147
      %s150 = sphi 0, %s149
      %s164 = sphi 0, %s150
      %s168 = sphi 0, %s168
      %s170 = sphi 0, %s168
      %s171 = sphi 0, %s170
      %s185 = sphi 0, %s171
      %s189 = sphi 0, %s189
      %s191 = sphi 0, %s189
      %s192 = sphi 0, %s191
      %s206 = sphi 0, %s192
      %s210 = sphi 0, %s210
      %s212 = sphi 0, %s210
      %s213 = sphi 0, %s212
      %s227 = sphi 0, %s213
      %s235 = sphi 0, %s237
      %s238 = sphi 0, %s235
      %s239 = sphi 0, %s238
      %s255 = sphi 0, %s239
    $region4: #{tpu_custom_call.1} parent=1 // loop_header_branch
      %29 = sbr.rel (%p27) target = $region8
    $region5: #{tpu_custom_call.1} parent=1 // loop_body
      %s31 = ssub.s32 %s26, 1
      %s32 = ssub.s32 %s26, 2
      %s39 = sadd.s32 1, %s34
      %p40 = scmp.ge.s32.totalorder %s39, 1
      %s41 = scalar_select %p40, 0, %s39
      %s42 = sadd.s32 1, %s33
      %s43 = scalar_select %p40, %s42, %s33
      %p44 = scmp.ge.s32.totalorder %s43, 2
      %s45 = scalar_select %p44, 0, %s43
      %s46 = ssub.s32 %s33, %s45
      %s47 = ssub.s32 %s34, %s41
      %s48 = sor.u32 %s46, %s47
      %p49 = scmp.eq.s32.totalorder %s48, 0
      %s51 = sadd.s32 %s50, 1
      %s52 = scalar_select %p49, %s50, %s51
      %p55 = pneg %p49
      %p56 = scmp.eq.s32.totalorder %s26, 1
      %p57 = por %p55, %p56
      %p58 = scmp.ne.s32.totalorder %s50, %s53
      %p59 = scmp.eq.s32.totalorder %s26, 0
      %p60 = por %p58, %p59
      %p61 = scmp.ne.s32.totalorder %s50, %s53
      %p62 = scmp.eq.s32.totalorder %s31, 1
      %p63 = por %p61, %p62
      %p64 = scmp.ne.s32.totalorder %s53, %s54
      %p65 = scmp.eq.s32.totalorder %s31, 0
      %p66 = por %p64, %p65
      %p67 = scmp.ne.s32.totalorder %s53, %s54
      %p68 = scmp.eq.s32.totalorder %s32, 1
      %p69 = por %p67, %p68
      %p71 = scmp.ne.s32.totalorder %s54, %s70
      %p72 = scmp.eq.s32.totalorder %s32, 0
      %p73 = por %p71, %p72
      %s74 = ssub.s32 %s33, %s45
      %p75 = scmp.eq.s32.totalorder %s74, 0
      %s77 = sadd.s32 %s76, 1
      %s78 = scalar_select %p75, %s76, %s77
      %p81 = pneg %p75
      %p82 = scmp.eq.s32.totalorder %s26, 1
      %p83 = por %p81, %p82
      %p84 = scmp.ne.s32.totalorder %s76, %s79
      %p85 = scmp.eq.s32.totalorder %s26, 0
      %p86 = por %p84, %p85
      %p87 = scmp.ne.s32.totalorder %s76, %s79
      %p88 = scmp.eq.s32.totalorder %s31, 1
      %p89 = por %p87, %p88
      %p90 = scmp.ne.s32.totalorder %s79, %s80
      %p91 = scmp.eq.s32.totalorder %s31, 0
      %p92 = por %p90, %p91
      %p93 = scmp.ne.s32.totalorder %s79, %s80
      %p94 = scmp.eq.s32.totalorder %s32, 1
      %p95 = por %p93, %p94
      %p97 = scmp.ne.s32.totalorder %s80, %s96
      %p98 = scmp.eq.s32.totalorder %s32, 0
      %p99 = por %p97, %p98
      %s100 = ssub.s32 %s33, %s45
      %p101 = scmp.eq.s32.totalorder %s100, 0
      %s103 = sadd.s32 %s102, 1
      %s104 = scalar_select %p101, %s102, %s103
      %p107 = pneg %p101
      %p108 = scmp.eq.s32.totalorder %s26, 1
      %p109 = por %p107, %p108
      %p110 = scmp.ne.s32.totalorder %s102, %s105
      %p111 = scmp.eq.s32.totalorder %s26, 0
      %p112 = por %p110, %p111
      %p113 = scmp.ne.s32.totalorder %s102, %s105
      %p114 = scmp.eq.s32.totalorder %s31, 1
      %p115 = por %p113, %p114
      %p116 = scmp.ne.s32.totalorder %s105, %s106
      %p117 = scmp.eq.s32.totalorder %s31, 0
      %p118 = por %p116, %p117
      %p119 = scmp.ne.s32.totalorder %s105, %s106
      %p120 = scmp.eq.s32.totalorder %s32, 1
      %p121 = por %p119, %p120
      %p123 = scmp.ne.s32.totalorder %s106, %s122
      %p124 = scmp.eq.s32.totalorder %s32, 0
      %p125 = por %p123, %p124
      %s127 = sadd.s32 %s126, 1
      %p130 = scmp.eq.s32.totalorder %s26, 1
      %p131 = scmp.ne.s32.totalorder %s126, %s128
      %p132 = scmp.eq.s32.totalorder %s26, 0
      %p133 = por %p131, %p132
      %p134 = scmp.ne.s32.totalorder %s126, %s128
      %p135 = scmp.eq.s32.totalorder %s31, 1
      %p136 = por %p134, %p135
      %p137 = scmp.ne.s32.totalorder %s128, %s129
      %p138 = scmp.eq.s32.totalorder %s31, 0
      %p139 = por %p137, %p138
      %p140 = scmp.ne.s32.totalorder %s128, %s129
      %p141 = scmp.eq.s32.totalorder %s32, 1
      %p142 = por %p140, %p141
      %p144 = scmp.ne.s32.totalorder %s129, %s143
      %p145 = scmp.eq.s32.totalorder %s32, 0
      %p146 = por %p144, %p145
      %s148 = sadd.s32 %s147, 1
      %p151 = scmp.eq.s32.totalorder %s26, 1
      %p152 = scmp.ne.s32.totalorder %s147, %s149
      %p153 = scmp.eq.s32.totalorder %s26, 0
      %p154 = por %p152, %p153
      %p155 = scmp.ne.s32.totalorder %s147, %s149
      %p156 = scmp.eq.s32.totalorder %s31, 1
      %p157 = por %p155, %p156
      %p158 = scmp.ne.s32.totalorder %s149, %s150
      %p159 = scmp.eq.s32.totalorder %s31, 0
      %p160 = por %p158, %p159
      %p161 = scmp.ne.s32.totalorder %s149, %s150
      %p162 = scmp.eq.s32.totalorder %s32, 1
      %p163 = por %p161, %p162
      %p165 = scmp.ne.s32.totalorder %s150, %s164
      %p166 = scmp.eq.s32.totalorder %s32, 0
      %p167 = por %p165, %p166
      %s169 = sadd.s32 %s168, 1
      %p172 = scmp.eq.s32.totalorder %s26, 1
      %p173 = scmp.ne.s32.totalorder %s168, %s170
      %p174 = scmp.eq.s32.totalorder %s26, 0
      %p175 = por %p173, %p174
      %p176 = scmp.ne.s32.totalorder %s168, %s170
      %p177 = scmp.eq.s32.totalorder %s31, 1
      %p178 = por %p176, %p177
      %p179 = scmp.ne.s32.totalorder %s170, %s171
      %p180 = scmp.eq.s32.totalorder %s31, 0
      %p181 = por %p179, %p180
      %p182 = scmp.ne.s32.totalorder %s170, %s171
      %p183 = scmp.eq.s32.totalorder %s32, 1
      %p184 = por %p182, %p183
      %p186 = scmp.ne.s32.totalorder %s171, %s185
      %p187 = scmp.eq.s32.totalorder %s32, 0
      %p188 = por %p186, %p187
      %s190 = sadd.s32 %s189, 1
      %p193 = scmp.eq.s32.totalorder %s26, 1
      %p194 = scmp.ne.s32.totalorder %s189, %s191
      %p195 = scmp.eq.s32.totalorder %s26, 0
      %p196 = por %p194, %p195
      %p197 = scmp.ne.s32.totalorder %s189, %s191
      %p198 = scmp.eq.s32.totalorder %s31, 1
      %p199 = por %p197, %p198
      %p200 = scmp.ne.s32.totalorder %s191, %s192
      %p201 = scmp.eq.s32.totalorder %s31, 0
      %p202 = por %p200, %p201
      %p203 = scmp.ne.s32.totalorder %s191, %s192
      %p204 = scmp.eq.s32.totalorder %s32, 1
      %p205 = por %p203, %p204
      %p207 = scmp.ne.s32.totalorder %s192, %s206
      %p208 = scmp.eq.s32.totalorder %s32, 0
      %p209 = por %p207, %p208
      %s211 = sadd.s32 %s210, 1
      %p214 = scmp.eq.s32.totalorder %s26, 1
      %p215 = scmp.ne.s32.totalorder %s210, %s212
      %p216 = scmp.eq.s32.totalorder %s26, 0
      %p217 = por %p215, %p216
      %p218 = scmp.ne.s32.totalorder %s210, %s212
      %p219 = scmp.eq.s32.totalorder %s31, 1
      %p220 = por %p218, %p219
      %p221 = scmp.ne.s32.totalorder %s212, %s213
      %p222 = scmp.eq.s32.totalorder %s31, 0
      %p223 = por %p221, %p222
      %p224 = scmp.ne.s32.totalorder %s212, %s213
      %p225 = scmp.eq.s32.totalorder %s32, 1
      %p226 = por %p224, %p225
      %p228 = scmp.ne.s32.totalorder %s213, %s227
      %p229 = scmp.eq.s32.totalorder %s32, 0
      %p230 = por %p228, %p229
      %s231 = ssub.s32 %s33, %s45
      %s232 = ssub.s32 %s34, %s41
      %s233 = sor.u32 %s231, %s232
      %p234 = scmp.eq.s32.totalorder %s233, 0
      %s236 = sadd.s32 %s235, 1
      %s237 = scalar_select %p234, %s235, %s236
      %p240 = pneg %p234
      %p241 = scmp.eq.s32.totalorder %s26, 1
      %p242 = por %p240, %p241
      %p243 = scmp.ne.s32.totalorder %s235, %s238
      %p244 = scmp.eq.s32.totalorder %s26, 0
      %p245 = por %p243, %p244
      %p246 = scmp.ne.s32.totalorder %s235, %s238
      %p247 = scmp.eq.s32.totalorder %s31, 1
      %p248 = por %p246, %p247
      %p249 = scmp.ne.s32.totalorder %s238, %s239
      %p250 = scmp.eq.s32.totalorder %s31, 0
      %p251 = por %p249, %p250
      %p252 = scmp.ne.s32.totalorder %s238, %s239
      %p253 = scmp.eq.s32.totalorder %s32, 1
      %p254 = por %p252, %p253
      %p256 = scmp.ne.s32.totalorder %s239, %s255
      %p257 = scmp.eq.s32.totalorder %s32, 0
      %p258 = por %p256, %p257
      %p259 = scmp.le.s32.totalorder 1, %s26
      %p260 = scmp.lt.s32.totalorder %s26, 3
      %p261 = pnand %p259, %p260
      %p262 = pneg %p261
      // Predicated region
      $region9: #{tpu_custom_call.1} parent=5 // pred_check
        _
      $region10: #{tpu_custom_call.1} parent=5 // pred_check_branch
        %264 = sbr.rel (%p261) target = $region12
      $region11: #{tpu_custom_call.1} parent=5 // pred_region
        %s265 = ssub.s32 %s26, 1
        // Predicated region
        $region13: #{tpu_custom_call.1} parent=11 // pred_check
          %p266 = pneg %p139
        $region14: #{tpu_custom_call.1} parent=11 // pred_check_branch
          %268 = sbr.rel (%p266) target = $region16
        $region15: #{tpu_custom_call.1} parent=11 // pred_region
          %s270 = ssub.s32 128, 128
          %271 = vsyncadd [#allocation9], %s270
          %s273 = sshll.u32 [#allocation8], 4
          %s274 = int_to_ptr.vmem [resolvable:$true] %s273
          %276 = dma.hbm_to_vmem [thread:$0]  %s3, 128, %s274, [#allocation9]
        $region16: #{tpu_custom_call.1} parent=11 // pred_fallthru
          _
        // Predicated region
        $region17: #{tpu_custom_call.1} parent=11 // pred_check
          %p277 = pneg %p160
        $region18: #{tpu_custom_call.1} parent=11 // pred_check_branch
          %279 = sbr.rel (%p277) target = $region20
        $region19: #{tpu_custom_call.1} parent=11 // pred_region
          %s281 = ssub.s32 256, 256
          %282 = vsyncadd [#allocation9], %s281
          %s283 = sshll.u32 [#allocation10], 4
          %s284 = int_to_ptr.vmem [resolvable:$true] %s283
          %289 = dma.hbm_to_vmem [thread:$0]  %s4, 256, %s284, [#allocation9], 64, 64, 4
        $region20: #{tpu_custom_call.1} parent=11 // pred_fallthru
          _
        // Predicated region
        $region21: #{tpu_custom_call.1} parent=11 // pred_check
          %p290 = pneg %p181
        $region22: #{tpu_custom_call.1} parent=11 // pred_check_branch
          %292 = sbr.rel (%p290) target = $region24
        $region23: #{tpu_custom_call.1} parent=11 // pred_region
          %s294 = ssub.s32 256, 256
          %295 = vsyncadd [#allocation12], %s294
          %s296 = sshll.u32 [#allocation11], 4
          %s297 = int_to_ptr.vmem [resolvable:$true] %s296
          %302 = dma.hbm_to_vmem [thread:$0]  %s5, 256, %s297, [#allocation12], 64, 64, 4
        $region24: #{tpu_custom_call.1} parent=11 // pred_fallthru
          _
        // Predicated region
        $region25: #{tpu_custom_call.1} parent=11 // pred_check
          %p303 = pneg %p202
        $region26: #{tpu_custom_call.1} parent=11 // pred_check_branch
          %305 = sbr.rel (%p303) target = $region28
        $region27: #{tpu_custom_call.1} parent=11 // pred_region
          %s307 = ssub.s32 256, 256
          %308 = vsyncadd [#allocation12], %s307
          %s309 = sshll.u32 [#allocation13], 4
          %s310 = int_to_ptr.vmem [resolvable:$true] %s309
          %315 = dma.hbm_to_vmem [thread:$0]  %s6, 256, %s310, [#allocation12], 64, 64, 4
        $region28: #{tpu_custom_call.1} parent=11 // pred_fallthru
          _
        // Predicated region
        $region29: #{tpu_custom_call.1} parent=11 // pred_check
          %p316 = pneg %p223
        $region30: #{tpu_custom_call.1} parent=11 // pred_check_branch
          %318 = sbr.rel (%p316) target = $region32
        $region31: #{tpu_custom_call.1} parent=11 // pred_region
          %s320 = ssub.s32 256, 256
          %321 = vsyncadd [#allocation15], %s320
          %s322 = sshll.u32 [#allocation14], 4
          %s323 = int_to_ptr.vmem [resolvable:$true] %s322
          %328 = dma.hbm_to_vmem [thread:$0]  %s7, 256, %s323, [#allocation15], 64, 64, 4
        $region32: #{tpu_custom_call.1} parent=11 // pred_fallthru
          _
      $region12: #{tpu_custom_call.1} parent=5 // pred_fallthru
        _
      %p329 = scmp.lt.s32.totalorder %s26, 2
      // Predicated region
      $region33: #{tpu_custom_call.1} parent=5 // pred_check
        %p330 = pneg %p329
      $region34: #{tpu_custom_call.1} parent=5 // pred_check_branch
        %332 = sbr.rel (%p330) target = $region36
      $region35: #{tpu_custom_call.1} parent=5 // pred_region
        // Predicated region
        $region37: #{tpu_custom_call.1} parent=35 // pred_check
          %p333 = pneg %p60
        $region38: #{tpu_custom_call.1} parent=35 // pred_check_branch
          %335 = sbr.rel (%p333) target = $region40
        $region39: #{tpu_custom_call.1} parent=35 // pred_region
          %s336 = sand.u32 %s50, 1
          %s337 = scalar_lea.sflag [#allocation3], %s336
          %s338 = sand.u32 %s50, 1
          %s339 = smul.addr %s338, 8
          %s340 = scalar_lea.vmem [#allocation2], %s339
          %s342 = ssub.s32 128, 128
          %343 = vsyncadd %s337, %s342
          %s344 = sadd.s32 %s34, %s33
          %s345 = smul.addr %s344, 128
          %s346 = scalar_lea.hbm %s0, %s345
          %s348 = sshll.u32 %s340, 4
          %s349 = int_to_ptr.vmem [resolvable:$true] %s348
          %351 = dma.hbm_to_vmem [thread:$0]  %s346, 128, %s349, %s337
        $region40: #{tpu_custom_call.1} parent=35 // pred_fallthru
          _
        // Predicated region
        $region41: #{tpu_custom_call.1} parent=35 // pred_check
          %p352 = pneg %p86
        $region42: #{tpu_custom_call.1} parent=35 // pred_check_branch
          %354 = sbr.rel (%p352) target = $region44
        $region43: #{tpu_custom_call.1} parent=35 // pred_region
          %s355 = sand.u32 %s26, 1
          %s356 = scalar_lea.sflag [#allocation6], %s355
          %s357 = sand.u32 %s76, 1
          %s358 = smul.addr %s357, 16
          %s359 = scalar_lea.vmem [#allocation5], %s358
          %s361 = ssub.s32 256, 256
          %362 = vsyncadd %s356, %s361
          %s363 = smul.addr %s33, 2
          %s364 = smul.addr %s363, 128
          %s365 = scalar_lea.hbm %s1, %s364
          %s366 = sshll.u32 %s359, 4
          %s367 = int_to_ptr.vmem [resolvable:$true] %s366
          %372 = dma.hbm_to_vmem [thread:$0]  %s365, 256, %s367, %s356, 128, 128, 8
        $region44: #{tpu_custom_call.1} parent=35 // pred_fallthru
          _
        // Predicated region
        $region45: #{tpu_custom_call.1} parent=35 // pred_check
          %p373 = pneg %p112
        $region46: #{tpu_custom_call.1} parent=35 // pred_check_branch
          %375 = sbr.rel (%p373) target = $region48
        $region47: #{tpu_custom_call.1} parent=35 // pred_region
          %s376 = sand.u32 %s26, 1
          %s377 = scalar_lea.sflag [#allocation6], %s376
          %s378 = sand.u32 %s102, 1
          %s379 = smul.addr %s378, 16
          %s380 = scalar_lea.vmem [#allocation7], %s379
          %s382 = ssub.s32 256, 256
          %383 = vsyncadd %s377, %s382
          %s384 = smul.addr %s33, 2
          %s385 = smul.addr %s384, 128
          %s386 = scalar_lea.hbm %s2, %s385
          %s387 = sshll.u32 %s380, 4
          %s388 = int_to_ptr.vmem [resolvable:$true] %s387
          %393 = dma.hbm_to_vmem [thread:$0]  %s386, 256, %s388, %s377, 128, 128, 8
        $region48: #{tpu_custom_call.1} parent=35 // pred_fallthru
          _
      $region36: #{tpu_custom_call.1} parent=5 // pred_fallthru
        _
      %p394 = scmp.le.s32.totalorder 1, %s26
      %p395 = scmp.lt.s32.totalorder %s26, 3
      %p396 = pnand %p394, %p395
      %p397 = pneg %p396
      // Predicated region
      $region49: #{tpu_custom_call.1} parent=5 // pred_check
        _
      $region50: #{tpu_custom_call.1} parent=5 // pred_check_branch
        %399 = sbr.rel (%p396) target = $region52
      $region51: #{tpu_custom_call.1} parent=5 // pred_region
        %s400 = ssub.s32 %s26, 1
        %s401 = sand.u32 %s53, 1
        %s402 = scalar_lea.sflag [#allocation3], %s401
        %s403 = sand.u32 %s53, 1
        %s404 = smul.addr %s403, 8
        %s405 = scalar_lea.vmem [#allocation2], %s404
        // Predicated region
        $region53: #{tpu_custom_call.1} parent=51 // pred_check
          %p406 = pneg %p66
        $region54: #{tpu_custom_call.1} parent=51 // pred_check_branch
          %408 = sbr.rel (%p406) target = $region56
        $region55: #{tpu_custom_call.1} parent=51 // pred_region
          %409 = dma.done %s402, 128
        $region56: #{tpu_custom_call.1} parent=51 // pred_fallthru
          _
        %s410 = sand.u32 %s31, 1
        %s411 = scalar_lea.sflag [#allocation6], %s410
        %s412 = sand.u32 %s79, 1
        %s413 = smul.addr %s412, 16
        %s414 = scalar_lea.vmem [#allocation5], %s413
        // Predicated region
        $region57: #{tpu_custom_call.1} parent=51 // pred_check
          %p415 = pneg %p92
        $region58: #{tpu_custom_call.1} parent=51 // pred_check_branch
          %417 = sbr.rel (%p415) target = $region60
        $region59: #{tpu_custom_call.1} parent=51 // pred_region
          %418 = dma.done %s411, 256
        $region60: #{tpu_custom_call.1} parent=51 // pred_fallthru
          _
        %s419 = sand.u32 %s31, 1
        %s420 = scalar_lea.sflag [#allocation6], %s419
        %s421 = sand.u32 %s105, 1
        %s422 = smul.addr %s421, 16
        %s423 = scalar_lea.vmem [#allocation7], %s422
        // Predicated region
        $region61: #{tpu_custom_call.1} parent=51 // pred_check
          %p424 = pneg %p118
        $region62: #{tpu_custom_call.1} parent=51 // pred_check_branch
          %426 = sbr.rel (%p424) target = $region64
        $region63: #{tpu_custom_call.1} parent=51 // pred_region
          %427 = dma.done %s420, 256
        $region64: #{tpu_custom_call.1} parent=51 // pred_fallthru
          _
        // Predicated region
        $region65: #{tpu_custom_call.1} parent=51 // pred_check
          %p428 = pneg %p139
        $region66: #{tpu_custom_call.1} parent=51 // pred_check_branch
          %430 = sbr.rel (%p428) target = $region68
        $region67: #{tpu_custom_call.1} parent=51 // pred_region
          %431 = dma.done [#allocation9], 128
        $region68: #{tpu_custom_call.1} parent=51 // pred_fallthru
          _
        // Predicated region
        $region69: #{tpu_custom_call.1} parent=51 // pred_check
          %p432 = pneg %p160
        $region70: #{tpu_custom_call.1} parent=51 // pred_check_branch
          %434 = sbr.rel (%p432) target = $region72
        $region71: #{tpu_custom_call.1} parent=51 // pred_region
          %435 = dma.done [#allocation9], 256
        $region72: #{tpu_custom_call.1} parent=51 // pred_fallthru
          _
        // Predicated region
        $region73: #{tpu_custom_call.1} parent=51 // pred_check
          %p436 = pneg %p181
        $region74: #{tpu_custom_call.1} parent=51 // pred_check_branch
          %438 = sbr.rel (%p436) target = $region76
        $region75: #{tpu_custom_call.1} parent=51 // pred_region
          %439 = dma.done [#allocation12], 256
        $region76: #{tpu_custom_call.1} parent=51 // pred_fallthru
          _
        // Predicated region
        $region77: #{tpu_custom_call.1} parent=51 // pred_check
          %p440 = pneg %p202
        $region78: #{tpu_custom_call.1} parent=51 // pred_check_branch
          %442 = sbr.rel (%p440) target = $region80
        $region79: #{tpu_custom_call.1} parent=51 // pred_region
          %443 = dma.done [#allocation12], 256
        $region80: #{tpu_custom_call.1} parent=51 // pred_fallthru
          _
        // Predicated region
        $region81: #{tpu_custom_call.1} parent=51 // pred_check
          %p444 = pneg %p223
        $region82: #{tpu_custom_call.1} parent=51 // pred_check_branch
          %446 = sbr.rel (%p444) target = $region84
        $region83: #{tpu_custom_call.1} parent=51 // pred_region
          %447 = dma.done [#allocation15], 256
        $region84: #{tpu_custom_call.1} parent=51 // pred_fallthru
          _
        %s448 = sand.u32 %s53, 1
        %s449 = scalar_lea.sflag [#allocation3], %s448
        %s450 = sand.u32 %s53, 1
        %s451 = smul.addr %s450, 8
        %s452 = scalar_lea.vmem [#allocation2], %s451
        %p453 = pneg %p66
        %p454 = pneg %p63
        %s455 = sand.u32 %s31, 1
        %s456 = scalar_lea.sflag [#allocation6], %s455
        %s457 = sand.u32 %s79, 1
        %s458 = smul.addr %s457, 16
        %s459 = scalar_lea.vmem [#allocation5], %s458
        %p460 = pneg %p92
        %p461 = pneg %p89
        %s462 = sand.u32 %s31, 1
        %s463 = scalar_lea.sflag [#allocation6], %s462
        %s464 = sand.u32 %s105, 1
        %s465 = smul.addr %s464, 16
        %s466 = scalar_lea.vmem [#allocation7], %s465
        %p467 = pneg %p118
        %p468 = pneg %p115
        %p469 = pneg %p139
        %p470 = pneg %p136
        %p471 = pneg %p160
        %p472 = pneg %p157
        %p473 = pneg %p181
        %p474 = pneg %p178
        %p475 = pneg %p202
        %p476 = pneg %p199
        %p477 = pneg %p223
        %p478 = pneg %p220
        %p479 = pneg %p251
        %p480 = pneg %p248
        %s481 = sand.u32 %s238, 1
        %s482 = scalar_lea.sflag [#allocation4], %s481
        %s483 = sand.u32 %s238, 1
        %s484 = smul.addr %s483, 8
        %s485 = scalar_lea.vmem [#allocation16], %s484
        %v487 = vld [vmem:[#allocation8] sm:$0xff]
        %v488 = vld [vmem:[%s405] sm:$0xff]
        %vm489 = vcmask 261120
        %v490 = vsel %vm489, %v488, 0.0
        %491 = vadd.xlane.f32.xlu0 %v490
        %v492 = vpop.xlane.xlu0 %491
        %v493 = vrcp.pop 32.0
        %v494 = vmul.f32 %v492, %v493
        %v495 = vmul.f32 %v488, %v488
        %v496 = vsel %vm489, %v495, 0.0
        %497 = vadd.xlane.f32.xlu0 %v496
        %v498 = vpop.xlane.xlu0 %497
        %v499 = vmul.f32 %v498, %v493
        %v500 = vmul.f32 %v494, %v494
        %v501 = vsub.f32 %v499, %v500
        %v502 = vmax.f32 %v501, 0.0
        %v503 = vsub.f32 %v488, %v494
        %v504 = vadd.f32 %v502, 1e-05
        %v505 = vrsqrt.pop %v504
        %v506 = vmul.f32 %v503, %v505
        %v507 = vlaneseq
        %v508 = vshrl.u32 %v507, 7
        %v509 = vsub.s32 0, %v508
        %v510 = vrot.slane %v487, %v509
        %v511 = vmul.f32 %v506, %v510
        %v512 = vlaneseq
        %v513 = vshrl.u32 %v512, 7
        %v514 = vsub.s32 1, %v513
        %v515 = vrot.slane %v487, %v514
        %v516 = vadd.f32 %v511, %v515
        %v517 = vpack.c.bf16 %v516, %v516
        %v518 = vld [vmem:[#allocation10] sm:$0xf]
        %v519 = vld [vmem:[#allocation10 + $0x4] sm:$0xf]
        %v520 = vld [vmem:[#allocation10 + $0x8] sm:$0xf]
        %v521 = vld [vmem:[#allocation10 + $0xc] sm:$0xf]
        %v522 = vlaneseq
        %v523 = vshrl.u32 %v522, 7
        %v524 = vsub.s32 4, %v523
        %v525 = vrot.slane %v487, %v524
        %v530 = vunpack.c.l.b16 %v518
        %v531 = vunpack.c.l.b16 %v519
        %v532 = vunpack.c.l.b16 %v520
        %v533 = vunpack.c.l.b16 %v521
        %v534 = vpack.c.b16 %v531, %v530
        %v535 = vpack.c.b16 %v533, %v532
        %v539 = vsel %vm489, %v517, 0
        %541 = vmatprep.subr.bf16.mxu0 0
        %542 = vmatpush1.bf16.msra.mxu0 0
        %543 = vmatprep.subr.bf16.mxu0 0
        %544 = vmatpush1.bf16.msra.mxu0 0
        %545 = vmatprep.subr.bf16.mxu0 0
        %546 = vmatpush1.bf16.msra.mxu0 0
        %547 = vmatprep.subr.bf16.mxu0 0
        %548 = vmatpush1.bf16.msra.mxu0 0
        %549 = vmatprep.subr.bf16.mxu0 0
        %550 = vmatpush1.bf16.msra.mxu0 0
        %551 = vmatprep.subr.bf16.mxu0 0
        %552 = vmatpush1.bf16.msra.mxu0 0
        %553 = vmatprep.subr.bf16.mxu0 0
        %554 = vmatpush1.bf16.msra.mxu0 %v535
        %555 = vmatprep.subr.bf16.mxu0 0
        %556 = vmatpush1.bf16.msra.mxu0 %v534
        %557 = vmatprep.subr.bf16.mxu0 0
        %558 = vmatpush2.bf16.msra.mxu0 0
        %559 = vmatprep.subr.bf16.mxu0 0
        %560 = vmatpush2.bf16.msra.mxu0 0
        %561 = vmatprep.subr.bf16.mxu0 0
        %562 = vmatpush2.bf16.msra.mxu0 0
        %563 = vmatprep.subr.bf16.mxu0 0
        %564 = vmatpush2.bf16.msra.mxu0 0
        %565 = vmatprep.subr.bf16.mxu0 0
        %566 = vmatpush2.bf16.msra.mxu0 0
        %567 = vmatprep.subr.bf16.mxu0 0
        %568 = vmatpush2.bf16.msra.mxu0 0
        %569 = vmatprep.subr.bf16.mxu0 0
        %570 = vmatpush2.bf16.msra.mxu0 0
        %571 = vmatprep.subr.bf16.mxu0 0
        %572 = vmatpush2.bf16.msra.mxu0 0
        %573 = vmatprep.mubr.bf16.mxu0 0
        %574 = vmatmul.mubr.bf16.gmra.mxu0 %v539
        %v575 = vpop.f32.mrf.mxu0
        %v576 = vadd.f32 %v525, %v575
        %v577 = vpop.f32.mrf.mxu0
        %v578 = vpop.f32.mrf.mxu0
        %v579 = vpop.f32.mrf.mxu0
        %580 = vdwg.mxu0
        %v581 = vld [vmem:[%s414] sm:$0xff]
        %v582 = vld [vmem:[%s414 + $0x8] sm:$0xff]
        %v583 = vsel %vm489, %v581, 0.0
        %584 = vadd.xlane.f32.xlu0 %v583
        %v585 = vpop.xlane.xlu0 %584
        %v586 = vsel %vm489, %v582, 0.0
        %587 = vadd.xlane.f32.xlu0 %v586
        %v588 = vpop.xlane.xlu0 %587
        %v589 = vmul.f32 %v585, %v493
        %v590 = vmul.f32 %v588, %v493
        %v591 = vmul.f32 %v581, %v581
        %v592 = vmul.f32 %v582, %v582
        %v593 = vsel %vm489, %v591, 0.0
        %594 = vadd.xlane.f32.xlu0 %v593
        %v595 = vpop.xlane.xlu0 %594
        %v596 = vsel %vm489, %v592, 0.0
        %597 = vadd.xlane.f32.xlu0 %v596
        %v598 = vpop.xlane.xlu0 %597
        %v599 = vmul.f32 %v595, %v493
        %v600 = vmul.f32 %v598, %v493
        %v601 = vmul.f32 %v589, %v589
        %v602 = vmul.f32 %v590, %v590
        %v603 = vsub.f32 %v599, %v601
        %v604 = vsub.f32 %v600, %v602
        %v605 = vmax.f32 %v603, 0.0
        %v606 = vmax.f32 %v604, 0.0
        %v607 = vsub.f32 %v581, %v589
        %v608 = vsub.f32 %v582, %v590
        %v609 = vadd.f32 %v605, 1e-05
        %v610 = vadd.f32 %v606, 1e-05
        %v611 = vrsqrt.pop %v609
        %v612 = vrsqrt.pop %v610
        %v613 = vmul.f32 %v607, %v611
        %v614 = vmul.f32 %v608, %v612
        %v615 = vlaneseq
        %v616 = vshrl.u32 %v615, 7
        %v617 = vsub.s32 2, %v616
        %v618 = vrot.slane %v487, %v617
        %v619 = vmul.f32 %v613, %v618
        %v620 = vmul.f32 %v614, %v618
        %v621 = vlaneseq
        %v622 = vshrl.u32 %v621, 7
        %v623 = vsub.s32 3, %v622
        %v624 = vrot.slane %v487, %v623
        %v625 = vadd.f32 %v619, %v624
        %v626 = vadd.f32 %v620, %v624
        %v627 = vpack.c.bf16 %v626, %v625
        %v628 = vld [vmem:[#allocation11] sm:$0xf]
        %v629 = vld [vmem:[#allocation11 + $0x4] sm:$0xf]
        %v630 = vld [vmem:[#allocation11 + $0x8] sm:$0xf]
        %v631 = vld [vmem:[#allocation11 + $0xc] sm:$0xf]
        %v632 = vlaneseq
        %v633 = vshrl.u32 %v632, 7
        %v634 = vsub.s32 5, %v633
        %v635 = vrot.slane %v487, %v634
        %v640 = vunpack.c.l.b16 %v628
        %v641 = vunpack.c.l.b16 %v629
        %v642 = vunpack.c.l.b16 %v630
        %v643 = vunpack.c.l.b16 %v631
        %v644 = vpack.c.b16 %v641, %v640
        %v645 = vpack.c.b16 %v643, %v642
        %v649 = vsel %vm489, %v627, 0
        %651 = vmatprep.subr.bf16.mxu0 0
        %652 = vmatpush1.bf16.msra.mxu0 0
        %653 = vmatprep.subr.bf16.mxu0 0
        %654 = vmatpush1.bf16.msra.mxu0 0
        %655 = vmatprep.subr.bf16.mxu0 0
        %656 = vmatpush1.bf16.msra.mxu0 0
        %657 = vmatprep.subr.bf16.mxu0 0
        %658 = vmatpush1.bf16.msra.mxu0 0
        %659 = vmatprep.subr.bf16.mxu0 0
        %660 = vmatpush1.bf16.msra.mxu0 0
        %661 = vmatprep.subr.bf16.mxu0 0
        %662 = vmatpush1.bf16.msra.mxu0 0
        %663 = vmatprep.subr.bf16.mxu0 0
        %664 = vmatpush1.bf16.msra.mxu0 %v645
        %665 = vmatprep.subr.bf16.mxu0 0
        %666 = vmatpush1.bf16.msra.mxu0 %v644
        %667 = vmatprep.subr.bf16.mxu0 0
        %668 = vmatpush2.bf16.msra.mxu0 0
        %669 = vmatprep.subr.bf16.mxu0 0
        %670 = vmatpush2.bf16.msra.mxu0 0
        %671 = vmatprep.subr.bf16.mxu0 0
        %672 = vmatpush2.bf16.msra.mxu0 0
        %673 = vmatprep.subr.bf16.mxu0 0
        %674 = vmatpush2.bf16.msra.mxu0 0
        %675 = vmatprep.subr.bf16.mxu0 0
        %676 = vmatpush2.bf16.msra.mxu0 0
        %677 = vmatprep.subr.bf16.mxu0 0
        %678 = vmatpush2.bf16.msra.mxu0 0
        %679 = vmatprep.subr.bf16.mxu0 0
        %680 = vmatpush2.bf16.msra.mxu0 0
        %681 = vmatprep.subr.bf16.mxu0 0
        %682 = vmatpush2.bf16.msra.mxu0 0
        %683 = vmatprep.mubr.bf16.mxu0 0
        %684 = vmatmul.mubr.bf16.gmra.mxu0 %v649
        %v685 = vpop.f32.mrf.mxu0
        %v686 = vadd.f32 %v635, %v685
        %v687 = vpop.f32.mrf.mxu0
        %v688 = vpop.f32.mrf.mxu0
        %v689 = vadd.f32 %v635, %v688
        %v690 = vpop.f32.mrf.mxu0
        %691 = vdwg.mxu0
        %v692 = vld [vmem:[%s423] sm:$0xff]
        %v693 = vld [vmem:[%s423 + $0x8] sm:$0xff]
        %v694 = vsel %vm489, %v692, 0.0
        %695 = vadd.xlane.f32.xlu0 %v694
        %v696 = vpop.xlane.xlu0 %695
        %v697 = vsel %vm489, %v693, 0.0
        %698 = vadd.xlane.f32.xlu0 %v697
        %v699 = vpop.xlane.xlu0 %698
        %v700 = vmul.f32 %v696, %v493
        %v701 = vmul.f32 %v699, %v493
        %v702 = vmul.f32 %v692, %v692
        %v703 = vmul.f32 %v693, %v693
        %v704 = vsel %vm489, %v702, 0.0
        %705 = vadd.xlane.f32.xlu0 %v704
        %v706 = vpop.xlane.xlu0 %705
        %v707 = vsel %vm489, %v703, 0.0
        %708 = vadd.xlane.f32.xlu0 %v707
        %v709 = vpop.xlane.xlu0 %708
        %v710 = vmul.f32 %v706, %v493
        %v711 = vmul.f32 %v709, %v493
        %v712 = vmul.f32 %v700, %v700
        %v713 = vmul.f32 %v701, %v701
        %v714 = vsub.f32 %v710, %v712
        %v715 = vsub.f32 %v711, %v713
        %v716 = vmax.f32 %v714, 0.0
        %v717 = vmax.f32 %v715, 0.0
        %v718 = vsub.f32 %v692, %v700
        %v719 = vsub.f32 %v693, %v701
        %v720 = vadd.f32 %v716, 1e-05
        %v721 = vadd.f32 %v717, 1e-05
        %v722 = vrsqrt.pop %v720
        %v723 = vrsqrt.pop %v721
        %v724 = vmul.f32 %v718, %v722
        %v725 = vmul.f32 %v719, %v723
        %v726 = vmul.f32 %v724, %v618
        %v727 = vmul.f32 %v725, %v618
        %v728 = vadd.f32 %v726, %v624
        %v729 = vadd.f32 %v727, %v624
        %v730 = vpack.c.bf16 %v729, %v728
        %v731 = vld [vmem:[#allocation13] sm:$0xf]
        %v732 = vld [vmem:[#allocation13 + $0x4] sm:$0xf]
        %v733 = vld [vmem:[#allocation13 + $0x8] sm:$0xf]
        %v734 = vld [vmem:[#allocation13 + $0xc] sm:$0xf]
        %v735 = vlaneseq
        %v736 = vshrl.u32 %v735, 7
        %v737 = vsub.s32 6, %v736
        %v738 = vrot.slane %v487, %v737
        %v743 = vunpack.c.l.b16 %v731
        %v744 = vunpack.c.l.b16 %v732
        %v745 = vunpack.c.l.b16 %v733
        %v746 = vunpack.c.l.b16 %v734
        %v747 = vpack.c.b16 %v744, %v743
        %v748 = vpack.c.b16 %v746, %v745
        %v752 = vsel %vm489, %v730, 0
        %754 = vmatprep.subr.bf16.mxu0 0
        %755 = vmatpush1.bf16.msra.mxu0 0
        %756 = vmatprep.subr.bf16.mxu0 0
        %757 = vmatpush1.bf16.msra.mxu0 0
        %758 = vmatprep.subr.bf16.mxu0 0
        %759 = vmatpush1.bf16.msra.mxu0 0
        %760 = vmatprep.subr.bf16.mxu0 0
        %761 = vmatpush1.bf16.msra.mxu0 0
        %762 = vmatprep.subr.bf16.mxu0 0
        %763 = vmatpush1.bf16.msra.mxu0 0
        %764 = vmatprep.subr.bf16.mxu0 0
        %765 = vmatpush1.bf16.msra.mxu0 0
        %766 = vmatprep.subr.bf16.mxu0 0
        %767 = vmatpush1.bf16.msra.mxu0 %v748
        %768 = vmatprep.subr.bf16.mxu0 0
        %769 = vmatpush1.bf16.msra.mxu0 %v747
        %770 = vmatprep.subr.bf16.mxu0 0
        %771 = vmatpush2.bf16.msra.mxu0 0
        %772 = vmatprep.subr.bf16.mxu0 0
        %773 = vmatpush2.bf16.msra.mxu0 0
        %774 = vmatprep.subr.bf16.mxu0 0
        %775 = vmatpush2.bf16.msra.mxu0 0
        %776 = vmatprep.subr.bf16.mxu0 0
        %777 = vmatpush2.bf16.msra.mxu0 0
        %778 = vmatprep.subr.bf16.mxu0 0
        %779 = vmatpush2.bf16.msra.mxu0 0
        %780 = vmatprep.subr.bf16.mxu0 0
        %781 = vmatpush2.bf16.msra.mxu0 0
        %782 = vmatprep.subr.bf16.mxu0 0
        %783 = vmatpush2.bf16.msra.mxu0 0
        %784 = vmatprep.subr.bf16.mxu0 0
        %785 = vmatpush2.bf16.msra.mxu0 0
        %786 = vmatprep.mubr.bf16.mxu0 0
        %787 = vmatmul.mubr.bf16.gmra.mxu0 %v752
        %v788 = vpop.f32.mrf.mxu0
        %v789 = vadd.f32 %v738, %v788
        %v790 = vpop.f32.mrf.mxu0
        %v791 = vpop.f32.mrf.mxu0
        %v792 = vadd.f32 %v738, %v791
        %v793 = vpop.f32.mrf.mxu0
        %794 = vdwg.mxu0
        %v795 = vpack.c.bf16 %v576, %v576
        %v796 = vpack.c.bf16 %v689, %v686
        %v797 = vpack.c.bf16 %v792, %v789
        %vm798 = vcmask 64512
        %v800 = vsel %vm798, %v795, 0
        %v803 = vsel %vm798, %v796, 0
        %805 = vmatprep.subr.bf16.mxu0 0
        %806 = vmatpush1.bf16.xpose.msra.mxu0 0
        %807 = vmatprep.subr.bf16.mxu0 0
        %808 = vmatpush1.bf16.xpose.msra.mxu0 0
        %809 = vmatprep.subr.bf16.mxu0 0
        %810 = vmatpush1.bf16.xpose.msra.mxu0 0
        %811 = vmatprep.subr.bf16.mxu0 0
        %812 = vmatpush1.bf16.xpose.msra.mxu0 0
        %813 = vmatprep.subr.bf16.mxu0 0
        %814 = vmatpush1.bf16.xpose.msra.mxu0 0
        %815 = vmatprep.subr.bf16.mxu0 0
        %816 = vmatpush1.bf16.xpose.msra.mxu0 0
        %817 = vmatprep.subr.bf16.mxu0 0
        %818 = vmatpush1.bf16.xpose.msra.mxu0 0
        %819 = vmatprep.subr.bf16.mxu0 0
        %820 = vmatpush1.bf16.xpose.msra.mxu0 %v803
        %821 = vmatprep.subr.bf16.mxu0 0
        %822 = vmatpush2.bf16.xpose.msra.mxu0 0
        %823 = vmatprep.subr.bf16.mxu0 0
        %824 = vmatpush2.bf16.xpose.msra.mxu0 0
        %825 = vmatprep.subr.bf16.mxu0 0
        %826 = vmatpush2.bf16.xpose.msra.mxu0 0
        %827 = vmatprep.subr.bf16.mxu0 0
        %828 = vmatpush2.bf16.xpose.msra.mxu0 0
        %829 = vmatprep.subr.bf16.mxu0 0
        %830 = vmatpush2.bf16.xpose.msra.mxu0 0
        %831 = vmatprep.subr.bf16.mxu0 0
        %832 = vmatpush2.bf16.xpose.msra.mxu0 0
        %833 = vmatprep.subr.bf16.mxu0 0
        %834 = vmatpush2.bf16.xpose.msra.mxu0 0
        %835 = vmatprep.subr.bf16.mxu0 0
        %836 = vmatpush2.bf16.xpose.msra.mxu0 0
        %837 = vmatprep.mubr.bf16.mxu0 0
        %838 = vmatmul.mubr.bf16.gmra.mxu0 %v800
        %v839 = vpop.f32.mrf.mxu0
        %v840 = vadd.f32 0.0, %v839
        %v841 = vpop.f32.mrf.mxu0
        %v842 = vpop.f32.mrf.mxu0
        %v843 = vpop.f32.mrf.mxu0
        %844 = vdwg.mxu0
        %vm845 = vcmask 130048
        %v846 = vsel %vm845, %v840, -inf
        %847 = vmax.xlane.f32.xlu0 %v846
        %v848 = vpop.xlane.xlu0 %847
        %v849 = vsub.f32 %v840, %v848
        %v850 = vmul.f32 %v849, 1.442695
        %v851 = vpow.pop %v850
        %v852 = vsel %vm845, %v851, 0.0
        %853 = vadd.xlane.f32.xlu0 %v852
        %v854 = vpop.xlane.xlu0 %853
        %v855 = vrcp.pop %v854
        %v856 = vmul.f32 %v851, %v855
        %v857 = vpack.c.bf16 %v856, %v856
        %v859 = vsel %vm845, %v857, 0
        %861 = vmatprep.subr.bf16.mxu0 0
        %862 = vmatpush1.bf16.msra.mxu0 0
        %863 = vmatprep.subr.bf16.mxu0 0
        %864 = vmatpush1.bf16.msra.mxu0 0
        %865 = vmatprep.subr.bf16.mxu0 0
        %866 = vmatpush1.bf16.msra.mxu0 0
        %867 = vmatprep.subr.bf16.mxu0 0
        %868 = vmatpush1.bf16.msra.mxu0 0
        %869 = vmatprep.subr.bf16.mxu0 0
        %870 = vmatpush1.bf16.msra.mxu0 0
        %871 = vmatprep.subr.bf16.mxu0 0
        %872 = vmatpush1.bf16.msra.mxu0 0
        %873 = vmatprep.subr.bf16.mxu0 0
        %874 = vmatpush1.bf16.msra.mxu0 0
        %875 = vmatprep.subr.bf16.mxu0 0
        %876 = vmatpush1.bf16.msra.mxu0 %v797
        %877 = vmatprep.subr.bf16.mxu0 0
        %878 = vmatpush2.bf16.msra.mxu0 0
        %879 = vmatprep.subr.bf16.mxu0 0
        %880 = vmatpush2.bf16.msra.mxu0 0
        %881 = vmatprep.subr.bf16.mxu0 0
        %882 = vmatpush2.bf16.msra.mxu0 0
        %883 = vmatprep.subr.bf16.mxu0 0
        %884 = vmatpush2.bf16.msra.mxu0 0
        %885 = vmatprep.subr.bf16.mxu0 0
        %886 = vmatpush2.bf16.msra.mxu0 0
        %887 = vmatprep.subr.bf16.mxu0 0
        %888 = vmatpush2.bf16.msra.mxu0 0
        %889 = vmatprep.subr.bf16.mxu0 0
        %890 = vmatpush2.bf16.msra.mxu0 0
        %891 = vmatprep.subr.bf16.mxu0 0
        %892 = vmatpush2.bf16.msra.mxu0 0
        %893 = vmatprep.mubr.bf16.mxu0 0
        %894 = vmatmul.mubr.bf16.gmra.mxu0 %v859
        %v895 = vpop.f32.mrf.mxu0
        %v896 = vadd.f32 0.0, %v895
        %v897 = vpop.f32.mrf.mxu0
        %v898 = vpop.f32.mrf.mxu0
        %v899 = vpop.f32.mrf.mxu0
        %900 = vdwg.mxu0
        %v901 = vpack.c.bf16 %v896, %v896
        %v902 = vld [vmem:[#allocation14] sm:$0xf]
        %904 = vrot.lane.b32.xlu0 %v795, 120
        %v905 = vpop.permute.xlu0 %904
        %907 = vrot.lane.b32.xlu0 %v796, 120
        %v908 = vpop.permute.xlu0 %907
        %v910 = vsel %vm798, %v905, 0
        %v913 = vsel %vm798, %v908, 0
        %915 = vmatprep.subr.bf16.mxu0 0
        %916 = vmatpush1.bf16.xpose.msra.mxu0 0
        %917 = vmatprep.subr.bf16.mxu0 0
        %918 = vmatpush1.bf16.xpose.msra.mxu0 0
        %919 = vmatprep.subr.bf16.mxu0 0
        %920 = vmatpush1.bf16.xpose.msra.mxu0 0
        %921 = vmatprep.subr.bf16.mxu0 0
        %922 = vmatpush1.bf16.xpose.msra.mxu0 0
        %923 = vmatprep.subr.bf16.mxu0 0
        %924 = vmatpush1.bf16.xpose.msra.mxu0 0
        %925 = vmatprep.subr.bf16.mxu0 0
        %926 = vmatpush1.bf16.xpose.msra.mxu0 0
        %927 = vmatprep.subr.bf16.mxu0 0
        %928 = vmatpush1.bf16.xpose.msra.mxu0 0
        %929 = vmatprep.subr.bf16.mxu0 0
        %930 = vmatpush1.bf16.xpose.msra.mxu0 %v913
        %931 = vmatprep.subr.bf16.mxu0 0
        %932 = vmatpush2.bf16.xpose.msra.mxu0 0
        %933 = vmatprep.subr.bf16.mxu0 0
        %934 = vmatpush2.bf16.xpose.msra.mxu0 0
        %935 = vmatprep.subr.bf16.mxu0 0
        %936 = vmatpush2.bf16.xpose.msra.mxu0 0
        %937 = vmatprep.subr.bf16.mxu0 0
        %938 = vmatpush2.bf16.xpose.msra.mxu0 0
        %939 = vmatprep.subr.bf16.mxu0 0
        %940 = vmatpush2.bf16.xpose.msra.mxu0 0
        %941 = vmatprep.subr.bf16.mxu0 0
        %942 = vmatpush2.bf16.xpose.msra.mxu0 0
        %943 = vmatprep.subr.bf16.mxu0 0
        %944 = vmatpush2.bf16.xpose.msra.mxu0 0
        %945 = vmatprep.subr.bf16.mxu0 0
        %946 = vmatpush2.bf16.xpose.msra.mxu0 0
        %947 = vmatprep.mubr.bf16.mxu0 0
        %948 = vmatmul.mubr.bf16.gmra.mxu0 %v910
        %v949 = vpop.f32.mrf.mxu0
        %v950 = vadd.f32 0.0, %v949
        %v951 = vpop.f32.mrf.mxu0
        %v952 = vpop.f32.mrf.mxu0
        %v953 = vpop.f32.mrf.mxu0
        %954 = vdwg.mxu0
        %v955 = vsel %vm845, %v950, -inf
        %956 = vmax.xlane.f32.xlu0 %v955
        %v957 = vpop.xlane.xlu0 %956
        %v958 = vsub.f32 %v950, %v957
        %v959 = vmul.f32 %v958, 1.442695
        %v960 = vpow.pop %v959
        %v961 = vsel %vm845, %v960, 0.0
        %962 = vadd.xlane.f32.xlu0 %v961
        %v963 = vpop.xlane.xlu0 %962
        %v964 = vrcp.pop %v963
        %v965 = vmul.f32 %v960, %v964
        %v966 = vpack.c.bf16 %v965, %v965
        %968 = vrot.lane.b32.xlu0 %v797, 120
        %v969 = vpop.permute.xlu0 %968
        %v972 = vsel %vm845, %v966, 0
        %974 = vmatprep.subr.bf16.mxu0 0
        %975 = vmatpush1.bf16.msra.mxu0 0
        %976 = vmatprep.subr.bf16.mxu0 0
        %977 = vmatpush1.bf16.msra.mxu0 0
        %978 = vmatprep.subr.bf16.mxu0 0
        %979 = vmatpush1.bf16.msra.mxu0 0
        %980 = vmatprep.subr.bf16.mxu0 0
        %981 = vmatpush1.bf16.msra.mxu0 0
        %982 = vmatprep.subr.bf16.mxu0 0
        %983 = vmatpush1.bf16.msra.mxu0 0
        %984 = vmatprep.subr.bf16.mxu0 0
        %985 = vmatpush1.bf16.msra.mxu0 0
        %986 = vmatprep.subr.bf16.mxu0 0
        %987 = vmatpush1.bf16.msra.mxu0 0
        %988 = vmatprep.subr.bf16.mxu0 0
        %989 = vmatpush1.bf16.msra.mxu0 %v969
        %990 = vmatprep.subr.bf16.mxu0 0
        %991 = vmatpush2.bf16.msra.mxu0 0
        %992 = vmatprep.subr.bf16.mxu0 0
        %993 = vmatpush2.bf16.msra.mxu0 0
        %994 = vmatprep.subr.bf16.mxu0 0
        %995 = vmatpush2.bf16.msra.mxu0 0
        %996 = vmatprep.subr.bf16.mxu0 0
        %997 = vmatpush2.bf16.msra.mxu0 0
        %998 = vmatprep.subr.bf16.mxu0 0
        %999 = vmatpush2.bf16.msra.mxu0 0
        %1000 = vmatprep.subr.bf16.mxu0 0
        %1001 = vmatpush2.bf16.msra.mxu0 0
        %1002 = vmatprep.subr.bf16.mxu0 0
        %1003 = vmatpush2.bf16.msra.mxu0 0
        %1004 = vmatprep.subr.bf16.mxu0 0
        %1005 = vmatpush2.bf16.msra.mxu0 0
        %1006 = vmatprep.mubr.bf16.mxu0 0
        %1007 = vmatmul.mubr.bf16.gmra.mxu0 %v972
        %v1008 = vpop.f32.mrf.mxu0
        %v1009 = vadd.f32 0.0, %v1008
        %v1010 = vpop.f32.mrf.mxu0
        %v1011 = vpop.f32.mrf.mxu0
        %v1012 = vpop.f32.mrf.mxu0
        %1013 = vdwg.mxu0
        %v1014 = vpack.c.bf16 %v1009, %v1009
        %v1015 = vld [vmem:[#allocation14 + $0x4] sm:$0xf]
        %v1017 = vsel %vm798, %v1014, 0
        %vm1019 = vcmask 1043456
        %v1021 = vsel %vm1019, %v1015, 0
        %1023 = vmatprep.subr.bf16.mxu0 0
        %1024 = vmatpush1.bf16.msra.mxu0 0
        %1025 = vmatprep.subr.bf16.mxu0 0
        %1026 = vmatpush1.bf16.msra.mxu0 0
        %1027 = vmatprep.subr.bf16.mxu0 0
        %1028 = vmatpush1.bf16.msra.mxu0 0
        %1029 = vmatprep.subr.bf16.mxu0 0
        %1030 = vmatpush1.bf16.msra.mxu0 0
        %1031 = vmatprep.subr.bf16.mxu0 0
        %1032 = vmatpush1.bf16.msra.mxu0 0
        %1033 = vmatprep.subr.bf16.mxu0 0
        %1034 = vmatpush1.bf16.msra.mxu0 0
        %1035 = vmatprep.subr.bf16.mxu0 0
        %1036 = vmatpush1.bf16.msra.mxu0 0
        %1037 = vmatprep.subr.bf16.mxu0 0
        %1038 = vmatpush1.bf16.msra.mxu0 %v1021
        %1039 = vmatprep.subr.bf16.mxu0 0
        %1040 = vmatpush2.bf16.msra.mxu0 0
        %1041 = vmatprep.subr.bf16.mxu0 0
        %1042 = vmatpush2.bf16.msra.mxu0 0
        %1043 = vmatprep.subr.bf16.mxu0 0
        %1044 = vmatpush2.bf16.msra.mxu0 0
        %1045 = vmatprep.subr.bf16.mxu0 0
        %1046 = vmatpush2.bf16.msra.mxu0 0
        %1047 = vmatprep.subr.bf16.mxu0 0
        %1048 = vmatpush2.bf16.msra.mxu0 0
        %1049 = vmatprep.subr.bf16.mxu0 0
        %1050 = vmatpush2.bf16.msra.mxu0 0
        %1051 = vmatprep.subr.bf16.mxu0 0
        %1052 = vmatpush2.bf16.msra.mxu0 0
        %1053 = vmatprep.subr.bf16.mxu0 0
        %1054 = vmatpush2.bf16.msra.mxu0 0
        %1055 = vmatprep.mubr.bf16.mxu0 0
        %1056 = vmatmul.mubr.bf16.gmra.mxu0 %v1017
        %v1057 = vpop.f32.mrf.mxu0
        %v1058 = vadd.f32 0.0, %v1057
        %v1059 = vpop.f32.mrf.mxu0
        %v1060 = vpop.f32.mrf.mxu0
        %v1061 = vpop.f32.mrf.mxu0
        %1062 = vdwg.mxu0
        %v1064 = vsel %vm798, %v901, 0
        %v1067 = vsel %vm1019, %v902, 0
        %1069 = vmatprep.subr.bf16.mxu0 0
        %1070 = vmatpush1.bf16.msra.mxu0 0
        %1071 = vmatprep.subr.bf16.mxu0 0
        %1072 = vmatpush1.bf16.msra.mxu0 0
        %1073 = vmatprep.subr.bf16.mxu0 0
        %1074 = vmatpush1.bf16.msra.mxu0 0
        %1075 = vmatprep.subr.bf16.mxu0 0
        %1076 = vmatpush1.bf16.msra.mxu0 0
        %1077 = vmatprep.subr.bf16.mxu0 0
        %1078 = vmatpush1.bf16.msra.mxu0 0
        %1079 = vmatprep.subr.bf16.mxu0 0
        %1080 = vmatpush1.bf16.msra.mxu0 0
        %1081 = vmatprep.subr.bf16.mxu0 0
        %1082 = vmatpush1.bf16.msra.mxu0 0
        %1083 = vmatprep.subr.bf16.mxu0 0
        %1084 = vmatpush1.bf16.msra.mxu0 %v1067
        %1085 = vmatprep.subr.bf16.mxu0 0
        %1086 = vmatpush2.bf16.msra.mxu0 0
        %1087 = vmatprep.subr.bf16.mxu0 0
        %1088 = vmatpush2.bf16.msra.mxu0 0
        %1089 = vmatprep.subr.bf16.mxu0 0
        %1090 = vmatpush2.bf16.msra.mxu0 0
        %1091 = vmatprep.subr.bf16.mxu0 0
        %1092 = vmatpush2.bf16.msra.mxu0 0
        %1093 = vmatprep.subr.bf16.mxu0 0
        %1094 = vmatpush2.bf16.msra.mxu0 0
        %1095 = vmatprep.subr.bf16.mxu0 0
        %1096 = vmatpush2.bf16.msra.mxu0 0
        %1097 = vmatprep.subr.bf16.mxu0 0
        %1098 = vmatpush2.bf16.msra.mxu0 0
        %1099 = vmatprep.subr.bf16.mxu0 0
        %1100 = vmatpush2.bf16.msra.mxu0 0
        %1101 = vmatprep.mubr.bf16.mxu0 0
        %1102 = vmatmul.mubr.bf16.gmra.mxu0 %v1064
        %v1103 = vpop.f32.mrf.mxu0
        %v1104 = vadd.f32 %v1058, %v1103
        %v1105 = vpop.f32.mrf.mxu0
        %v1106 = vpop.f32.mrf.mxu0
        %v1107 = vpop.f32.mrf.mxu0
        %1108 = vdwg.mxu0
        %1109 = vrot.lane.b32.xlu0 %v795, 112
        %v1110 = vpop.permute.xlu0 %1109
        %1111 = vrot.lane.b32.xlu0 %v796, 112
        %v1112 = vpop.permute.xlu0 %1111
        %v1114 = vsel %vm798, %v1110, 0
        %v1117 = vsel %vm798, %v1112, 0
        %1119 = vmatprep.subr.bf16.mxu0 0
        %1120 = vmatpush1.bf16.xpose.msra.mxu0 0
        %1121 = vmatprep.subr.bf16.mxu0 0
        %1122 = vmatpush1.bf16.xpose.msra.mxu0 0
        %1123 = vmatprep.subr.bf16.mxu0 0
        %1124 = vmatpush1.bf16.xpose.msra.mxu0 0
        %1125 = vmatprep.subr.bf16.mxu0 0
        %1126 = vmatpush1.bf16.xpose.msra.mxu0 0
        %1127 = vmatprep.subr.bf16.mxu0 0
        %1128 = vmatpush1.bf16.xpose.msra.mxu0 0
        %1129 = vmatprep.subr.bf16.mxu0 0
        %1130 = vmatpush1.bf16.xpose.msra.mxu0 0
        %1131 = vmatprep.subr.bf16.mxu0 0
        %1132 = vmatpush1.bf16.xpose.msra.mxu0 0
        %1133 = vmatprep.subr.bf16.mxu0 0
        %1134 = vmatpush1.bf16.xpose.msra.mxu0 %v1117
        %1135 = vmatprep.subr.bf16.mxu0 0
        %1136 = vmatpush2.bf16.xpose.msra.mxu0 0
        %1137 = vmatprep.subr.bf16.mxu0 0
        %1138 = vmatpush2.bf16.xpose.msra.mxu0 0
        %1139 = vmatprep.subr.bf16.mxu0 0
        %1140 = vmatpush2.bf16.xpose.msra.mxu0 0
        %1141 = vmatprep.subr.bf16.mxu0 0
        %1142 = vmatpush2.bf16.xpose.msra.mxu0 0
        %1143 = vmatprep.subr.bf16.mxu0 0
        %1144 = vmatpush2.bf16.xpose.msra.mxu0 0
        %1145 = vmatprep.subr.bf16.mxu0 0
        %1146 = vmatpush2.bf16.xpose.msra.mxu0 0
        %1147 = vmatprep.subr.bf16.mxu0 0
        %1148 = vmatpush2.bf16.xpose.msra.mxu0 0
        %1149 = vmatprep.subr.bf16.mxu0 0
        %1150 = vmatpush2.bf16.xpose.msra.mxu0 0
        %1151 = vmatprep.mubr.bf16.mxu0 0
        %1152 = vmatmul.mubr.bf16.gmra.mxu0 %v1114
        %v1153 = vpop.f32.mrf.mxu0
        %v1154 = vadd.f32 0.0, %v1153
        %v1155 = vpop.f32.mrf.mxu0
        %v1156 = vpop.f32.mrf.mxu0
        %v1157 = vpop.f32.mrf.mxu0
        %1158 = vdwg.mxu0
        %v1159 = vsel %vm845, %v1154, -inf
        %1160 = vmax.xlane.f32.xlu0 %v1159
        %v1161 = vpop.xlane.xlu0 %1160
        %v1162 = vsub.f32 %v1154, %v1161
        %v1163 = vmul.f32 %v1162, 1.442695
        %v1164 = vpow.pop %v1163
        %v1165 = vsel %vm845, %v1164, 0.0
        %1166 = vadd.xlane.f32.xlu0 %v1165
        %v1167 = vpop.xlane.xlu0 %1166
        %v1168 = vrcp.pop %v1167
        %v1169 = vmul.f32 %v1164, %v1168
        %v1170 = vpack.c.bf16 %v1169, %v1169
        %1171 = vrot.lane.b32.xlu0 %v797, 112
        %v1172 = vpop.permute.xlu0 %1171
        %v1175 = vsel %vm845, %v1170, 0
        %1177 = vmatprep.subr.bf16.mxu0 0
        %1178 = vmatpush1.bf16.msra.mxu0 0
        %1179 = vmatprep.subr.bf16.mxu0 0
        %1180 = vmatpush1.bf16.msra.mxu0 0
        %1181 = vmatprep.subr.bf16.mxu0 0
        %1182 = vmatpush1.bf16.msra.mxu0 0
        %1183 = vmatprep.subr.bf16.mxu0 0
        %1184 = vmatpush1.bf16.msra.mxu0 0
        %1185 = vmatprep.subr.bf16.mxu0 0
        %1186 = vmatpush1.bf16.msra.mxu0 0
        %1187 = vmatprep.subr.bf16.mxu0 0
        %1188 = vmatpush1.bf16.msra.mxu0 0
        %1189 = vmatprep.subr.bf16.mxu0 0
        %1190 = vmatpush1.bf16.msra.mxu0 0
        %1191 = vmatprep.subr.bf16.mxu0 0
        %1192 = vmatpush1.bf16.msra.mxu0 %v1172
        %1193 = vmatprep.subr.bf16.mxu0 0
        %1194 = vmatpush2.bf16.msra.mxu0 0
        %1195 = vmatprep.subr.bf16.mxu0 0
        %1196 = vmatpush2.bf16.msra.mxu0 0
        %1197 = vmatprep.subr.bf16.mxu0 0
        %1198 = vmatpush2.bf16.msra.mxu0 0
        %1199 = vmatprep.subr.bf16.mxu0 0
        %1200 = vmatpush2.bf16.msra.mxu0 0
        %1201 = vmatprep.subr.bf16.mxu0 0
        %1202 = vmatpush2.bf16.msra.mxu0 0
        %1203 = vmatprep.subr.bf16.mxu0 0
        %1204 = vmatpush2.bf16.msra.mxu0 0
        %1205 = vmatprep.subr.bf16.mxu0 0
        %1206 = vmatpush2.bf16.msra.mxu0 0
        %1207 = vmatprep.subr.bf16.mxu0 0
        %1208 = vmatpush2.bf16.msra.mxu0 0
        %1209 = vmatprep.mubr.bf16.mxu0 0
        %1210 = vmatmul.mubr.bf16.gmra.mxu0 %v1175
        %v1211 = vpop.f32.mrf.mxu0
        %v1212 = vadd.f32 0.0, %v1211
        %v1213 = vpop.f32.mrf.mxu0
        %v1214 = vpop.f32.mrf.mxu0
        %v1215 = vpop.f32.mrf.mxu0
        %1216 = vdwg.mxu0
        %v1217 = vpack.c.bf16 %v1212, %v1212
        %v1218 = vld [vmem:[#allocation14 + $0x8] sm:$0xf]
        %v1220 = vsel %vm798, %v1217, 0
        %v1223 = vsel %vm1019, %v1218, 0
        %1225 = vmatprep.subr.bf16.mxu0 0
        %1226 = vmatpush1.bf16.msra.mxu0 0
        %1227 = vmatprep.subr.bf16.mxu0 0
        %1228 = vmatpush1.bf16.msra.mxu0 0
        %1229 = vmatprep.subr.bf16.mxu0 0
        %1230 = vmatpush1.bf16.msra.mxu0 0
        %1231 = vmatprep.subr.bf16.mxu0 0
        %1232 = vmatpush1.bf16.msra.mxu0 0
        %1233 = vmatprep.subr.bf16.mxu0 0
        %1234 = vmatpush1.bf16.msra.mxu0 0
        %1235 = vmatprep.subr.bf16.mxu0 0
        %1236 = vmatpush1.bf16.msra.mxu0 0
        %1237 = vmatprep.subr.bf16.mxu0 0
        %1238 = vmatpush1.bf16.msra.mxu0 0
        %1239 = vmatprep.subr.bf16.mxu0 0
        %1240 = vmatpush1.bf16.msra.mxu0 %v1223
        %1241 = vmatprep.subr.bf16.mxu0 0
        %1242 = vmatpush2.bf16.msra.mxu0 0
        %1243 = vmatprep.subr.bf16.mxu0 0
        %1244 = vmatpush2.bf16.msra.mxu0 0
        %1245 = vmatprep.subr.bf16.mxu0 0
        %1246 = vmatpush2.bf16.msra.mxu0 0
        %1247 = vmatprep.subr.bf16.mxu0 0
        %1248 = vmatpush2.bf16.msra.mxu0 0
        %1249 = vmatprep.subr.bf16.mxu0 0
        %1250 = vmatpush2.bf16.msra.mxu0 0
        %1251 = vmatprep.subr.bf16.mxu0 0
        %1252 = vmatpush2.bf16.msra.mxu0 0
        %1253 = vmatprep.subr.bf16.mxu0 0
        %1254 = vmatpush2.bf16.msra.mxu0 0
        %1255 = vmatprep.subr.bf16.mxu0 0
        %1256 = vmatpush2.bf16.msra.mxu0 0
        %1257 = vmatprep.mubr.bf16.mxu0 0
        %1258 = vmatmul.mubr.bf16.gmra.mxu0 %v1220
        %v1259 = vpop.f32.mrf.mxu0
        %v1260 = vadd.f32 0.0, %v1259
        %v1261 = vpop.f32.mrf.mxu0
        %v1262 = vpop.f32.mrf.mxu0
        %v1263 = vpop.f32.mrf.mxu0
        %1264 = vdwg.mxu0
        %v1265 = vadd.f32 %v1104, %v1260
        %1266 = vrot.lane.b32.xlu0 %v795, 104
        %v1267 = vpop.permute.xlu0 %1266
        %1268 = vrot.lane.b32.xlu0 %v796, 104
        %v1269 = vpop.permute.xlu0 %1268
        %v1271 = vsel %vm798, %v1267, 0
        %v1274 = vsel %vm798, %v1269, 0
        %1276 = vmatprep.subr.bf16.mxu0 0
        %1277 = vmatpush1.bf16.xpose.msra.mxu0 0
        %1278 = vmatprep.subr.bf16.mxu0 0
        %1279 = vmatpush1.bf16.xpose.msra.mxu0 0
        %1280 = vmatprep.subr.bf16.mxu0 0
        %1281 = vmatpush1.bf16.xpose.msra.mxu0 0
        %1282 = vmatprep.subr.bf16.mxu0 0
        %1283 = vmatpush1.bf16.xpose.msra.mxu0 0
        %1284 = vmatprep.subr.bf16.mxu0 0
        %1285 = vmatpush1.bf16.xpose.msra.mxu0 0
        %1286 = vmatprep.subr.bf16.mxu0 0
        %1287 = vmatpush1.bf16.xpose.msra.mxu0 0
        %1288 = vmatprep.subr.bf16.mxu0 0
        %1289 = vmatpush1.bf16.xpose.msra.mxu0 0
        %1290 = vmatprep.subr.bf16.mxu0 0
        %1291 = vmatpush1.bf16.xpose.msra.mxu0 %v1274
        %1292 = vmatprep.subr.bf16.mxu0 0
        %1293 = vmatpush2.bf16.xpose.msra.mxu0 0
        %1294 = vmatprep.subr.bf16.mxu0 0
        %1295 = vmatpush2.bf16.xpose.msra.mxu0 0
        %1296 = vmatprep.subr.bf16.mxu0 0
        %1297 = vmatpush2.bf16.xpose.msra.mxu0 0
        %1298 = vmatprep.subr.bf16.mxu0 0
        %1299 = vmatpush2.bf16.xpose.msra.mxu0 0
        %1300 = vmatprep.subr.bf16.mxu0 0
        %1301 = vmatpush2.bf16.xpose.msra.mxu0 0
        %1302 = vmatprep.subr.bf16.mxu0 0
        %1303 = vmatpush2.bf16.xpose.msra.mxu0 0
        %1304 = vmatprep.subr.bf16.mxu0 0
        %1305 = vmatpush2.bf16.xpose.msra.mxu0 0
        %1306 = vmatprep.subr.bf16.mxu0 0
        %1307 = vmatpush2.bf16.xpose.msra.mxu0 0
        %1308 = vmatprep.mubr.bf16.mxu0 0
        %1309 = vmatmul.mubr.bf16.gmra.mxu0 %v1271
        %v1310 = vpop.f32.mrf.mxu0
        %v1311 = vadd.f32 0.0, %v1310
        %v1312 = vpop.f32.mrf.mxu0
        %v1313 = vpop.f32.mrf.mxu0
        %v1314 = vpop.f32.mrf.mxu0
        %1315 = vdwg.mxu0
        %v1316 = vsel %vm845, %v1311, -inf
        %1317 = vmax.xlane.f32.xlu0 %v1316
        %v1318 = vpop.xlane.xlu0 %1317
        %v1319 = vsub.f32 %v1311, %v1318
        %v1320 = vmul.f32 %v1319, 1.442695
        %v1321 = vpow.pop %v1320
        %v1322 = vsel %vm845, %v1321, 0.0
        %1323 = vadd.xlane.f32.xlu0 %v1322
        %v1324 = vpop.xlane.xlu0 %1323
        %v1325 = vrcp.pop %v1324
        %v1326 = vmul.f32 %v1321, %v1325
        %v1327 = vpack.c.bf16 %v1326, %v1326
        %1328 = vrot.lane.b32.xlu0 %v797, 104
        %v1329 = vpop.permute.xlu0 %1328
        %v1332 = vsel %vm845, %v1327, 0
        %1334 = vmatprep.subr.bf16.mxu0 0
        %1335 = vmatpush1.bf16.msra.mxu0 0
        %1336 = vmatprep.subr.bf16.mxu0 0
        %1337 = vmatpush1.bf16.msra.mxu0 0
        %1338 = vmatprep.subr.bf16.mxu0 0
        %1339 = vmatpush1.bf16.msra.mxu0 0
        %1340 = vmatprep.subr.bf16.mxu0 0
        %1341 = vmatpush1.bf16.msra.mxu0 0
        %1342 = vmatprep.subr.bf16.mxu0 0
        %1343 = vmatpush1.bf16.msra.mxu0 0
        %1344 = vmatprep.subr.bf16.mxu0 0
        %1345 = vmatpush1.bf16.msra.mxu0 0
        %1346 = vmatprep.subr.bf16.mxu0 0
        %1347 = vmatpush1.bf16.msra.mxu0 0
        %1348 = vmatprep.subr.bf16.mxu0 0
        %1349 = vmatpush1.bf16.msra.mxu0 %v1329
        %1350 = vmatprep.subr.bf16.mxu0 0
        %1351 = vmatpush2.bf16.msra.mxu0 0
        %1352 = vmatprep.subr.bf16.mxu0 0
        %1353 = vmatpush2.bf16.msra.mxu0 0
        %1354 = vmatprep.subr.bf16.mxu0 0
        %1355 = vmatpush2.bf16.msra.mxu0 0
        %1356 = vmatprep.subr.bf16.mxu0 0
        %1357 = vmatpush2.bf16.msra.mxu0 0
        %1358 = vmatprep.subr.bf16.mxu0 0
        %1359 = vmatpush2.bf16.msra.mxu0 0
        %1360 = vmatprep.subr.bf16.mxu0 0
        %1361 = vmatpush2.bf16.msra.mxu0 0
        %1362 = vmatprep.subr.bf16.mxu0 0
        %1363 = vmatpush2.bf16.msra.mxu0 0
        %1364 = vmatprep.subr.bf16.mxu0 0
        %1365 = vmatpush2.bf16.msra.mxu0 0
        %1366 = vmatprep.mubr.bf16.mxu0 0
        %1367 = vmatmul.mubr.bf16.gmra.mxu0 %v1332
        %v1368 = vpop.f32.mrf.mxu0
        %v1369 = vadd.f32 0.0, %v1368
        %v1370 = vpop.f32.mrf.mxu0
        %v1371 = vpop.f32.mrf.mxu0
        %v1372 = vpop.f32.mrf.mxu0
        %1373 = vdwg.mxu0
        %v1374 = vpack.c.bf16 %v1369, %v1369
        %v1375 = vld [vmem:[#allocation14 + $0xc] sm:$0xf]
        %v1377 = vsel %vm798, %v1374, 0
        %v1380 = vsel %vm1019, %v1375, 0
        %1382 = vmatprep.subr.bf16.mxu0 0
        %1383 = vmatpush1.bf16.msra.mxu0 0
        %1384 = vmatprep.subr.bf16.mxu0 0
        %1385 = vmatpush1.bf16.msra.mxu0 0
        %1386 = vmatprep.subr.bf16.mxu0 0
        %1387 = vmatpush1.bf16.msra.mxu0 0
        %1388 = vmatprep.subr.bf16.mxu0 0
        %1389 = vmatpush1.bf16.msra.mxu0 0
        %1390 = vmatprep.subr.bf16.mxu0 0
        %1391 = vmatpush1.bf16.msra.mxu0 0
        %1392 = vmatprep.subr.bf16.mxu0 0
        %1393 = vmatpush1.bf16.msra.mxu0 0
        %1394 = vmatprep.subr.bf16.mxu0 0
        %1395 = vmatpush1.bf16.msra.mxu0 0
        %1396 = vmatprep.subr.bf16.mxu0 0
        %1397 = vmatpush1.bf16.msra.mxu0 %v1380
        %1398 = vmatprep.subr.bf16.mxu0 0
        %1399 = vmatpush2.bf16.msra.mxu0 0
        %1400 = vmatprep.subr.bf16.mxu0 0
        %1401 = vmatpush2.bf16.msra.mxu0 0
        %1402 = vmatprep.subr.bf16.mxu0 0
        %1403 = vmatpush2.bf16.msra.mxu0 0
        %1404 = vmatprep.subr.bf16.mxu0 0
        %1405 = vmatpush2.bf16.msra.mxu0 0
        %1406 = vmatprep.subr.bf16.mxu0 0
        %1407 = vmatpush2.bf16.msra.mxu0 0
        %1408 = vmatprep.subr.bf16.mxu0 0
        %1409 = vmatpush2.bf16.msra.mxu0 0
        %1410 = vmatprep.subr.bf16.mxu0 0
        %1411 = vmatpush2.bf16.msra.mxu0 0
        %1412 = vmatprep.subr.bf16.mxu0 0
        %1413 = vmatpush2.bf16.msra.mxu0 0
        %1414 = vmatprep.mubr.bf16.mxu0 0
        %1415 = vmatmul.mubr.bf16.gmra.mxu0 %v1377
        %v1416 = vpop.f32.mrf.mxu0
        %v1417 = vadd.f32 0.0, %v1416
        %v1418 = vpop.f32.mrf.mxu0
        %v1419 = vpop.f32.mrf.mxu0
        %v1420 = vpop.f32.mrf.mxu0
        %1421 = vdwg.mxu0
        %v1422 = vadd.f32 %v1265, %v1417
        %v1423 = vlaneseq
        %v1424 = vshrl.u32 %v1423, 7
        %v1425 = vsub.s32 7, %v1424
        %v1426 = vrot.slane %v487, %v1425
        %v1427 = vadd.f32 %v1422, %v1426
        %1428 = vst.msk [vmem:[%s485] sm:$0xff] %vm489, %v1427
        %s1429 = sand.u32 %s238, 1
        %s1430 = scalar_lea.sflag [#allocation4], %s1429
        %s1431 = sand.u32 %s238, 1
        %s1432 = smul.addr %s1431, 8
        %s1433 = scalar_lea.vmem [#allocation16], %s1432
        // Predicated region
        $region85: #{tpu_custom_call.1} parent=51 // pred_check
          %p1434 = pneg %p248
        $region86: #{tpu_custom_call.1} parent=51 // pred_check_branch
          %1436 = sbr.rel (%p1434) target = $region88
        $region87: #{tpu_custom_call.1} parent=51 // pred_region
          %s1438 = ssub.s32 128, 128
          %1439 = vsyncadd %s1430, %s1438
          %s1440 = sadd.s32 %s36, %s35
          %s1441 = smul.addr %s1440, 128
          %s1442 = scalar_lea.hbm %s8, %s1441
          %s1444 = sshll.u32 %s1433, 4
          %s1445 = int_to_ptr.vmem [resolvable:$true] %s1444
          %1447 = dma.vmem_to_hbm [thread:$0]  %s1445, 128, %s1442, %s1430
        $region88: #{tpu_custom_call.1} parent=51 // pred_fallthru
          _
      $region52: #{tpu_custom_call.1} parent=5 // pred_fallthru
        _
      %p1448 = scmp.le.s32.totalorder 2, %s26
      // Predicated region
      $region89: #{tpu_custom_call.1} parent=5 // pred_check
        %p1449 = pneg %p1448
      $region90: #{tpu_custom_call.1} parent=5 // pred_check_branch
        %1451 = sbr.rel (%p1449) target = $region92
      $region91: #{tpu_custom_call.1} parent=5 // pred_region
        %s1452 = ssub.s32 %s26, 2
        // Predicated region
        $region93: #{tpu_custom_call.1} parent=91 // pred_check
          %p1453 = pneg %p254
        $region94: #{tpu_custom_call.1} parent=91 // pred_check_branch
          %1455 = sbr.rel (%p1453) target = $region96
        $region95: #{tpu_custom_call.1} parent=91 // pred_region
          %s1456 = sand.u32 %s239, 1
          %s1457 = scalar_lea.sflag [#allocation4], %s1456
          %s1458 = sand.u32 %s239, 1
          %s1459 = smul.addr %s1458, 8
          %s1460 = scalar_lea.vmem [#allocation16], %s1459
          %1461 = dma.done %s1457, 128
        $region96: #{tpu_custom_call.1} parent=91 // pred_fallthru
          _
      $region92: #{tpu_custom_call.1} parent=5 // pred_fallthru
        _
    $region6: #{tpu_custom_call.1} parent=1 // loop_footer
      %s30 = sadd.s32 1, %s26
    $region7: #{tpu_custom_call.1} parent=1 // loop_footer_branch
      %25 = sbr.rel target = $region3
    $region8: #{tpu_custom_call.1} parent=1 // loop_exit
      _
    %1462 = vsyncpa [#allocation3], 1
    %s1463 = scalar_lea.sflag [#allocation3], 1
    %1464 = vsyncpa %s1463, 1
    %1465 = vsyncpa [#allocation6], 1
    %s1466 = scalar_lea.sflag [#allocation6], 1
    %1467 = vsyncpa %s1466, 1
    %1468 = vsyncpa [#allocation9], 1
    %1469 = vsyncpa [#allocation12], 1
    %1470 = vsyncpa [#allocation15], 1
    %1471 = vsyncpa [#allocation4], 1
    %s1472 = scalar_lea.sflag [#allocation4], 1
    %1473 = vsyncpa %s1472, 1

</llo_original>
